<compile_context>
chip_gen: v6e
topology: v6e:2x2x1
jax: 0.10.0
libtpu: 0.0.40
codegen_flags: <defaults>
</compile_context>

<pallas_src>
import functools

import jax
import jax.numpy as jnp
import numpy as np
from jax.experimental import pallas as pl
from jax.experimental.pallas import tpu as pltpu

BN_EPS = 1e-5
LANES = 128
VMEM_LIMIT = 32 * 1024 * 1024   # safe scoped-VMEM request on v5e / v6e / v7x


def _round_up(x, m):
    return (x + m - 1) // m * m


def _pick_row_tile(m, cap=1024):
    """Largest multiple-of-8 divisor of m, capped (big tiles amortize per-step overhead)."""
    t = min(cap, m)
    t -= t % 8
    while t >= 8:
        if m % t == 0:
            return t
        t -= 8
    return m


# ---------------------------------------------------------------------------
# Kernel 1: 3x3 conv (9 shifted bf16 matmuls) + per-channel BN-stat accumulation
# ---------------------------------------------------------------------------
def _conv3x3_stats_kernel(xs_ref, w_ref, y_ref, stats_ref, acc_ref, *, H, W):
    """One image per grid step.
       xs_ref    (1, 3, H+2, W, Cp) bf16 : 3 W-shifted views of the H-padded image
       w_ref     (9, Cp, Cp)        bf16 : per-tap GEMM weights (tap = kh*3 + kw)
       y_ref     (1, H*W, Cp)       f32  : raw conv output of this image
       stats_ref (2, Cp)            f32  : [sum, sum_sq], accumulated across the grid
       acc_ref   (H*W, Cp)          f32  : VMEM scratch accumulator
    """
    @pl.when(pl.program_id(0) == 0)
    def _init():
        stats_ref[...] = jnp.zeros_like(stats_ref)

    hw = H * W
    cp = w_ref.shape[-1]

    acc_ref[...] = jnp.zeros_like(acc_ref)
    for kh in range(3):
        for kw in range(3):
            # Leading-dim slices only: (H, W, Cp); W is a multiple of 8 so the
            # reshape to (H*W, Cp) is layout-preserving.
            win = xs_ref[0, kw, kh:kh + H]
            acc_ref[...] += jnp.dot(win.reshape(hw, cp), w_ref[kh * 3 + kw],
                                    preferred_element_type=jnp.float32)

    acc = acc_ref[...]
    y_ref[0] = acc

    s = jnp.sum(acc, axis=0, keepdims=True)           # (1, Cp)  XLU reduce
    ss = jnp.sum(acc * acc, axis=0, keepdims=True)    # (1, Cp)
    stats_ref[...] += jnp.concatenate([s, ss], axis=0)


def conv3x3_with_stats(xs, w_taps, H, W):
    N = xs.shape[0]
    Cp = w_taps.shape[-1]
    Hp = H + 2
    HW = H * W
    kernel = functools.partial(_conv3x3_stats_kernel, H=H, W=W)
    flops = 2 * N * HW * 9 * Cp * Cp
    bytes_accessed = xs.size * 2 + w_taps.size * 2 + N * HW * Cp * 4 + 2 * Cp * 4
    return pl.pallas_call(
        kernel,
        out_shape=(jax.ShapeDtypeStruct((N, HW, Cp), jnp.float32),
                   jax.ShapeDtypeStruct((2, Cp), jnp.float32)),
        grid=(N,),
        in_specs=[
            pl.BlockSpec((1, 3, Hp, W, Cp), lambda i: (i, 0, 0, 0, 0)),
            pl.BlockSpec((9, Cp, Cp), lambda i: (0, 0, 0)),
        ],
        out_specs=(
            pl.BlockSpec((1, HW, Cp), lambda i: (i, 0, 0)),
            pl.BlockSpec((2, Cp), lambda i: (0, 0)),   # revisited -> stats accumulator
        ),
        scratch_shapes=[pltpu.VMEM((HW, Cp), jnp.float32)],
        compiler_params=pltpu.CompilerParams(
            dimension_semantics=("arbitrary",),        # stats accumulate across images
            vmem_limit_bytes=VMEM_LIMIT),
        cost_estimate=pl.CostEstimate(flops=flops, transcendentals=0,
                                      bytes_accessed=bytes_accessed),
    )(xs, w_taps)


# ---------------------------------------------------------------------------
# Kernel 2: BN apply (scale/shift) [+ residual] + ReLU, lane-dense, tiled over M
# ---------------------------------------------------------------------------
def _bn_relu_kernel(y_ref, scale_ref, shift_ref, o_ref):
    y = y_ref[...] * scale_ref[...] + shift_ref[...]
    o_ref[...] = jnp.maximum(y, 0.0).astype(o_ref.dtype)


def _bn_add_relu_kernel(y_ref, scale_ref, shift_ref, res_ref, o_ref):
    y = y_ref[...] * scale_ref[...] + shift_ref[...] + res_ref[...]
    o_ref[...] = jnp.maximum(y, 0.0).astype(o_ref.dtype)


def bn_apply_relu(y, scale, shift, residual, out_dtype):
    M, Cp = y.shape
    tile = _pick_row_tile(M)
    grid = (M // tile,)
    scale2 = scale.reshape(1, Cp).astype(jnp.float32)
    shift2 = shift.reshape(1, Cp).astype(jnp.float32)
    row_spec = pl.BlockSpec((tile, Cp), lambda i: (i, 0))
    vec_spec = pl.BlockSpec((1, Cp), lambda i: (0, 0))
    cparams = pltpu.CompilerParams(dimension_semantics=("parallel",),
                                   vmem_limit_bytes=VMEM_LIMIT)
    if residual is None:      # stage 1: no zero-residual DMA
        return pl.pallas_call(
            _bn_relu_kernel,
            out_shape=jax.ShapeDtypeStruct((M, Cp), out_dtype),
            grid=grid,
            in_specs=[row_spec, vec_spec, vec_spec],
            out_specs=row_spec,
            compiler_params=cparams,
        )(y, scale2, shift2)
    return pl.pallas_call(
        _bn_add_relu_kernel,
        out_shape=jax.ShapeDtypeStruct((M, Cp), out_dtype),
        grid=grid,
        in_specs=[row_spec, vec_spec, vec_spec, row_spec],
        out_specs=row_spec,
        compiler_params=cparams,
    )(y, scale2, shift2, residual)


# ---------------------------------------------------------------------------
# Glue: layout conversion, padding, per-tap weights, BN scale/shift fold
# ---------------------------------------------------------------------------
def _prep_conv_weight(w_oihw, cp):
    """PyTorch (Cout, Cin, 3, 3) -> (9, Cp, Cp) bf16 per-tap GEMM weights (tap = kh*3+kw)."""
    cout, cin, kh, kw = w_oihw.shape
    w = jnp.transpose(w_oihw, (2, 3, 1, 0)).reshape(kh * kw, cin, cout)
    w = jnp.pad(w, ((0, 0), (0, cp - cin), (0, cp - cout)))
    return w.astype(jnp.bfloat16)


def _make_shifted_views(x_nhwc):
    """(N, H, W, Cp) -> (N, 3, H+2, W, Cp) bf16: H zero-padded, 3 W-shifted views.
    Pure index shuffling on the host (3x input bytes, not 9x im2col); lets the
    kernel express the 3x3 conv using only leading-dim slices."""
    N, H, W, Cp = x_nhwc.shape
    xp = jnp.pad(x_nhwc, ((0, 0), (1, 1), (1, 1), (0, 0)))
    views = [xp[:, :, kw:kw + W, :] for kw in range(3)]
    return jnp.stack(views, axis=1).astype(jnp.bfloat16)


def _bn_scale_shift(stats, gamma, beta, count):
    """Fold batch stats (biased var, eps=1e-5) + affine params into per-channel
    scale/shift.  Tiny (Cp,)-vector math -> plain JAX glue."""
    mean = stats[0] / count
    var = jnp.maximum(stats[1] / count - mean * mean, 0.0)
    scale = gamma * jax.lax.rsqrt(var + BN_EPS)
    shift = beta - mean * scale
    return scale, shift


def block_forward(x_nchw, params):
    """Forward of `Block` with i_downsample=None, stride=1 (in_ch == out_ch)."""
    x = jnp.transpose(x_nchw, (0, 2, 3, 1)).astype(jnp.float32)   # NCHW -> NHWC
    N, H, W, C = x.shape
    assert W % 8 == 0, "kernel requires W to be a multiple of 8 (sublane tiling)"
    Cp = _round_up(C, LANES)      # lane-dense channels: unmasked vst, full MXU columns
    M = N * H * W

    x_p = jnp.pad(x, ((0, 0), (0, 0), (0, 0), (0, Cp - C)))
    identity = x_p.reshape(M, Cp)

    w1 = _prep_conv_weight(params["conv1_w"], Cp)
    w2 = _prep_conv_weight(params["conv2_w"], Cp)
    gamma = jnp.pad(params["bn2_gamma"].astype(jnp.float32), (0, Cp - C))
    beta = jnp.pad(params["bn2_beta"].astype(jnp.float32), (0, Cp - C))
    # NOTE: bn1 parameters exist in the module but forward() applies batch_norm2
    # after BOTH convs -- reproduced faithfully.

    # ---- stage 1: h = relu(bn2(conv1(x)))  (no residual) ----
    y1, stats1 = conv3x3_with_stats(_make_shifted_views(x_p), w1, H, W)
    scale1, shift1 = _bn_scale_shift(stats1, gamma, beta, M)
    h = bn_apply_relu(y1.reshape(M, Cp), scale1, shift1, residual=None,
                      out_dtype=jnp.bfloat16)           # bf16: feeds conv2's MXU

    # ---- stage 2: out = relu(bn2(conv2(h)) + x) ----
    y2, stats2 = conv3x3_with_stats(_make_shifted_views(h.reshape(N, H, W, Cp)),
                                    w2, H, W)
    scale2, shift2 = _bn_scale_shift(stats2, gamma, beta, M)
    out = bn_apply_relu(y2.reshape(M, Cp), scale2, shift2, residual=identity,
                        out_dtype=jnp.float32)

    out = out.reshape(N, H, W, Cp)[..., :C]
    return jnp.transpose(out, (0, 3, 1, 2))              # NHWC -> NCHW


# ---------------------------------------------------------------------------
# Pure-JAX f32 reference (for correctness check)
# ---------------------------------------------------------------------------
def ref_forward(x_nchw, params):
    def conv(x, w):
        return jax.lax.conv_general_dilated(
            x, w, window_strides=(1, 1), padding=((1, 1), (1, 1)),
            dimension_numbers=("NCHW", "OIHW", "NCHW"))

    def bn(x, g, b):
        mean = jnp.mean(x, axis=(0, 2, 3), keepdims=True)
        var = jnp.mean(jnp.square(x - mean), axis=(0, 2, 3), keepdims=True)
        xh = (x - mean) * jax.lax.rsqrt(var + BN_EPS)
        return xh * g.reshape(1, -1, 1, 1) + b.reshape(1, -1, 1, 1)

    identity = x_nchw
    h = jax.nn.relu(bn(conv(x_nchw, params["conv1_w"]),
                       params["bn2_gamma"], params["bn2_beta"]))
    h = bn(conv(h, params["conv2_w"]), params["bn2_gamma"], params["bn2_beta"])
    return jax.nn.relu(h + identity)


# ---------------------------------------------------------------------------
if __name__ == "__main__":
    key = jax.random.PRNGKey(0)
    kx, kw1, kw2, kg, kb = jax.random.split(key, 5)

    N, C, H, W = 2, 4, 16, 16       # in_channels == out_channels (required when
    #                                 i_downsample=None so the residual add works)
    fan_in = 9 * C
    params = {
        "conv1_w": jax.random.normal(kw1, (C, C, 3, 3), jnp.float32) / np.sqrt(fan_in),
        "conv2_w": jax.random.normal(kw2, (C, C, 3, 3), jnp.float32) / np.sqrt(fan_in),
        # batch_norm1 params exist in the module but forward() never uses them.
        "bn2_gamma": 1.0 + 0.1 * jax.random.normal(kg, (C,), jnp.float32),
        "bn2_beta": 0.1 * jax.random.normal(kb, (C,), jnp.float32),
    }

    x = jax.random.normal(kx, (N, C, H, W), jnp.float32)   # NCHW, like PyTorch

    out = jax.block_until_ready(jax.jit(block_forward)(x, params))
    ref = jax.block_until_ready(ref_forward(x, params))

    assert out.shape == (N, C, H, W)
    # bf16 MXU operands -> slightly relaxed tolerance vs pure-f32 reference.
    np.testing.assert_allclose(np.asarray(out), np.asarray(ref), atol=2e-2, rtol=2e-2)

    print("KERNEL_OK")
</pallas_src>

<mosaic_0001>
module attributes {stable_mosaic.version = 11 : i64} {
  func.func @_bn_relu_kernel(%arg0: i32, %arg1: memref<512x128xf32, #tpu.memory_space<vmem>>, %arg2: memref<1x128xf32, #tpu.memory_space<vmem>>, %arg3: memref<1x128xf32, #tpu.memory_space<vmem>>, %arg4: memref<512x128xbf16, #tpu.memory_space<vmem>>) attributes {dimension_semantics = [#tpu.dimension_semantics<parallel>], iteration_bounds = array<i64: 1>, scalar_prefetch = 0 : i64, scratch_operands = 0 : i64, tpu.core_type = #tpu.core_type<tc>, window_params = [{transform_indices = @transform_0, window_bounds = array<i64: 512, 128>}, {pipeline_mode = #tpu.pipeline_mode<synchronous>, transform_indices = @transform_1, window_bounds = array<i64: 1, 128>}, {pipeline_mode = #tpu.pipeline_mode<synchronous>, transform_indices = @transform_2, window_bounds = array<i64: 1, 128>}, {transform_indices = @transform_3, window_bounds = array<i64: 512, 128>}]} {
    %c0 = arith.constant 0 : index
    %c0_0 = arith.constant 0 : index
    %0 = vector.load %arg1[%c0, %c0_0] : memref<512x128xf32, #tpu.memory_space<vmem>>, vector<512x128xf32>
    %c0_1 = arith.constant 0 : index
    %c0_2 = arith.constant 0 : index
    %1 = vector.load %arg2[%c0_1, %c0_2] : memref<1x128xf32, #tpu.memory_space<vmem>>, vector<1x128xf32>
    %2 = vector.broadcast %1 : vector<1x128xf32> to vector<512x128xf32>
    %3 = arith.mulf %0, %2 : vector<512x128xf32>
    %c0_3 = arith.constant 0 : index
    %c0_4 = arith.constant 0 : index
    %4 = vector.load %arg3[%c0_3, %c0_4] : memref<1x128xf32, #tpu.memory_space<vmem>>, vector<1x128xf32>
    %5 = vector.broadcast %4 : vector<1x128xf32> to vector<512x128xf32>
    %6 = arith.addf %3, %5 : vector<512x128xf32>
    %cst = arith.constant 0.000000e+00 : f32
    %7 = vector.broadcast %cst : f32 to vector<512x128xf32>
    %8 = arith.maximumf %6, %7 : vector<512x128xf32>
    %9 = arith.truncf %8 : vector<512x128xf32> to vector<512x128xbf16>
    %c0_5 = arith.constant 0 : index
    %c0_6 = arith.constant 0 : index
    %10 = vector.load %arg4[%c0_5, %c0_6] : memref<512x128xbf16, #tpu.memory_space<vmem>>, vector<512x128xbf16>
    tpu.vector_store %arg4[%c0_5, %c0_6], %9 {strides = array<i32>} : memref<512x128xbf16, #tpu.memory_space<vmem>>, vector<512x128xbf16>,
    return
  }
  func.func @transform_0(%arg0: i32) -> (i32, i32) {
    %c0_i32 = arith.constant 0 : i32
    %c0_i32_0 = arith.constant 0 : i32
    return %arg0, %c0_i32 : i32, i32
  }
  func.func @transform_1(%arg0: i32) -> (i32, i32) {
    %c0_i32 = arith.constant 0 : i32
    %c0_i32_0 = arith.constant 0 : i32
    %c0_i32_1 = arith.constant 0 : i32
    return %c0_i32, %c0_i32_0 : i32, i32
  }
  func.func @transform_2(%arg0: i32) -> (i32, i32) {
    %c0_i32 = arith.constant 0 : i32
    %c0_i32_0 = arith.constant 0 : i32
    %c0_i32_1 = arith.constant 0 : i32
    return %c0_i32, %c0_i32_0 : i32, i32
  }
  func.func @transform_3(%arg0: i32) -> (i32, i32) {
    %c0_i32 = arith.constant 0 : i32
    %c0_i32_0 = arith.constant 0 : i32
    return %arg0, %c0_i32 : i32, i32
  }
}

module attributes {stable_mosaic.version = 11 : i64} {
  func.func @_conv3x3_stats_kernel(%arg0: i32, %arg1: memref<1x3x18x16x128xbf16, #tpu.memory_space<vmem>>, %arg2: memref<9x128x128xbf16, #tpu.memory_space<vmem>>, %arg3: memref<1x256x128xf32, #tpu.memory_space<vmem>>, %arg4: memref<2x128xf32, #tpu.memory_space<vmem>>, %arg5: memref<256x128xf32, #tpu.memory_space<vmem>>) attributes {dimension_semantics = [#tpu.dimension_semantics<arbitrary>], iteration_bounds = array<i64: 2>, scalar_prefetch = 0 : i64, scratch_operands = 1 : i64, tpu.core_type = #tpu.core_type<tc>, window_params = [{transform_indices = @transform_0, window_bounds = array<i64: 1, 3, 18, 16, 128>}, {pipeline_mode = #tpu.pipeline_mode<synchronous>, transform_indices = @transform_1, window_bounds = array<i64: 9, 128, 128>}, {transform_indices = @transform_2, window_bounds = array<i64: 1, 256, 128>}, {pipeline_mode = #tpu.pipeline_mode<synchronous>, transform_indices = @transform_3, window_bounds = array<i64: 2, 128>}]} {
    %c0_i32 = arith.constant 0 : i32
    %0 = arith.cmpi eq, %arg0, %c0_i32 : i32
    %1 = arith.extui %0 : i1 to i32
    %c0_i32_0 = arith.constant 0 : i32
    %2 = arith.cmpi ne, %1, %c0_i32_0 : i32
    scf.if %2 {
      %cst_122 = arith.constant 0.000000e+00 : f32
      %99 = vector.broadcast %cst_122 : f32 to vector<2x128xf32>
      %c0_123 = arith.constant 0 : index
      %c0_124 = arith.constant 0 : index
      %100 = vector.load %arg4[%c0_123, %c0_124] : memref<2x128xf32, #tpu.memory_space<vmem>>, vector<2x128xf32>
      tpu.vector_store %arg4[%c0_123, %c0_124], %99 {strides = array<i32>} : memref<2x128xf32, #tpu.memory_space<vmem>>, vector<2x128xf32>,
    } else {
    }
    %cst = arith.constant 0.000000e+00 : f32
    %3 = vector.broadcast %cst : f32 to vector<256x128xf32>
    %c0 = arith.constant 0 : index
    %c0_1 = arith.constant 0 : index
    %4 = vector.load %arg5[%c0, %c0_1] : memref<256x128xf32, #tpu.memory_space<vmem>>, vector<256x128xf32>
    tpu.vector_store %arg5[%c0, %c0_1], %3 {strides = array<i32>} : memref<256x128xf32, #tpu.memory_space<vmem>>, vector<256x128xf32>,
    %c0_2 = arith.constant 0 : index
    %c0_3 = arith.constant 0 : index
    %c0_4 = arith.constant 0 : index
    %c0_5 = arith.constant 0 : index
    %c0_6 = arith.constant 0 : index
    %5 = vector.load %arg1[%c0_2, %c0_3, %c0_4, %c0_5, %c0_6] : memref<1x3x18x16x128xbf16, #tpu.memory_space<vmem>>, vector<1x1x16x16x128xbf16>
    %6 = vector.shape_cast %5 : vector<1x1x16x16x128xbf16> to vector<16x16x128xbf16>
    %c0_7 = arith.constant 0 : index
    %c0_8 = arith.constant 0 : index
    %7 = vector.load %arg5[%c0_7, %c0_8] : memref<256x128xf32, #tpu.memory_space<vmem>>, vector<256x128xf32>
    %8 = vector.shape_cast %6 : vector<16x16x128xbf16> to vector<256x128xbf16>
    %c0_9 = arith.constant 0 : index
    %c0_10 = arith.constant 0 : index
    %c0_11 = arith.constant 0 : index
    %9 = vector.load %arg2[%c0_9, %c0_10, %c0_11] : memref<9x128x128xbf16, #tpu.memory_space<vmem>>, vector<1x128x128xbf16>
    %10 = vector.shape_cast %9 : vector<1x128x128xbf16> to vector<128x128xbf16>
    %cst_12 = arith.constant dense<0.000000e+00> : vector<256x128xf32>
    %11 = tpu.matmul %8, %10, %cst_12 {dimension_numbers = #tpu.dot_dimension_numbers<[1], [0], [0], [1], [0, 0, 1, 1], [], []>} : vector<256x128xbf16>, vector<128x128xbf16>, vector<256x128xf32> -> vector<256x128xf32>
    %12 = arith.addf %7, %11 : vector<256x128xf32>
    %c0_13 = arith.constant 0 : index
    %c0_14 = arith.constant 0 : index
    %13 = vector.load %arg5[%c0_13, %c0_14] : memref<256x128xf32, #tpu.memory_space<vmem>>, vector<256x128xf32>
    tpu.vector_store %arg5[%c0_13, %c0_14], %12 {strides = array<i32>} : memref<256x128xf32, #tpu.memory_space<vmem>>, vector<256x128xf32>,
    %c0_15 = arith.constant 0 : index
    %c1 = arith.constant 1 : index
    %c0_16 = arith.constant 0 : index
    %c0_17 = arith.constant 0 : index
    %c0_18 = arith.constant 0 : index
    %14 = vector.load %arg1[%c0_15, %c1, %c0_16, %c0_17, %c0_18] : memref<1x3x18x16x128xbf16, #tpu.memory_space<vmem>>, vector<1x1x16x16x128xbf16>
    %15 = vector.shape_cast %14 : vector<1x1x16x16x128xbf16> to vector<16x16x128xbf16>
    %c0_19 = arith.constant 0 : index
    %c0_20 = arith.constant 0 : index
    %16 = vector.load %arg5[%c0_19, %c0_20] : memref<256x128xf32, #tpu.memory_space<vmem>>, vector<256x128xf32>
    %17 = vector.shape_cast %15 : vector<16x16x128xbf16> to vector<256x128xbf16>
    %c1_21 = arith.constant 1 : index
    %c0_22 = arith.constant 0 : index
    %c0_23 = arith.constant 0 : index
    %18 = vector.load %arg2[%c1_21, %c0_22, %c0_23] : memref<9x128x128xbf16, #tpu.memory_space<vmem>>, vector<1x128x128xbf16>
    %19 = vector.shape_cast %18 : vector<1x128x128xbf16> to vector<128x128xbf16>
    %cst_24 = arith.constant dense<0.000000e+00> : vector<256x128xf32>
    %20 = tpu.matmul %17, %19, %cst_24 {dimension_numbers = #tpu.dot_dimension_numbers<[1], [0], [0], [1], [0, 0, 1, 1], [], []>} : vector<256x128xbf16>, vector<128x128xbf16>, vector<256x128xf32> -> vector<256x128xf32>
    %21 = arith.addf %16, %20 : vector<256x128xf32>
    %c0_25 = arith.constant 0 : index
    %c0_26 = arith.constant 0 : index
    %22 = vector.load %arg5[%c0_25, %c0_26] : memref<256x128xf32, #tpu.memory_space<vmem>>, vector<256x128xf32>
    tpu.vector_store %arg5[%c0_25, %c0_26], %21 {strides = array<i32>} : memref<256x128xf32, #tpu.memory_space<vmem>>, vector<256x128xf32>,
    %c0_27 = arith.constant 0 : index
    %c2 = arith.constant 2 : index
    %c0_28 = arith.constant 0 : index
    %c0_29 = arith.constant 0 : index
    %c0_30 = arith.constant 0 : index
    %23 = vector.load %arg1[%c0_27, %c2, %c0_28, %c0_29, %c0_30] : memref<1x3x18x16x128xbf16, #tpu.memory_space<vmem>>, vector<1x1x16x16x128xbf16>
    %24 = vector.shape_cast %23 : vector<1x1x16x16x128xbf16> to vector<16x16x128xbf16>
    %c0_31 = arith.constant 0 : index
    %c0_32 = arith.constant 0 : index
    %25 = vector.load %arg5[%c0_31, %c0_32] : memref<256x128xf32, #tpu.memory_space<vmem>>, vector<256x128xf32>
    %26 = vector.shape_cast %24 : vector<16x16x128xbf16> to vector<256x128xbf16>
    %c2_33 = arith.constant 2 : index
    %c0_34 = arith.constant 0 : index
    %c0_35 = arith.constant 0 : index
    %27 = vector.load %arg2[%c2_33, %c0_34, %c0_35] : memref<9x128x128xbf16, #tpu.memory_space<vmem>>, vector<1x128x128xbf16>
    %28 = vector.shape_cast %27 : vector<1x128x128xbf16> to vector<128x128xbf16>
    %cst_36 = arith.constant dense<0.000000e+00> : vector<256x128xf32>
    %29 = tpu.matmul %26, %28, %cst_36 {dimension_numbers = #tpu.dot_dimension_numbers<[1], [0], [0], [1], [0, 0, 1, 1], [], []>} : vector<256x128xbf16>, vector<128x128xbf16>, vector<256x128xf32> -> vector<256x128xf32>
    %30 = arith.addf %25, %29 : vector<256x128xf32>
    %c0_37 = arith.constant 0 : index
    %c0_38 = arith.constant 0 : index
    %31 = vector.load %arg5[%c0_37, %c0_38] : memref<256x128xf32, #tpu.memory_space<vmem>>, vector<256x128xf32>
    tpu.vector_store %arg5[%c0_37, %c0_38], %30 {strides = array<i32>} : memref<256x128xf32, #tpu.memory_space<vmem>>, vector<256x128xf32>,
    %c0_39 = arith.constant 0 : index
    %c0_40 = arith.constant 0 : index
    %c1_41 = arith.constant 1 : index
    %c0_42 = arith.constant 0 : index
    %c0_43 = arith.constant 0 : index
    %32 = vector.load %arg1[%c0_39, %c0_40, %c1_41, %c0_42, %c0_43] : memref<1x3x18x16x128xbf16, #tpu.memory_space<vmem>>, vector<1x1x16x16x128xbf16>
    %33 = vector.shape_cast %32 : vector<1x1x16x16x128xbf16> to vector<16x16x128xbf16>
    %c0_44 = arith.constant 0 : index
    %c0_45 = arith.constant 0 : index
    %34 = vector.load %arg5[%c0_44, %c0_45] : memref<256x128xf32, #tpu.memory_space<vmem>>, vector<256x128xf32>
    %35 = vector.shape_cast %33 : vector<16x16x128xbf16> to vector<256x128xbf16>
    %c3 = arith.constant 3 : index
    %c0_46 = arith.constant 0 : index
    %c0_47 = arith.constant 0 : index
    %36 = vector.load %arg2[%c3, %c0_46, %c0_47] : memref<9x128x128xbf16, #tpu.memory_space<vmem>>, vector<1x128x128xbf16>
    %37 = vector.shape_cast %36 : vector<1x128x128xbf16> to vector<128x128xbf16>
    %cst_48 = arith.constant dense<0.000000e+00> : vector<256x128xf32>
    %38 = tpu.matmul %35, %37, %cst_48 {dimension_numbers = #tpu.dot_dimension_numbers<[1], [0], [0], [1], [0, 0, 1, 1], [], []>} : vector<256x128xbf16>, vector<128x128xbf16>, vector<256x128xf32> -> vector<256x128xf32>
    %39 = arith.addf %34, %38 : vector<256x128xf32>
    %c0_49 = arith.constant 0 : index
    %c0_50 = arith.constant 0 : index
    %40 = vector.load %arg5[%c0_49, %c0_50] : memref<256x128xf32, #tpu.memory_space<vmem>>, vector<256x128xf32>
    tpu.vector_store %arg5[%c0_49, %c0_50], %39 {strides = array<i32>} : memref<256x128xf32, #tpu.memory_space<vmem>>, vector<256x128xf32>,
    %c0_51 = arith.constant 0 : index
    %c1_52 = arith.constant 1 : index
    %c1_53 = arith.constant 1 : index
    %c0_54 = arith.constant 0 : index
    %c0_55 = arith.constant 0 : index
    %41 = vector.load %arg1[%c0_51, %c1_52, %c1_53, %c0_54, %c0_55] : memref<1x3x18x16x128xbf16, #tpu.memory_space<vmem>>, vector<1x1x16x16x128xbf16>
    %42 = vector.shape_cast %41 : vector<1x1x16x16x128xbf16> to vector<16x16x128xbf16>
    %c0_56 = arith.constant 0 : index
    %c0_57 = arith.constant 0 : index
    %43 = vector.load %arg5[%c0_56, %c0_57] : memref<256x128xf32, #tpu.memory_space<vmem>>, vector<256x128xf32>
    %44 = vector.shape_cast %42 : vector<16x16x128xbf16> to vector<256x128xbf16>
    %c4 = arith.constant 4 : index
    %c0_58 = arith.constant 0 : index
    %c0_59 = arith.constant 0 : index
    %45 = vector.load %arg2[%c4, %c0_58, %c0_59] : memref<9x128x128xbf16, #tpu.memory_space<vmem>>, vector<1x128x128xbf16>
    %46 = vector.shape_cast %45 : vector<1x128x128xbf16> to vector<128x128xbf16>
    %cst_60 = arith.constant dense<0.000000e+00> : vector<256x128xf32>
    %47 = tpu.matmul %44, %46, %cst_60 {dimension_numbers = #tpu.dot_dimension_numbers<[1], [0], [0], [1], [0, 0, 1, 1], [], []>} : vector<256x128xbf16>, vector<128x128xbf16>, vector<256x128xf32> -> vector<256x128xf32>
    %48 = arith.addf %43, %47 : vector<256x128xf32>
    %c0_61 = arith.constant 0 : index
    %c0_62 = arith.constant 0 : index
    %49 = vector.load %arg5[%c0_61, %c0_62] : memref<256x128xf32, #tpu.memory_space<vmem>>, vector<256x128xf32>
    tpu.vector_store %arg5[%c0_61, %c0_62], %48 {strides = array<i32>} : memref<256x128xf32, #tpu.memory_space<vmem>>, vector<256x128xf32>,
    %c0_63 = arith.constant 0 : index
    %c2_64 = arith.constant 2 : index
    %c1_65 = arith.constant 1 : index
    %c0_66 = arith.constant 0 : index
    %c0_67 = arith.constant 0 : index
    %50 = vector.load %arg1[%c0_63, %c2_64, %c1_65, %c0_66, %c0_67] : memref<1x3x18x16x128xbf16, #tpu.memory_space<vmem>>, vector<1x1x16x16x128xbf16>
    %51 = vector.shape_cast %50 : vector<1x1x16x16x128xbf16> to vector<16x16x128xbf16>
    %c0_68 = arith.constant 0 : index
    %c0_69 = arith.constant 0 : index
    %52 = vector.load %arg5[%c0_68, %c0_69] : memref<256x128xf32, #tpu.memory_space<vmem>>, vector<256x128xf32>
    %53 = vector.shape_cast %51 : vector<16x16x128xbf16> to vector<256x128xbf16>
    %c5 = arith.constant 5 : index
    %c0_70 = arith.constant 0 : index
    %c0_71 = arith.constant 0 : index
    %54 = vector.load %arg2[%c5, %c0_70, %c0_71] : memref<9x128x128xbf16, #tpu.memory_space<vmem>>, vector<1x128x128xbf16>
    %55 = vector.shape_cast %54 : vector<1x128x128xbf16> to vector<128x128xbf16>
    %cst_72 = arith.constant dense<0.000000e+00> : vector<256x128xf32>
    %56 = tpu.matmul %53, %55, %cst_72 {dimension_numbers = #tpu.dot_dimension_numbers<[1], [0], [0], [1], [0, 0, 1, 1], [], []>} : vector<256x128xbf16>, vector<128x128xbf16>, vector<256x128xf32> -> vector<256x128xf32>
    %57 = arith.addf %52, %56 : vector<256x128xf32>
    %c0_73 = arith.constant 0 : index
    %c0_74 = arith.constant 0 : index
    %58 = vector.load %arg5[%c0_73, %c0_74] : memref<256x128xf32, #tpu.memory_space<vmem>>, vector<256x128xf32>
    tpu.vector_store %arg5[%c0_73, %c0_74], %57 {strides = array<i32>} : memref<256x128xf32, #tpu.memory_space<vmem>>, vector<256x128xf32>,
    %c0_75 = arith.constant 0 : index
    %c0_76 = arith.constant 0 : index
    %c2_77 = arith.constant 2 : index
    %c0_78 = arith.constant 0 : index
    %c0_79 = arith.constant 0 : index
    %59 = vector.load %arg1[%c0_75, %c0_76, %c2_77, %c0_78, %c0_79] : memref<1x3x18x16x128xbf16, #tpu.memory_space<vmem>>, vector<1x1x16x16x128xbf16>
    %60 = vector.shape_cast %59 : vector<1x1x16x16x128xbf16> to vector<16x16x128xbf16>
    %c0_80 = arith.constant 0 : index
    %c0_81 = arith.constant 0 : index
    %61 = vector.load %arg5[%c0_80, %c0_81] : memref<256x128xf32, #tpu.memory_space<vmem>>, vector<256x128xf32>
    %62 = vector.shape_cast %60 : vector<16x16x128xbf16> to vector<256x128xbf16>
    %c6 = arith.constant 6 : index
    %c0_82 = arith.constant 0 : index
    %c0_83 = arith.constant 0 : index
    %63 = vector.load %arg2[%c6, %c0_82, %c0_83] : memref<9x128x128xbf16, #tpu.memory_space<vmem>>, vector<1x128x128xbf16>
    %64 = vector.shape_cast %63 : vector<1x128x128xbf16> to vector<128x128xbf16>
    %cst_84 = arith.constant dense<0.000000e+00> : vector<256x128xf32>
    %65 = tpu.matmul %62, %64, %cst_84 {dimension_numbers = #tpu.dot_dimension_numbers<[1], [0], [0], [1], [0, 0, 1, 1], [], []>} : vector<256x128xbf16>, vector<128x128xbf16>, vector<256x128xf32> -> vector<256x128xf32>
    %66 = arith.addf %61, %65 : vector<256x128xf32>
    %c0_85 = arith.constant 0 : index
    %c0_86 = arith.constant 0 : index
    %67 = vector.load %arg5[%c0_85, %c0_86] : memref<256x128xf32, #tpu.memory_space<vmem>>, vector<256x128xf32>
    tpu.vector_store %arg5[%c0_85, %c0_86], %66 {strides = array<i32>} : memref<256x128xf32, #tpu.memory_space<vmem>>, vector<256x128xf32>,
    %c0_87 = arith.constant 0 : index
    %c1_88 = arith.constant 1 : index
    %c2_89 = arith.constant 2 : index
    %c0_90 = arith.constant 0 : index
    %c0_91 = arith.constant 0 : index
    %68 = vector.load %arg1[%c0_87, %c1_88, %c2_89, %c0_90, %c0_91] : memref<1x3x18x16x128xbf16, #tpu.memory_space<vmem>>, vector<1x1x16x16x128xbf16>
    %69 = vector.shape_cast %68 : vector<1x1x16x16x128xbf16> to vector<16x16x128xbf16>
    %c0_92 = arith.constant 0 : index
    %c0_93 = arith.constant 0 : index
    %70 = vector.load %arg5[%c0_92, %c0_93] : memref<256x128xf32, #tpu.memory_space<vmem>>, vector<256x128xf32>
    %71 = vector.shape_cast %69 : vector<16x16x128xbf16> to vector<256x128xbf16>
    %c7 = arith.constant 7 : index
    %c0_94 = arith.constant 0 : index
    %c0_95 = arith.constant 0 : index
    %72 = vector.load %arg2[%c7, %c0_94, %c0_95] : memref<9x128x128xbf16, #tpu.memory_space<vmem>>, vector<1x128x128xbf16>
    %73 = vector.shape_cast %72 : vector<1x128x128xbf16> to vector<128x128xbf16>
    %cst_96 = arith.constant dense<0.000000e+00> : vector<256x128xf32>
    %74 = tpu.matmul %71, %73, %cst_96 {dimension_numbers = #tpu.dot_dimension_numbers<[1], [0], [0], [1], [0, 0, 1, 1], [], []>} : vector<256x128xbf16>, vector<128x128xbf16>, vector<256x128xf32> -> vector<256x128xf32>
    %75 = arith.addf %70, %74 : vector<256x128xf32>
    %c0_97 = arith.constant 0 : index
    %c0_98 = arith.constant 0 : index
    %76 = vector.load %arg5[%c0_97, %c0_98] : memref<256x128xf32, #tpu.memory_space<vmem>>, vector<256x128xf32>
    tpu.vector_store %arg5[%c0_97, %c0_98], %75 {strides = array<i32>} : memref<256x128xf32, #tpu.memory_space<vmem>>, vector<256x128xf32>,
    %c0_99 = arith.constant 0 : index
    %c2_100 = arith.constant 2 : index
    %c2_101 = arith.constant 2 : index
    %c0_102 = arith.constant 0 : index
    %c0_103 = arith.constant 0 : index
    %77 = vector.load %arg1[%c0_99, %c2_100, %c2_101, %c0_102, %c0_103] : memref<1x3x18x16x128xbf16, #tpu.memory_space<vmem>>, vector<1x1x16x16x128xbf16>
    %78 = vector.shape_cast %77 : vector<1x1x16x16x128xbf16> to vector<16x16x128xbf16>
    %c0_104 = arith.constant 0 : index
    %c0_105 = arith.constant 0 : index
    %79 = vector.load %arg5[%c0_104, %c0_105] : memref<256x128xf32, #tpu.memory_space<vmem>>, vector<256x128xf32>
    %80 = vector.shape_cast %78 : vector<16x16x128xbf16> to vector<256x128xbf16>
    %c8 = arith.constant 8 : index
    %c0_106 = arith.constant 0 : index
    %c0_107 = arith.constant 0 : index
    %81 = vector.load %arg2[%c8, %c0_106, %c0_107] : memref<9x128x128xbf16, #tpu.memory_space<vmem>>, vector<1x128x128xbf16>
    %82 = vector.shape_cast %81 : vector<1x128x128xbf16> to vector<128x128xbf16>
    %cst_108 = arith.constant dense<0.000000e+00> : vector<256x128xf32>
    %83 = tpu.matmul %80, %82, %cst_108 {dimension_numbers = #tpu.dot_dimension_numbers<[1], [0], [0], [1], [0, 0, 1, 1], [], []>} : vector<256x128xbf16>, vector<128x128xbf16>, vector<256x128xf32> -> vector<256x128xf32>
    %84 = arith.addf %79, %83 : vector<256x128xf32>
    %c0_109 = arith.constant 0 : index
    %c0_110 = arith.constant 0 : index
    %85 = vector.load %arg5[%c0_109, %c0_110] : memref<256x128xf32, #tpu.memory_space<vmem>>, vector<256x128xf32>
    tpu.vector_store %arg5[%c0_109, %c0_110], %84 {strides = array<i32>} : memref<256x128xf32, #tpu.memory_space<vmem>>, vector<256x128xf32>,
    %c0_111 = arith.constant 0 : index
    %c0_112 = arith.constant 0 : index
    %86 = vector.load %arg5[%c0_111, %c0_112] : memref<256x128xf32, #tpu.memory_space<vmem>>, vector<256x128xf32>
    %c0_113 = arith.constant 0 : index
    %c0_114 = arith.constant 0 : index
    %c0_115 = arith.constant 0 : index
    %87 = vector.load %arg3[%c0_113, %c0_114, %c0_115] : memref<1x256x128xf32, #tpu.memory_space<vmem>>, vector<1x256x128xf32>
    %88 = vector.shape_cast %87 : vector<1x256x128xf32> to vector<256x128xf32>
    %89 = vector.shape_cast %86 : vector<256x128xf32> to vector<1x256x128xf32>
    tpu.vector_store %arg3[%c0_113, %c0_114, %c0_115], %89 {strides = array<i32>} : memref<1x256x128xf32, #tpu.memory_space<vmem>>, vector<1x256x128xf32>,
    %cst_116 = arith.constant dense<0.000000e+00> : vector<128xf32>
    %90 = vector.multi_reduction <add>, %86, %cst_116 [0] : vector<256x128xf32> to vector<128xf32>
    %91 = vector.shape_cast %90 : vector<128xf32> to vector<1x128xf32>
    %92 = arith.mulf %86, %86 : vector<256x128xf32>
    %cst_117 = arith.constant dense<0.000000e+00> : vector<128xf32>
    %93 = vector.multi_reduction <add>, %92, %cst_117 [0] : vector<256x128xf32> to vector<128xf32>
    %94 = vector.shape_cast %93 : vector<128xf32> to vector<1x128xf32>
    %c0_118 = arith.constant 0 : index
    %c0_119 = arith.constant 0 : index
    %95 = vector.load %arg4[%c0_118, %c0_119] : memref<2x128xf32, #tpu.memory_space<vmem>>, vector<2x128xf32>
    %96 = tpu.concatenate %91, %94 in 0 : vector<1x128xf32>, vector<1x128xf32> -> vector<2x128xf32>
    %97 = arith.addf %95, %96 : vector<2x128xf32>
    %c0_120 = arith.constant 0 : index
    %c0_121 = arith.constant 0 : index
    %98 = vector.load %arg4[%c0_120, %c0_121] : memref<2x128xf32, #tpu.memory_space<vmem>>, vector<2x128xf32>
    tpu.vector_store %arg4[%c0_120, %c0_121], %97 {strides = array<i32>} : memref<2x128xf32, #tpu.memory_space<vmem>>, vector<2x128xf32>,
    return
  }
  func.func @transform_0(%arg0: i32) -> (i32, i32, i32, i32, i32) {
    %c0_i32 = arith.constant 0 : i32
    %c0_i32_0 = arith.constant 0 : i32
    %c0_i32_1 = arith.constant 0 : i32
    %c0_i32_2 = arith.constant 0 : i32
    %c0_i32_3 = arith.constant 0 : i32
    return %arg0, %c0_i32, %c0_i32_0, %c0_i32_1, %c0_i32_2 : i32, i32, i32, i32, i32
  }
  func.func @transform_1(%arg0: i32) -> (i32, i32, i32) {
    %c0_i32 = arith.constant 0 : i32
    %c0_i32_0 = arith.constant 0 : i32
    %c0_i32_1 = arith.constant 0 : i32
    %c0_i32_2 = arith.constant 0 : i32
    return %c0_i32, %c0_i32_0, %c0_i32_1 : i32, i32, i32
  }
  func.func @transform_2(%arg0: i32) -> (i32, i32, i32) {
    %c0_i32 = arith.constant 0 : i32
    %c0_i32_0 = arith.constant 0 : i32
    %c0_i32_1 = arith.constant 0 : i32
    return %arg0, %c0_i32, %c0_i32_0 : i32, i32, i32
  }
  func.func @transform_3(%arg0: i32) -> (i32, i32) {
    %c0_i32 = arith.constant 0 : i32
    %c0_i32_0 = arith.constant 0 : i32
    %c0_i32_1 = arith.constant 0 : i32
    return %c0_i32, %c0_i32_0 : i32, i32
  }
}

module attributes {stable_mosaic.version = 11 : i64} {
  func.func @_bn_add_relu_kernel(%arg0: i32, %arg1: memref<512x128xf32, #tpu.memory_space<vmem>>, %arg2: memref<1x128xf32, #tpu.memory_space<vmem>>, %arg3: memref<1x128xf32, #tpu.memory_space<vmem>>, %arg4: memref<512x128xf32, #tpu.memory_space<vmem>>, %arg5: memref<512x128xf32, #tpu.memory_space<vmem>>) attributes {dimension_semantics = [#tpu.dimension_semantics<parallel>], iteration_bounds = array<i64: 1>, scalar_prefetch = 0 : i64, scratch_operands = 0 : i64, tpu.core_type = #tpu.core_type<tc>, window_params = [{transform_indices = @transform_0, window_bounds = array<i64: 512, 128>}, {pipeline_mode = #tpu.pipeline_mode<synchronous>, transform_indices = @transform_1, window_bounds = array<i64: 1, 128>}, {pipeline_mode = #tpu.pipeline_mode<synchronous>, transform_indices = @transform_2, window_bounds = array<i64: 1, 128>}, {transform_indices = @transform_3, window_bounds = array<i64: 512, 128>}, {transform_indices = @transform_4, window_bounds = array<i64: 512, 128>}]} {
    %c0 = arith.constant 0 : index
    %c0_0 = arith.constant 0 : index
    %0 = vector.load %arg1[%c0, %c0_0] : memref<512x128xf32, #tpu.memory_space<vmem>>, vector<512x128xf32>
    %c0_1 = arith.constant 0 : index
    %c0_2 = arith.constant 0 : index
    %1 = vector.load %arg2[%c0_1, %c0_2] : memref<1x128xf32, #tpu.memory_space<vmem>>, vector<1x128xf32>
    %2 = vector.broadcast %1 : vector<1x128xf32> to vector<512x128xf32>
    %3 = arith.mulf %0, %2 : vector<512x128xf32>
    %c0_3 = arith.constant 0 : index
    %c0_4 = arith.constant 0 : index
    %4 = vector.load %arg3[%c0_3, %c0_4] : memref<1x128xf32, #tpu.memory_space<vmem>>, vector<1x128xf32>
    %5 = vector.broadcast %4 : vector<1x128xf32> to vector<512x128xf32>
    %6 = arith.addf %3, %5 : vector<512x128xf32>
    %c0_5 = arith.constant 0 : index
    %c0_6 = arith.constant 0 : index
    %7 = vector.load %arg4[%c0_5, %c0_6] : memref<512x128xf32, #tpu.memory_space<vmem>>, vector<512x128xf32>
    %8 = arith.addf %6, %7 : vector<512x128xf32>
    %cst = arith.constant 0.000000e+00 : f32
    %9 = vector.broadcast %cst : f32 to vector<512x128xf32>
    %10 = arith.maximumf %8, %9 : vector<512x128xf32>
    %c0_7 = arith.constant 0 : index
    %c0_8 = arith.constant 0 : index
    %11 = vector.load %arg5[%c0_7, %c0_8] : memref<512x128xf32, #tpu.memory_space<vmem>>, vector<512x128xf32>
    tpu.vector_store %arg5[%c0_7, %c0_8], %10 {strides = array<i32>} : memref<512x128xf32, #tpu.memory_space<vmem>>, vector<512x128xf32>,
    return
  }
  func.func @transform_0(%arg0: i32) -> (i32, i32) {
    %c0_i32 = arith.constant 0 : i32
    %c0_i32_0 = arith.constant 0 : i32
    return %arg0, %c0_i32 : i32, i32
  }
  func.func @transform_1(%arg0: i32) -> (i32, i32) {
    %c0_i32 = arith.constant 0 : i32
    %c0_i32_0 = arith.constant 0 : i32
    %c0_i32_1 = arith.constant 0 : i32
    return %c0_i32, %c0_i32_0 : i32, i32
  }
  func.func @transform_2(%arg0: i32) -> (i32, i32) {
    %c0_i32 = arith.constant 0 : i32
    %c0_i32_0 = arith.constant 0 : i32
    %c0_i32_1 = arith.constant 0 : i32
    return %c0_i32, %c0_i32_0 : i32, i32
  }
  func.func @transform_3(%arg0: i32) -> (i32, i32) {
    %c0_i32 = arith.constant 0 : i32
    %c0_i32_0 = arith.constant 0 : i32
    return %arg0, %c0_i32 : i32, i32
  }
  func.func @transform_4(%arg0: i32) -> (i32, i32) {
    %c0_i32 = arith.constant 0 : i32
    %c0_i32_0 = arith.constant 0 : i32
    return %arg0, %c0_i32 : i32, i32
  }
}

</mosaic_0001>

<llo_original>
// kernel: block_forward.5
$region0: #{block_forward.5}
  #allocation0 [shape = 'u32[]', space=smem, size = 0x4, offset = 0x4, fixed_abs, tag = 'smem constant byte address 0x4 - core index']
  #allocation1 [shape = 'u32[144,128]{1,0:T(1,128)}', space=vmem, size = 0x12000, scoped, tag = 'internal scratch']
  %s0 = inlined_call_operand.vmem [shape: f32[512,128], index: 0, kind: input, shape index: {}]
  %s1 = inlined_call_operand.vmem [shape: f32[1,128], index: 1, kind: input, shape index: {}]
  %s2 = inlined_call_operand.vmem [shape: f32[1,128], index: 2, kind: input, shape index: {}]
  %s3 = inlined_call_operand.vmem [shape: bf16[512,128], index: 3, kind: output, shape index: {}]
  %s4 = sld [smem:[#allocation0]]
  $region22: #{block_forward.5} parent=0
    _
  %s6 = ssub.s32 1, %s4
  %s7 = scalar_select 0, %s6, %s4
  // Predicated region
  $region2: #{block_forward.5} parent=0 // pred_check
    _
  $region3: #{block_forward.5} parent=0 // pred_check_branch
    %9 = sbr.rel (0) target = $region5
  $region4: #{block_forward.5} parent=0 // pred_region
    _
  $region5: #{block_forward.5} parent=0 // pred_fallthru
    _
  // Predicated region
  $region6: #{block_forward.5} parent=0 // pred_check
    _
  $region7: #{block_forward.5} parent=0 // pred_check_branch
    %11 = sbr.rel (0) target = $region9
  $region8: #{block_forward.5} parent=0 // pred_region
    _
  $region9: #{block_forward.5} parent=0 // pred_fallthru
    _
  // Predicated region
  $region10: #{block_forward.5} parent=0 // pred_check
    _
  $region11: #{block_forward.5} parent=0 // pred_check_branch
    %13 = sbr.rel (0) target = $region13
  $region12: #{block_forward.5} parent=0 // pred_region
    _
  $region13: #{block_forward.5} parent=0 // pred_fallthru
    _
  %v14 = vld [vmem:[%s0] sm:$0xff]
  %v15 = vld [vmem:[%s0 + $0x8] sm:$0xff]
  %v16 = vld [vmem:[%s0 + $0x10] sm:$0xff]
  %v17 = vld [vmem:[%s0 + $0x18] sm:$0xff]
  %v18 = vld [vmem:[%s0 + $0x20] sm:$0xff]
  %v19 = vld [vmem:[%s0 + $0x28] sm:$0xff]
  %v20 = vld [vmem:[%s0 + $0x30] sm:$0xff]
  %v21 = vld [vmem:[%s0 + $0x38] sm:$0xff]
  %v22 = vld [vmem:[%s0 + $0x40] sm:$0xff]
  %v23 = vld [vmem:[%s0 + $0x48] sm:$0xff]
  %v24 = vld [vmem:[%s0 + $0x50] sm:$0xff]
  %v25 = vld [vmem:[%s0 + $0x58] sm:$0xff]
  %v26 = vld [vmem:[%s0 + $0x60] sm:$0xff]
  %v27 = vld [vmem:[%s0 + $0x68] sm:$0xff]
  %v28 = vld [vmem:[%s0 + $0x70] sm:$0xff]
  %v29 = vld [vmem:[%s0 + $0x78] sm:$0xff]
  %v30 = vld [vmem:[%s0 + $0x80] sm:$0xff]
  %v31 = vld [vmem:[%s0 + $0x88] sm:$0xff]
  %v32 = vld [vmem:[%s0 + $0x90] sm:$0xff]
  %v33 = vld [vmem:[%s0 + $0x98] sm:$0xff]
  %v34 = vld [vmem:[%s0 + $0xa0] sm:$0xff]
  %v35 = vld [vmem:[%s0 + $0xa8] sm:$0xff]
  %v36 = vld [vmem:[%s0 + $0xb0] sm:$0xff]
  %v37 = vld [vmem:[%s0 + $0xb8] sm:$0xff]
  %v38 = vld [vmem:[%s0 + $0xc0] sm:$0xff]
  %v39 = vld [vmem:[%s0 + $0xc8] sm:$0xff]
  %v40 = vld [vmem:[%s0 + $0xd0] sm:$0xff]
  %v41 = vld [vmem:[%s0 + $0xd8] sm:$0xff]
  %v42 = vld [vmem:[%s0 + $0xe0] sm:$0xff]
  %v43 = vld [vmem:[%s0 + $0xe8] sm:$0xff]
  %v44 = vld [vmem:[%s0 + $0xf0] sm:$0xff]
  %v45 = vld [vmem:[%s0 + $0xf8] sm:$0xff]
  %v46 = vld [vmem:[%s0 + $0x100] sm:$0xff]
  %v47 = vld [vmem:[%s0 + $0x108] sm:$0xff]
  %v48 = vld [vmem:[%s0 + $0x110] sm:$0xff]
  %v49 = vld [vmem:[%s0 + $0x118] sm:$0xff]
  %v50 = vld [vmem:[%s0 + $0x120] sm:$0xff]
  %v51 = vld [vmem:[%s0 + $0x128] sm:$0xff]
  %v52 = vld [vmem:[%s0 + $0x130] sm:$0xff]
  %v53 = vld [vmem:[%s0 + $0x138] sm:$0xff]
  %v54 = vld [vmem:[%s0 + $0x140] sm:$0xff]
  %v55 = vld [vmem:[%s0 + $0x148] sm:$0xff]
  %v56 = vld [vmem:[%s0 + $0x150] sm:$0xff]
  %v57 = vld [vmem:[%s0 + $0x158] sm:$0xff]
  %v58 = vld [vmem:[%s0 + $0x160] sm:$0xff]
  %v59 = vld [vmem:[%s0 + $0x168] sm:$0xff]
  %v60 = vld [vmem:[%s0 + $0x170] sm:$0xff]
  %v61 = vld [vmem:[%s0 + $0x178] sm:$0xff]
  %v62 = vld [vmem:[%s0 + $0x180] sm:$0xff]
  %v63 = vld [vmem:[%s0 + $0x188] sm:$0xff]
  %v64 = vld [vmem:[%s0 + $0x190] sm:$0xff]
  %v65 = vld [vmem:[%s0 + $0x198] sm:$0xff]
  %v66 = vld [vmem:[%s0 + $0x1a0] sm:$0xff]
  %v67 = vld [vmem:[%s0 + $0x1a8] sm:$0xff]
  %v68 = vld [vmem:[%s0 + $0x1b0] sm:$0xff]
  %v69 = vld [vmem:[%s0 + $0x1b8] sm:$0xff]
  %v70 = vld [vmem:[%s0 + $0x1c0] sm:$0xff]
  %v71 = vld [vmem:[%s0 + $0x1c8] sm:$0xff]
  %v72 = vld [vmem:[%s0 + $0x1d0] sm:$0xff]
  %v73 = vld [vmem:[%s0 + $0x1d8] sm:$0xff]
  %v74 = vld [vmem:[%s0 + $0x1e0] sm:$0xff]
  %v75 = vld [vmem:[%s0 + $0x1e8] sm:$0xff]
  %v76 = vld [vmem:[%s0 + $0x1f0] sm:$0xff]
  %v77 = vld [vmem:[%s0 + $0x1f8] sm:$0xff]
  %v78 = vld [vmem:[%s1] sm:$0x1]
  %v80 = vlaneseq
  %v81 = vshrl.u32 %v80, 7
  %v82 = vsub.s32 0, %v81
  %v83 = vrot.slane %v78, %v82
  %v85 = vmul.f32 %v14, %v83
  %v86 = vmul.f32 %v15, %v83
  %v87 = vmul.f32 %v16, %v83
  %v88 = vmul.f32 %v17, %v83
  %v89 = vmul.f32 %v18, %v83
  %v90 = vmul.f32 %v19, %v83
  %v91 = vmul.f32 %v20, %v83
  %v92 = vmul.f32 %v21, %v83
  %v93 = vmul.f32 %v22, %v83
  %v94 = vmul.f32 %v23, %v83
  %v95 = vmul.f32 %v24, %v83
  %v96 = vmul.f32 %v25, %v83
  %v97 = vmul.f32 %v26, %v83
  %v98 = vmul.f32 %v27, %v83
  %v99 = vmul.f32 %v28, %v83
  %v100 = vmul.f32 %v29, %v83
  %v101 = vmul.f32 %v30, %v83
  %v102 = vmul.f32 %v31, %v83
  %v103 = vmul.f32 %v32, %v83
  %v104 = vmul.f32 %v33, %v83
  %v105 = vmul.f32 %v34, %v83
  %v106 = vmul.f32 %v35, %v83
  %v107 = vmul.f32 %v36, %v83
  %v108 = vmul.f32 %v37, %v83
  %v109 = vmul.f32 %v38, %v83
  %v110 = vmul.f32 %v39, %v83
  %v111 = vmul.f32 %v40, %v83
  %v112 = vmul.f32 %v41, %v83
  %v113 = vmul.f32 %v42, %v83
  %v114 = vmul.f32 %v43, %v83
  %v115 = vmul.f32 %v44, %v83
  %v116 = vmul.f32 %v45, %v83
  %v117 = vmul.f32 %v46, %v83
  %v118 = vmul.f32 %v47, %v83
  %v119 = vmul.f32 %v48, %v83
  %v120 = vmul.f32 %v49, %v83
  %v121 = vmul.f32 %v50, %v83
  %v122 = vmul.f32 %v51, %v83
  %v123 = vmul.f32 %v52, %v83
  %v124 = vmul.f32 %v53, %v83
  %v125 = vmul.f32 %v54, %v83
  %v126 = vmul.f32 %v55, %v83
  %v127 = vmul.f32 %v56, %v83
  %v128 = vmul.f32 %v57, %v83
  %v129 = vmul.f32 %v58, %v83
  %v130 = vmul.f32 %v59, %v83
  %v131 = vmul.f32 %v60, %v83
  %v132 = vmul.f32 %v61, %v83
  %v133 = vmul.f32 %v62, %v83
  %v134 = vmul.f32 %v63, %v83
  %v135 = vmul.f32 %v64, %v83
  %v136 = vmul.f32 %v65, %v83
  %v137 = vmul.f32 %v66, %v83
  %v138 = vmul.f32 %v67, %v83
  %v139 = vmul.f32 %v68, %v83
  %v140 = vmul.f32 %v69, %v83
  %v141 = vmul.f32 %v70, %v83
  %v142 = vmul.f32 %v71, %v83
  %v143 = vmul.f32 %v72, %v83
  %v144 = vmul.f32 %v73, %v83
  %v145 = vmul.f32 %v74, %v83
  %v146 = vmul.f32 %v75, %v83
  %v147 = vmul.f32 %v76, %v83
  %v148 = vmul.f32 %v77, %v83
  %v149 = vld [vmem:[%s2] sm:$0x1]
  %v151 = vlaneseq
  %v152 = vshrl.u32 %v151, 7
  %v153 = vsub.s32 0, %v152
  %v154 = vrot.slane %v149, %v153
  %v156 = vadd.f32 %v85, %v154
  %v157 = vadd.f32 %v86, %v154
  %v158 = vadd.f32 %v87, %v154
  %v159 = vadd.f32 %v88, %v154
  %v160 = vadd.f32 %v89, %v154
  %v161 = vadd.f32 %v90, %v154
  %v162 = vadd.f32 %v91, %v154
  %v163 = vadd.f32 %v92, %v154
  %v164 = vadd.f32 %v93, %v154
  %v165 = vadd.f32 %v94, %v154
  %v166 = vadd.f32 %v95, %v154
  %v167 = vadd.f32 %v96, %v154
  %v168 = vadd.f32 %v97, %v154
  %v169 = vadd.f32 %v98, %v154
  %v170 = vadd.f32 %v99, %v154
  %v171 = vadd.f32 %v100, %v154
  %v172 = vadd.f32 %v101, %v154
  %v173 = vadd.f32 %v102, %v154
  %v174 = vadd.f32 %v103, %v154
  %v175 = vadd.f32 %v104, %v154
  %v176 = vadd.f32 %v105, %v154
  %v177 = vadd.f32 %v106, %v154
  %v178 = vadd.f32 %v107, %v154
  %v179 = vadd.f32 %v108, %v154
  %v180 = vadd.f32 %v109, %v154
  %v181 = vadd.f32 %v110, %v154
  %v182 = vadd.f32 %v111, %v154
  %v183 = vadd.f32 %v112, %v154
  %v184 = vadd.f32 %v113, %v154
  %v185 = vadd.f32 %v114, %v154
  %v186 = vadd.f32 %v115, %v154
  %v187 = vadd.f32 %v116, %v154
  %v188 = vadd.f32 %v117, %v154
  %v189 = vadd.f32 %v118, %v154
  %v190 = vadd.f32 %v119, %v154
  %v191 = vadd.f32 %v120, %v154
  %v192 = vadd.f32 %v121, %v154
  %v193 = vadd.f32 %v122, %v154
  %v194 = vadd.f32 %v123, %v154
  %v195 = vadd.f32 %v124, %v154
  %v196 = vadd.f32 %v125, %v154
  %v197 = vadd.f32 %v126, %v154
  %v198 = vadd.f32 %v127, %v154
  %v199 = vadd.f32 %v128, %v154
  %v200 = vadd.f32 %v129, %v154
  %v201 = vadd.f32 %v130, %v154
  %v202 = vadd.f32 %v131, %v154
  %v203 = vadd.f32 %v132, %v154
  %v204 = vadd.f32 %v133, %v154
  %v205 = vadd.f32 %v134, %v154
  %v206 = vadd.f32 %v135, %v154
  %v207 = vadd.f32 %v136, %v154
  %v208 = vadd.f32 %v137, %v154
  %v209 = vadd.f32 %v138, %v154
  %v210 = vadd.f32 %v139, %v154
  %v211 = vadd.f32 %v140, %v154
  %v212 = vadd.f32 %v141, %v154
  %v213 = vadd.f32 %v142, %v154
  %v214 = vadd.f32 %v143, %v154
  %v215 = vadd.f32 %v144, %v154
  %v216 = vadd.f32 %v145, %v154
  %v217 = vadd.f32 %v146, %v154
  %v218 = vadd.f32 %v147, %v154
  %v219 = vadd.f32 %v148, %v154
  %v220 = vmax.f32 %v156, 0.0
  %v221 = vmax.f32 %v157, 0.0
  %v222 = vmax.f32 %v158, 0.0
  %v223 = vmax.f32 %v159, 0.0
  %v224 = vmax.f32 %v160, 0.0
  %v225 = vmax.f32 %v161, 0.0
  %v226 = vmax.f32 %v162, 0.0
  %v227 = vmax.f32 %v163, 0.0
  %v228 = vmax.f32 %v164, 0.0
  %v229 = vmax.f32 %v165, 0.0
  %v230 = vmax.f32 %v166, 0.0
  %v231 = vmax.f32 %v167, 0.0
  %v232 = vmax.f32 %v168, 0.0
  %v233 = vmax.f32 %v169, 0.0
  %v234 = vmax.f32 %v170, 0.0
  %v235 = vmax.f32 %v171, 0.0
  %v236 = vmax.f32 %v172, 0.0
  %v237 = vmax.f32 %v173, 0.0
  %v238 = vmax.f32 %v174, 0.0
  %v239 = vmax.f32 %v175, 0.0
  %v240 = vmax.f32 %v176, 0.0
  %v241 = vmax.f32 %v177, 0.0
  %v242 = vmax.f32 %v178, 0.0
  %v243 = vmax.f32 %v179, 0.0
  %v244 = vmax.f32 %v180, 0.0
  %v245 = vmax.f32 %v181, 0.0
  %v246 = vmax.f32 %v182, 0.0
  %v247 = vmax.f32 %v183, 0.0
  %v248 = vmax.f32 %v184, 0.0
  %v249 = vmax.f32 %v185, 0.0
  %v250 = vmax.f32 %v186, 0.0
  %v251 = vmax.f32 %v187, 0.0
  %v252 = vmax.f32 %v188, 0.0
  %v253 = vmax.f32 %v189, 0.0
  %v254 = vmax.f32 %v190, 0.0
  %v255 = vmax.f32 %v191, 0.0
  %v256 = vmax.f32 %v192, 0.0
  %v257 = vmax.f32 %v193, 0.0
  %v258 = vmax.f32 %v194, 0.0
  %v259 = vmax.f32 %v195, 0.0
  %v260 = vmax.f32 %v196, 0.0
  %v261 = vmax.f32 %v197, 0.0
  %v262 = vmax.f32 %v198, 0.0
  %v263 = vmax.f32 %v199, 0.0
  %v264 = vmax.f32 %v200, 0.0
  %v265 = vmax.f32 %v201, 0.0
  %v266 = vmax.f32 %v202, 0.0
  %v267 = vmax.f32 %v203, 0.0
  %v268 = vmax.f32 %v204, 0.0
  %v269 = vmax.f32 %v205, 0.0
  %v270 = vmax.f32 %v206, 0.0
  %v271 = vmax.f32 %v207, 0.0
  %v272 = vmax.f32 %v208, 0.0
  %v273 = vmax.f32 %v209, 0.0
  %v274 = vmax.f32 %v210, 0.0
  %v275 = vmax.f32 %v211, 0.0
  %v276 = vmax.f32 %v212, 0.0
  %v277 = vmax.f32 %v213, 0.0
  %v278 = vmax.f32 %v214, 0.0
  %v279 = vmax.f32 %v215, 0.0
  %v280 = vmax.f32 %v216, 0.0
  %v281 = vmax.f32 %v217, 0.0
  %v282 = vmax.f32 %v218, 0.0
  %v283 = vmax.f32 %v219, 0.0
  %v284 = vpack.c.bf16 %v221, %v220
  %v285 = vpack.c.bf16 %v223, %v222
  %v286 = vpack.c.bf16 %v225, %v224
  %v287 = vpack.c.bf16 %v227, %v226
  %v288 = vpack.c.bf16 %v229, %v228
  %v289 = vpack.c.bf16 %v231, %v230
  %v290 = vpack.c.bf16 %v233, %v232
  %v291 = vpack.c.bf16 %v235, %v234
  %v292 = vpack.c.bf16 %v237, %v236
  %v293 = vpack.c.bf16 %v239, %v238
  %v294 = vpack.c.bf16 %v241, %v240
  %v295 = vpack.c.bf16 %v243, %v242
  %v296 = vpack.c.bf16 %v245, %v244
  %v297 = vpack.c.bf16 %v247, %v246
  %v298 = vpack.c.bf16 %v249, %v248
  %v299 = vpack.c.bf16 %v251, %v250
  %v300 = vpack.c.bf16 %v253, %v252
  %v301 = vpack.c.bf16 %v255, %v254
  %v302 = vpack.c.bf16 %v257, %v256
  %v303 = vpack.c.bf16 %v259, %v258
  %v304 = vpack.c.bf16 %v261, %v260
  %v305 = vpack.c.bf16 %v263, %v262
  %v306 = vpack.c.bf16 %v265, %v264
  %v307 = vpack.c.bf16 %v267, %v266
  %v308 = vpack.c.bf16 %v269, %v268
  %v309 = vpack.c.bf16 %v271, %v270
  %v310 = vpack.c.bf16 %v273, %v272
  %v311 = vpack.c.bf16 %v275, %v274
  %v312 = vpack.c.bf16 %v277, %v276
  %v313 = vpack.c.bf16 %v279, %v278
  %v314 = vpack.c.bf16 %v281, %v280
  %v315 = vpack.c.bf16 %v283, %v282
  %v348 = vunpack.c.l.b16 %v284
  %v349 = vunpack.c.h.b16 %v284
  %v350 = vunpack.c.l.b16 %v285
  %v351 = vunpack.c.h.b16 %v285
  %v352 = vunpack.c.l.b16 %v286
  %v353 = vunpack.c.h.b16 %v286
  %v354 = vunpack.c.l.b16 %v287
  %v355 = vunpack.c.h.b16 %v287
  %v356 = vunpack.c.l.b16 %v288
  %v357 = vunpack.c.h.b16 %v288
  %v358 = vunpack.c.l.b16 %v289
  %v359 = vunpack.c.h.b16 %v289
  %v360 = vunpack.c.l.b16 %v290
  %v361 = vunpack.c.h.b16 %v290
  %v362 = vunpack.c.l.b16 %v291
  %v363 = vunpack.c.h.b16 %v291
  %v364 = vunpack.c.l.b16 %v292
  %v365 = vunpack.c.h.b16 %v292
  %v366 = vunpack.c.l.b16 %v293
  %v367 = vunpack.c.h.b16 %v293
  %v368 = vunpack.c.l.b16 %v294
  %v369 = vunpack.c.h.b16 %v294
  %v370 = vunpack.c.l.b16 %v295
  %v371 = vunpack.c.h.b16 %v295
  %v372 = vunpack.c.l.b16 %v296
  %v373 = vunpack.c.h.b16 %v296
  %v374 = vunpack.c.l.b16 %v297
  %v375 = vunpack.c.h.b16 %v297
  %v376 = vunpack.c.l.b16 %v298
  %v377 = vunpack.c.h.b16 %v298
  %v378 = vunpack.c.l.b16 %v299
  %v379 = vunpack.c.h.b16 %v299
  %v380 = vunpack.c.l.b16 %v300
  %v381 = vunpack.c.h.b16 %v300
  %v382 = vunpack.c.l.b16 %v301
  %v383 = vunpack.c.h.b16 %v301
  %v384 = vunpack.c.l.b16 %v302
  %v385 = vunpack.c.h.b16 %v302
  %v386 = vunpack.c.l.b16 %v303
  %v387 = vunpack.c.h.b16 %v303
  %v388 = vunpack.c.l.b16 %v304
  %v389 = vunpack.c.h.b16 %v304
  %v390 = vunpack.c.l.b16 %v305
  %v391 = vunpack.c.h.b16 %v305
  %v392 = vunpack.c.l.b16 %v306
  %v393 = vunpack.c.h.b16 %v306
  %v394 = vunpack.c.l.b16 %v307
  %v395 = vunpack.c.h.b16 %v307
  %v396 = vunpack.c.l.b16 %v308
  %v397 = vunpack.c.h.b16 %v308
  %v398 = vunpack.c.l.b16 %v309
  %v399 = vunpack.c.h.b16 %v309
  %v400 = vunpack.c.l.b16 %v310
  %v401 = vunpack.c.h.b16 %v310
  %v402 = vunpack.c.l.b16 %v311
  %v403 = vunpack.c.h.b16 %v311
  %v404 = vunpack.c.l.b16 %v312
  %v405 = vunpack.c.h.b16 %v312
  %v406 = vunpack.c.l.b16 %v313
  %v407 = vunpack.c.h.b16 %v313
  %v408 = vunpack.c.l.b16 %v314
  %v409 = vunpack.c.h.b16 %v314
  %v410 = vunpack.c.l.b16 %v315
  %v411 = vunpack.c.h.b16 %v315
  %v412 = vpack.c.b16 %v348, %v348
  %v413 = vpack.c.b16 %v349, %v349
  %v414 = vpack.c.b16 %v350, %v350
  %v415 = vpack.c.b16 %v351, %v351
  %v416 = vpack.c.b16 %v352, %v352
  %v417 = vpack.c.b16 %v353, %v353
  %v418 = vpack.c.b16 %v354, %v354
  %v419 = vpack.c.b16 %v355, %v355
  %v420 = vpack.c.b16 %v356, %v356
  %v421 = vpack.c.b16 %v357, %v357
  %v422 = vpack.c.b16 %v358, %v358
  %v423 = vpack.c.b16 %v359, %v359
  %v424 = vpack.c.b16 %v360, %v360
  %v425 = vpack.c.b16 %v361, %v361
  %v426 = vpack.c.b16 %v362, %v362
  %v427 = vpack.c.b16 %v363, %v363
  %v428 = vpack.c.b16 %v364, %v364
  %v429 = vpack.c.b16 %v365, %v365
  %v430 = vpack.c.b16 %v366, %v366
  %v431 = vpack.c.b16 %v367, %v367
  %v432 = vpack.c.b16 %v368, %v368
  %v433 = vpack.c.b16 %v369, %v369
  %v434 = vpack.c.b16 %v370, %v370
  %v435 = vpack.c.b16 %v371, %v371
  %v436 = vpack.c.b16 %v372, %v372
  %v437 = vpack.c.b16 %v373, %v373
  %v438 = vpack.c.b16 %v374, %v374
  %v439 = vpack.c.b16 %v375, %v375
  %v440 = vpack.c.b16 %v376, %v376
  %v441 = vpack.c.b16 %v377, %v377
  %v442 = vpack.c.b16 %v378, %v378
  %v443 = vpack.c.b16 %v379, %v379
  %v444 = vpack.c.b16 %v380, %v380
  %v445 = vpack.c.b16 %v381, %v381
  %v446 = vpack.c.b16 %v382, %v382
  %v447 = vpack.c.b16 %v383, %v383
  %v448 = vpack.c.b16 %v384, %v384
  %v449 = vpack.c.b16 %v385, %v385
  %v450 = vpack.c.b16 %v386, %v386
  %v451 = vpack.c.b16 %v387, %v387
  %v452 = vpack.c.b16 %v388, %v388
  %v453 = vpack.c.b16 %v389, %v389
  %v454 = vpack.c.b16 %v390, %v390
  %v455 = vpack.c.b16 %v391, %v391
  %v456 = vpack.c.b16 %v392, %v392
  %v457 = vpack.c.b16 %v393, %v393
  %v458 = vpack.c.b16 %v394, %v394
  %v459 = vpack.c.b16 %v395, %v395
  %v460 = vpack.c.b16 %v396, %v396
  %v461 = vpack.c.b16 %v397, %v397
  %v462 = vpack.c.b16 %v398, %v398
  %v463 = vpack.c.b16 %v399, %v399
  %v464 = vpack.c.b16 %v400, %v400
  %v465 = vpack.c.b16 %v401, %v401
  %v466 = vpack.c.b16 %v402, %v402
  %v467 = vpack.c.b16 %v403, %v403
  %v468 = vpack.c.b16 %v404, %v404
  %v469 = vpack.c.b16 %v405, %v405
  %v470 = vpack.c.b16 %v406, %v406
  %v471 = vpack.c.b16 %v407, %v407
  %v472 = vpack.c.b16 %v408, %v408
  %v473 = vpack.c.b16 %v409, %v409
  %v474 = vpack.c.b16 %v410, %v410
  %v475 = vpack.c.b16 %v411, %v411
  %540 = vst [vmem:[%s3] sm:$0xf] %v412
  %541 = vst [vmem:[%s3 + $0x4] sm:$0xf] %v413
  %542 = vst [vmem:[%s3 + $0x8] sm:$0xf] %v414
  %543 = vst [vmem:[%s3 + $0xc] sm:$0xf] %v415
  %544 = vst [vmem:[%s3 + $0x10] sm:$0xf] %v416
  %545 = vst [vmem:[%s3 + $0x14] sm:$0xf] %v417
  %546 = vst [vmem:[%s3 + $0x18] sm:$0xf] %v418
  %547 = vst [vmem:[%s3 + $0x1c] sm:$0xf] %v419
  %548 = vst [vmem:[%s3 + $0x20] sm:$0xf] %v420
  %549 = vst [vmem:[%s3 + $0x24] sm:$0xf] %v421
  %550 = vst [vmem:[%s3 + $0x28] sm:$0xf] %v422
  %551 = vst [vmem:[%s3 + $0x2c] sm:$0xf] %v423
  %552 = vst [vmem:[%s3 + $0x30] sm:$0xf] %v424
  %553 = vst [vmem:[%s3 + $0x34] sm:$0xf] %v425
  %554 = vst [vmem:[%s3 + $0x38] sm:$0xf] %v426
  %555 = vst [vmem:[%s3 + $0x3c] sm:$0xf] %v427
  %556 = vst [vmem:[%s3 + $0x40] sm:$0xf] %v428
  %557 = vst [vmem:[%s3 + $0x44] sm:$0xf] %v429
  %558 = vst [vmem:[%s3 + $0x48] sm:$0xf] %v430
  %559 = vst [vmem:[%s3 + $0x4c] sm:$0xf] %v431
  %560 = vst [vmem:[%s3 + $0x50] sm:$0xf] %v432
  %561 = vst [vmem:[%s3 + $0x54] sm:$0xf] %v433
  %562 = vst [vmem:[%s3 + $0x58] sm:$0xf] %v434
  %563 = vst [vmem:[%s3 + $0x5c] sm:$0xf] %v435
  %564 = vst [vmem:[%s3 + $0x60] sm:$0xf] %v436
  %565 = vst [vmem:[%s3 + $0x64] sm:$0xf] %v437
  %566 = vst [vmem:[%s3 + $0x68] sm:$0xf] %v438
  %567 = vst [vmem:[%s3 + $0x6c] sm:$0xf] %v439
  %568 = vst [vmem:[%s3 + $0x70] sm:$0xf] %v440
  %569 = vst [vmem:[%s3 + $0x74] sm:$0xf] %v441
  %570 = vst [vmem:[%s3 + $0x78] sm:$0xf] %v442
  %571 = vst [vmem:[%s3 + $0x7c] sm:$0xf] %v443
  %572 = vst [vmem:[%s3 + $0x80] sm:$0xf] %v444
  %573 = vst [vmem:[%s3 + $0x84] sm:$0xf] %v445
  %574 = vst [vmem:[%s3 + $0x88] sm:$0xf] %v446
  %575 = vst [vmem:[%s3 + $0x8c] sm:$0xf] %v447
  %576 = vst [vmem:[%s3 + $0x90] sm:$0xf] %v448
  %577 = vst [vmem:[%s3 + $0x94] sm:$0xf] %v449
  %578 = vst [vmem:[%s3 + $0x98] sm:$0xf] %v450
  %579 = vst [vmem:[%s3 + $0x9c] sm:$0xf] %v451
  %580 = vst [vmem:[%s3 + $0xa0] sm:$0xf] %v452
  %581 = vst [vmem:[%s3 + $0xa4] sm:$0xf] %v453
  %582 = vst [vmem:[%s3 + $0xa8] sm:$0xf] %v454
  %583 = vst [vmem:[%s3 + $0xac] sm:$0xf] %v455
  %584 = vst [vmem:[%s3 + $0xb0] sm:$0xf] %v456
  %585 = vst [vmem:[%s3 + $0xb4] sm:$0xf] %v457
  %586 = vst [vmem:[%s3 + $0xb8] sm:$0xf] %v458
  %587 = vst [vmem:[%s3 + $0xbc] sm:$0xf] %v459
  %588 = vst [vmem:[%s3 + $0xc0] sm:$0xf] %v460
  %589 = vst [vmem:[%s3 + $0xc4] sm:$0xf] %v461
  %590 = vst [vmem:[%s3 + $0xc8] sm:$0xf] %v462
  %591 = vst [vmem:[%s3 + $0xcc] sm:$0xf] %v463
  %592 = vst [vmem:[%s3 + $0xd0] sm:$0xf] %v464
  %593 = vst [vmem:[%s3 + $0xd4] sm:$0xf] %v465
  %594 = vst [vmem:[%s3 + $0xd8] sm:$0xf] %v466
  %595 = vst [vmem:[%s3 + $0xdc] sm:$0xf] %v467
  %596 = vst [vmem:[%s3 + $0xe0] sm:$0xf] %v468
  %597 = vst [vmem:[%s3 + $0xe4] sm:$0xf] %v469
  %598 = vst [vmem:[%s3 + $0xe8] sm:$0xf] %v470
  %599 = vst [vmem:[%s3 + $0xec] sm:$0xf] %v471
  %600 = vst [vmem:[%s3 + $0xf0] sm:$0xf] %v472
  %601 = vst [vmem:[%s3 + $0xf4] sm:$0xf] %v473
  %602 = vst [vmem:[%s3 + $0xf8] sm:$0xf] %v474
  %603 = vst [vmem:[%s3 + $0xfc] sm:$0xf] %v475
  // Predicated region
  $region14: #{block_forward.5} parent=0 // pred_check
    _
  $region15: #{block_forward.5} parent=0 // pred_check_branch
    %605 = sbr.rel (0) target = $region17
  $region16: #{block_forward.5} parent=0 // pred_region
    _
  $region17: #{block_forward.5} parent=0 // pred_fallthru
    _
  // Predicated region
  $region18: #{block_forward.5} parent=0 // pred_check
    _
  $region19: #{block_forward.5} parent=0 // pred_check_branch
    %607 = sbr.rel (0) target = $region21
  $region20: #{block_forward.5} parent=0 // pred_region
    _
  $region21: #{block_forward.5} parent=0 // pred_fallthru
    _

// kernel: block_forward.7
$region0: #{block_forward.7}
  #allocation0 [shape = 'u32[]', space=smem, size = 0x4, offset = 0x4, fixed_abs, tag = 'smem constant byte address 0x4 - core index']
  #allocation1 [shape = 'u32[144,128]{1,0:T(1,128)}', space=vmem, size = 0x12000, scoped, tag = 'internal scratch']
  %s0 = inlined_call_operand.vmem [shape: f32[512,128], index: 0, kind: input, shape index: {}]
  %s1 = inlined_call_operand.vmem [shape: f32[1,128], index: 1, kind: input, shape index: {}]
  %s2 = inlined_call_operand.vmem [shape: f32[1,128], index: 2, kind: input, shape index: {}]
  %s3 = inlined_call_operand.vmem [shape: f32[512,128], index: 3, kind: input, shape index: {}]
  %s4 = inlined_call_operand.vmem [shape: f32[512,128], index: 4, kind: output, shape index: {}]
  %s5 = sld [smem:[#allocation0]]
  $region26: #{block_forward.7} parent=0
    _
  %s7 = ssub.s32 1, %s5
  %s8 = scalar_select 0, %s7, %s5
  // Predicated region
  $region2: #{block_forward.7} parent=0 // pred_check
    _
  $region3: #{block_forward.7} parent=0 // pred_check_branch
    %10 = sbr.rel (0) target = $region5
  $region4: #{block_forward.7} parent=0 // pred_region
    _
  $region5: #{block_forward.7} parent=0 // pred_fallthru
    _
  // Predicated region
  $region6: #{block_forward.7} parent=0 // pred_check
    _
  $region7: #{block_forward.7} parent=0 // pred_check_branch
    %12 = sbr.rel (0) target = $region9
  $region8: #{block_forward.7} parent=0 // pred_region
    _
  $region9: #{block_forward.7} parent=0 // pred_fallthru
    _
  // Predicated region
  $region10: #{block_forward.7} parent=0 // pred_check
    _
  $region11: #{block_forward.7} parent=0 // pred_check_branch
    %14 = sbr.rel (0) target = $region13
  $region12: #{block_forward.7} parent=0 // pred_region
    _
  $region13: #{block_forward.7} parent=0 // pred_fallthru
    _
  // Predicated region
  $region14: #{block_forward.7} parent=0 // pred_check
    _
  $region15: #{block_forward.7} parent=0 // pred_check_branch
    %16 = sbr.rel (0) target = $region17
  $region16: #{block_forward.7} parent=0 // pred_region
    _
  $region17: #{block_forward.7} parent=0 // pred_fallthru
    _
  %v17 = vld [vmem:[%s0] sm:$0xff]
  %v18 = vld [vmem:[%s0 + $0x8] sm:$0xff]
  %v19 = vld [vmem:[%s0 + $0x10] sm:$0xff]
  %v20 = vld [vmem:[%s0 + $0x18] sm:$0xff]
  %v21 = vld [vmem:[%s0 + $0x20] sm:$0xff]
  %v22 = vld [vmem:[%s0 + $0x28] sm:$0xff]
  %v23 = vld [vmem:[%s0 + $0x30] sm:$0xff]
  %v24 = vld [vmem:[%s0 + $0x38] sm:$0xff]
  %v25 = vld [vmem:[%s0 + $0x40] sm:$0xff]
  %v26 = vld [vmem:[%s0 + $0x48] sm:$0xff]
  %v27 = vld [vmem:[%s0 + $0x50] sm:$0xff]
  %v28 = vld [vmem:[%s0 + $0x58] sm:$0xff]
  %v29 = vld [vmem:[%s0 + $0x60] sm:$0xff]
  %v30 = vld [vmem:[%s0 + $0x68] sm:$0xff]
  %v31 = vld [vmem:[%s0 + $0x70] sm:$0xff]
  %v32 = vld [vmem:[%s0 + $0x78] sm:$0xff]
  %v33 = vld [vmem:[%s0 + $0x80] sm:$0xff]
  %v34 = vld [vmem:[%s0 + $0x88] sm:$0xff]
  %v35 = vld [vmem:[%s0 + $0x90] sm:$0xff]
  %v36 = vld [vmem:[%s0 + $0x98] sm:$0xff]
  %v37 = vld [vmem:[%s0 + $0xa0] sm:$0xff]
  %v38 = vld [vmem:[%s0 + $0xa8] sm:$0xff]
  %v39 = vld [vmem:[%s0 + $0xb0] sm:$0xff]
  %v40 = vld [vmem:[%s0 + $0xb8] sm:$0xff]
  %v41 = vld [vmem:[%s0 + $0xc0] sm:$0xff]
  %v42 = vld [vmem:[%s0 + $0xc8] sm:$0xff]
  %v43 = vld [vmem:[%s0 + $0xd0] sm:$0xff]
  %v44 = vld [vmem:[%s0 + $0xd8] sm:$0xff]
  %v45 = vld [vmem:[%s0 + $0xe0] sm:$0xff]
  %v46 = vld [vmem:[%s0 + $0xe8] sm:$0xff]
  %v47 = vld [vmem:[%s0 + $0xf0] sm:$0xff]
  %v48 = vld [vmem:[%s0 + $0xf8] sm:$0xff]
  %v49 = vld [vmem:[%s0 + $0x100] sm:$0xff]
  %v50 = vld [vmem:[%s0 + $0x108] sm:$0xff]
  %v51 = vld [vmem:[%s0 + $0x110] sm:$0xff]
  %v52 = vld [vmem:[%s0 + $0x118] sm:$0xff]
  %v53 = vld [vmem:[%s0 + $0x120] sm:$0xff]
  %v54 = vld [vmem:[%s0 + $0x128] sm:$0xff]
  %v55 = vld [vmem:[%s0 + $0x130] sm:$0xff]
  %v56 = vld [vmem:[%s0 + $0x138] sm:$0xff]
  %v57 = vld [vmem:[%s0 + $0x140] sm:$0xff]
  %v58 = vld [vmem:[%s0 + $0x148] sm:$0xff]
  %v59 = vld [vmem:[%s0 + $0x150] sm:$0xff]
  %v60 = vld [vmem:[%s0 + $0x158] sm:$0xff]
  %v61 = vld [vmem:[%s0 + $0x160] sm:$0xff]
  %v62 = vld [vmem:[%s0 + $0x168] sm:$0xff]
  %v63 = vld [vmem:[%s0 + $0x170] sm:$0xff]
  %v64 = vld [vmem:[%s0 + $0x178] sm:$0xff]
  %v65 = vld [vmem:[%s0 + $0x180] sm:$0xff]
  %v66 = vld [vmem:[%s0 + $0x188] sm:$0xff]
  %v67 = vld [vmem:[%s0 + $0x190] sm:$0xff]
  %v68 = vld [vmem:[%s0 + $0x198] sm:$0xff]
  %v69 = vld [vmem:[%s0 + $0x1a0] sm:$0xff]
  %v70 = vld [vmem:[%s0 + $0x1a8] sm:$0xff]
  %v71 = vld [vmem:[%s0 + $0x1b0] sm:$0xff]
  %v72 = vld [vmem:[%s0 + $0x1b8] sm:$0xff]
  %v73 = vld [vmem:[%s0 + $0x1c0] sm:$0xff]
  %v74 = vld [vmem:[%s0 + $0x1c8] sm:$0xff]
  %v75 = vld [vmem:[%s0 + $0x1d0] sm:$0xff]
  %v76 = vld [vmem:[%s0 + $0x1d8] sm:$0xff]
  %v77 = vld [vmem:[%s0 + $0x1e0] sm:$0xff]
  %v78 = vld [vmem:[%s0 + $0x1e8] sm:$0xff]
  %v79 = vld [vmem:[%s0 + $0x1f0] sm:$0xff]
  %v80 = vld [vmem:[%s0 + $0x1f8] sm:$0xff]
  %v81 = vld [vmem:[%s1] sm:$0x1]
  %v83 = vlaneseq
  %v84 = vshrl.u32 %v83, 7
  %v85 = vsub.s32 0, %v84
  %v86 = vrot.slane %v81, %v85
  %v88 = vmul.f32 %v17, %v86
  %v89 = vmul.f32 %v18, %v86
  %v90 = vmul.f32 %v19, %v86
  %v91 = vmul.f32 %v20, %v86
  %v92 = vmul.f32 %v21, %v86
  %v93 = vmul.f32 %v22, %v86
  %v94 = vmul.f32 %v23, %v86
  %v95 = vmul.f32 %v24, %v86
  %v96 = vmul.f32 %v25, %v86
  %v97 = vmul.f32 %v26, %v86
  %v98 = vmul.f32 %v27, %v86
  %v99 = vmul.f32 %v28, %v86
  %v100 = vmul.f32 %v29, %v86
  %v101 = vmul.f32 %v30, %v86
  %v102 = vmul.f32 %v31, %v86
  %v103 = vmul.f32 %v32, %v86
  %v104 = vmul.f32 %v33, %v86
  %v105 = vmul.f32 %v34, %v86
  %v106 = vmul.f32 %v35, %v86
  %v107 = vmul.f32 %v36, %v86
  %v108 = vmul.f32 %v37, %v86
  %v109 = vmul.f32 %v38, %v86
  %v110 = vmul.f32 %v39, %v86
  %v111 = vmul.f32 %v40, %v86
  %v112 = vmul.f32 %v41, %v86
  %v113 = vmul.f32 %v42, %v86
  %v114 = vmul.f32 %v43, %v86
  %v115 = vmul.f32 %v44, %v86
  %v116 = vmul.f32 %v45, %v86
  %v117 = vmul.f32 %v46, %v86
  %v118 = vmul.f32 %v47, %v86
  %v119 = vmul.f32 %v48, %v86
  %v120 = vmul.f32 %v49, %v86
  %v121 = vmul.f32 %v50, %v86
  %v122 = vmul.f32 %v51, %v86
  %v123 = vmul.f32 %v52, %v86
  %v124 = vmul.f32 %v53, %v86
  %v125 = vmul.f32 %v54, %v86
  %v126 = vmul.f32 %v55, %v86
  %v127 = vmul.f32 %v56, %v86
  %v128 = vmul.f32 %v57, %v86
  %v129 = vmul.f32 %v58, %v86
  %v130 = vmul.f32 %v59, %v86
  %v131 = vmul.f32 %v60, %v86
  %v132 = vmul.f32 %v61, %v86
  %v133 = vmul.f32 %v62, %v86
  %v134 = vmul.f32 %v63, %v86
  %v135 = vmul.f32 %v64, %v86
  %v136 = vmul.f32 %v65, %v86
  %v137 = vmul.f32 %v66, %v86
  %v138 = vmul.f32 %v67, %v86
  %v139 = vmul.f32 %v68, %v86
  %v140 = vmul.f32 %v69, %v86
  %v141 = vmul.f32 %v70, %v86
  %v142 = vmul.f32 %v71, %v86
  %v143 = vmul.f32 %v72, %v86
  %v144 = vmul.f32 %v73, %v86
  %v145 = vmul.f32 %v74, %v86
  %v146 = vmul.f32 %v75, %v86
  %v147 = vmul.f32 %v76, %v86
  %v148 = vmul.f32 %v77, %v86
  %v149 = vmul.f32 %v78, %v86
  %v150 = vmul.f32 %v79, %v86
  %v151 = vmul.f32 %v80, %v86
  %v152 = vld [vmem:[%s2] sm:$0x1]
  %v154 = vlaneseq
  %v155 = vshrl.u32 %v154, 7
  %v156 = vsub.s32 0, %v155
  %v157 = vrot.slane %v152, %v156
  %v159 = vadd.f32 %v88, %v157
  %v160 = vadd.f32 %v89, %v157
  %v161 = vadd.f32 %v90, %v157
  %v162 = vadd.f32 %v91, %v157
  %v163 = vadd.f32 %v92, %v157
  %v164 = vadd.f32 %v93, %v157
  %v165 = vadd.f32 %v94, %v157
  %v166 = vadd.f32 %v95, %v157
  %v167 = vadd.f32 %v96, %v157
  %v168 = vadd.f32 %v97, %v157
  %v169 = vadd.f32 %v98, %v157
  %v170 = vadd.f32 %v99, %v157
  %v171 = vadd.f32 %v100, %v157
  %v172 = vadd.f32 %v101, %v157
  %v173 = vadd.f32 %v102, %v157
  %v174 = vadd.f32 %v103, %v157
  %v175 = vadd.f32 %v104, %v157
  %v176 = vadd.f32 %v105, %v157
  %v177 = vadd.f32 %v106, %v157
  %v178 = vadd.f32 %v107, %v157
  %v179 = vadd.f32 %v108, %v157
  %v180 = vadd.f32 %v109, %v157
  %v181 = vadd.f32 %v110, %v157
  %v182 = vadd.f32 %v111, %v157
  %v183 = vadd.f32 %v112, %v157
  %v184 = vadd.f32 %v113, %v157
  %v185 = vadd.f32 %v114, %v157
  %v186 = vadd.f32 %v115, %v157
  %v187 = vadd.f32 %v116, %v157
  %v188 = vadd.f32 %v117, %v157
  %v189 = vadd.f32 %v118, %v157
  %v190 = vadd.f32 %v119, %v157
  %v191 = vadd.f32 %v120, %v157
  %v192 = vadd.f32 %v121, %v157
  %v193 = vadd.f32 %v122, %v157
  %v194 = vadd.f32 %v123, %v157
  %v195 = vadd.f32 %v124, %v157
  %v196 = vadd.f32 %v125, %v157
  %v197 = vadd.f32 %v126, %v157
  %v198 = vadd.f32 %v127, %v157
  %v199 = vadd.f32 %v128, %v157
  %v200 = vadd.f32 %v129, %v157
  %v201 = vadd.f32 %v130, %v157
  %v202 = vadd.f32 %v131, %v157
  %v203 = vadd.f32 %v132, %v157
  %v204 = vadd.f32 %v133, %v157
  %v205 = vadd.f32 %v134, %v157
  %v206 = vadd.f32 %v135, %v157
  %v207 = vadd.f32 %v136, %v157
  %v208 = vadd.f32 %v137, %v157
  %v209 = vadd.f32 %v138, %v157
  %v210 = vadd.f32 %v139, %v157
  %v211 = vadd.f32 %v140, %v157
  %v212 = vadd.f32 %v141, %v157
  %v213 = vadd.f32 %v142, %v157
  %v214 = vadd.f32 %v143, %v157
  %v215 = vadd.f32 %v144, %v157
  %v216 = vadd.f32 %v145, %v157
  %v217 = vadd.f32 %v146, %v157
  %v218 = vadd.f32 %v147, %v157
  %v219 = vadd.f32 %v148, %v157
  %v220 = vadd.f32 %v149, %v157
  %v221 = vadd.f32 %v150, %v157
  %v222 = vadd.f32 %v151, %v157
  %v223 = vld [vmem:[%s3] sm:$0xff]
  %v224 = vld [vmem:[%s3 + $0x8] sm:$0xff]
  %v225 = vld [vmem:[%s3 + $0x10] sm:$0xff]
  %v226 = vld [vmem:[%s3 + $0x18] sm:$0xff]
  %v227 = vld [vmem:[%s3 + $0x20] sm:$0xff]
  %v228 = vld [vmem:[%s3 + $0x28] sm:$0xff]
  %v229 = vld [vmem:[%s3 + $0x30] sm:$0xff]
  %v230 = vld [vmem:[%s3 + $0x38] sm:$0xff]
  %v231 = vld [vmem:[%s3 + $0x40] sm:$0xff]
  %v232 = vld [vmem:[%s3 + $0x48] sm:$0xff]
  %v233 = vld [vmem:[%s3 + $0x50] sm:$0xff]
  %v234 = vld [vmem:[%s3 + $0x58] sm:$0xff]
  %v235 = vld [vmem:[%s3 + $0x60] sm:$0xff]
  %v236 = vld [vmem:[%s3 + $0x68] sm:$0xff]
  %v237 = vld [vmem:[%s3 + $0x70] sm:$0xff]
  %v238 = vld [vmem:[%s3 + $0x78] sm:$0xff]
  %v239 = vld [vmem:[%s3 + $0x80] sm:$0xff]
  %v240 = vld [vmem:[%s3 + $0x88] sm:$0xff]
  %v241 = vld [vmem:[%s3 + $0x90] sm:$0xff]
  %v242 = vld [vmem:[%s3 + $0x98] sm:$0xff]
  %v243 = vld [vmem:[%s3 + $0xa0] sm:$0xff]
  %v244 = vld [vmem:[%s3 + $0xa8] sm:$0xff]
  %v245 = vld [vmem:[%s3 + $0xb0] sm:$0xff]
  %v246 = vld [vmem:[%s3 + $0xb8] sm:$0xff]
  %v247 = vld [vmem:[%s3 + $0xc0] sm:$0xff]
  %v248 = vld [vmem:[%s3 + $0xc8] sm:$0xff]
  %v249 = vld [vmem:[%s3 + $0xd0] sm:$0xff]
  %v250 = vld [vmem:[%s3 + $0xd8] sm:$0xff]
  %v251 = vld [vmem:[%s3 + $0xe0] sm:$0xff]
  %v252 = vld [vmem:[%s3 + $0xe8] sm:$0xff]
  %v253 = vld [vmem:[%s3 + $0xf0] sm:$0xff]
  %v254 = vld [vmem:[%s3 + $0xf8] sm:$0xff]
  %v255 = vld [vmem:[%s3 + $0x100] sm:$0xff]
  %v256 = vld [vmem:[%s3 + $0x108] sm:$0xff]
  %v257 = vld [vmem:[%s3 + $0x110] sm:$0xff]
  %v258 = vld [vmem:[%s3 + $0x118] sm:$0xff]
  %v259 = vld [vmem:[%s3 + $0x120] sm:$0xff]
  %v260 = vld [vmem:[%s3 + $0x128] sm:$0xff]
  %v261 = vld [vmem:[%s3 + $0x130] sm:$0xff]
  %v262 = vld [vmem:[%s3 + $0x138] sm:$0xff]
  %v263 = vld [vmem:[%s3 + $0x140] sm:$0xff]
  %v264 = vld [vmem:[%s3 + $0x148] sm:$0xff]
  %v265 = vld [vmem:[%s3 + $0x150] sm:$0xff]
  %v266 = vld [vmem:[%s3 + $0x158] sm:$0xff]
  %v267 = vld [vmem:[%s3 + $0x160] sm:$0xff]
  %v268 = vld [vmem:[%s3 + $0x168] sm:$0xff]
  %v269 = vld [vmem:[%s3 + $0x170] sm:$0xff]
  %v270 = vld [vmem:[%s3 + $0x178] sm:$0xff]
  %v271 = vld [vmem:[%s3 + $0x180] sm:$0xff]
  %v272 = vld [vmem:[%s3 + $0x188] sm:$0xff]
  %v273 = vld [vmem:[%s3 + $0x190] sm:$0xff]
  %v274 = vld [vmem:[%s3 + $0x198] sm:$0xff]
  %v275 = vld [vmem:[%s3 + $0x1a0] sm:$0xff]
  %v276 = vld [vmem:[%s3 + $0x1a8] sm:$0xff]
  %v277 = vld [vmem:[%s3 + $0x1b0] sm:$0xff]
  %v278 = vld [vmem:[%s3 + $0x1b8] sm:$0xff]
  %v279 = vld [vmem:[%s3 + $0x1c0] sm:$0xff]
  %v280 = vld [vmem:[%s3 + $0x1c8] sm:$0xff]
  %v281 = vld [vmem:[%s3 + $0x1d0] sm:$0xff]
  %v282 = vld [vmem:[%s3 + $0x1d8] sm:$0xff]
  %v283 = vld [vmem:[%s3 + $0x1e0] sm:$0xff]
  %v284 = vld [vmem:[%s3 + $0x1e8] sm:$0xff]
  %v285 = vld [vmem:[%s3 + $0x1f0] sm:$0xff]
  %v286 = vld [vmem:[%s3 + $0x1f8] sm:$0xff]
  %v287 = vadd.f32 %v159, %v223
  %v288 = vadd.f32 %v160, %v224
  %v289 = vadd.f32 %v161, %v225
  %v290 = vadd.f32 %v162, %v226
  %v291 = vadd.f32 %v163, %v227
  %v292 = vadd.f32 %v164, %v228
  %v293 = vadd.f32 %v165, %v229
  %v294 = vadd.f32 %v166, %v230
  %v295 = vadd.f32 %v167, %v231
  %v296 = vadd.f32 %v168, %v232
  %v297 = vadd.f32 %v169, %v233
  %v298 = vadd.f32 %v170, %v234
  %v299 = vadd.f32 %v171, %v235
  %v300 = vadd.f32 %v172, %v236
  %v301 = vadd.f32 %v173, %v237
  %v302 = vadd.f32 %v174, %v238
  %v303 = vadd.f32 %v175, %v239
  %v304 = vadd.f32 %v176, %v240
  %v305 = vadd.f32 %v177, %v241
  %v306 = vadd.f32 %v178, %v242
  %v307 = vadd.f32 %v179, %v243
  %v308 = vadd.f32 %v180, %v244
  %v309 = vadd.f32 %v181, %v245
  %v310 = vadd.f32 %v182, %v246
  %v311 = vadd.f32 %v183, %v247
  %v312 = vadd.f32 %v184, %v248
  %v313 = vadd.f32 %v185, %v249
  %v314 = vadd.f32 %v186, %v250
  %v315 = vadd.f32 %v187, %v251
  %v316 = vadd.f32 %v188, %v252
  %v317 = vadd.f32 %v189, %v253
  %v318 = vadd.f32 %v190, %v254
  %v319 = vadd.f32 %v191, %v255
  %v320 = vadd.f32 %v192, %v256
  %v321 = vadd.f32 %v193, %v257
  %v322 = vadd.f32 %v194, %v258
  %v323 = vadd.f32 %v195, %v259
  %v324 = vadd.f32 %v196, %v260
  %v325 = vadd.f32 %v197, %v261
  %v326 = vadd.f32 %v198, %v262
  %v327 = vadd.f32 %v199, %v263
  %v328 = vadd.f32 %v200, %v264
  %v329 = vadd.f32 %v201, %v265
  %v330 = vadd.f32 %v202, %v266
  %v331 = vadd.f32 %v203, %v267
  %v332 = vadd.f32 %v204, %v268
  %v333 = vadd.f32 %v205, %v269
  %v334 = vadd.f32 %v206, %v270
  %v335 = vadd.f32 %v207, %v271
  %v336 = vadd.f32 %v208, %v272
  %v337 = vadd.f32 %v209, %v273
  %v338 = vadd.f32 %v210, %v274
  %v339 = vadd.f32 %v211, %v275
  %v340 = vadd.f32 %v212, %v276
  %v341 = vadd.f32 %v213, %v277
  %v342 = vadd.f32 %v214, %v278
  %v343 = vadd.f32 %v215, %v279
  %v344 = vadd.f32 %v216, %v280
  %v345 = vadd.f32 %v217, %v281
  %v346 = vadd.f32 %v218, %v282
  %v347 = vadd.f32 %v219, %v283
  %v348 = vadd.f32 %v220, %v284
  %v349 = vadd.f32 %v221, %v285
  %v350 = vadd.f32 %v222, %v286
  %v351 = vmax.f32 %v287, 0.0
  %v352 = vmax.f32 %v288, 0.0
  %v353 = vmax.f32 %v289, 0.0
  %v354 = vmax.f32 %v290, 0.0
  %v355 = vmax.f32 %v291, 0.0
  %v356 = vmax.f32 %v292, 0.0
  %v357 = vmax.f32 %v293, 0.0
  %v358 = vmax.f32 %v294, 0.0
  %v359 = vmax.f32 %v295, 0.0
  %v360 = vmax.f32 %v296, 0.0
  %v361 = vmax.f32 %v297, 0.0
  %v362 = vmax.f32 %v298, 0.0
  %v363 = vmax.f32 %v299, 0.0
  %v364 = vmax.f32 %v300, 0.0
  %v365 = vmax.f32 %v301, 0.0
  %v366 = vmax.f32 %v302, 0.0
  %v367 = vmax.f32 %v303, 0.0
  %v368 = vmax.f32 %v304, 0.0
  %v369 = vmax.f32 %v305, 0.0
  %v370 = vmax.f32 %v306, 0.0
  %v371 = vmax.f32 %v307, 0.0
  %v372 = vmax.f32 %v308, 0.0
  %v373 = vmax.f32 %v309, 0.0
  %v374 = vmax.f32 %v310, 0.0
  %v375 = vmax.f32 %v311, 0.0
  %v376 = vmax.f32 %v312, 0.0
  %v377 = vmax.f32 %v313, 0.0
  %v378 = vmax.f32 %v314, 0.0
  %v379 = vmax.f32 %v315, 0.0
  %v380 = vmax.f32 %v316, 0.0
  %v381 = vmax.f32 %v317, 0.0
  %v382 = vmax.f32 %v318, 0.0
  %v383 = vmax.f32 %v319, 0.0
  %v384 = vmax.f32 %v320, 0.0
  %v385 = vmax.f32 %v321, 0.0
  %v386 = vmax.f32 %v322, 0.0
  %v387 = vmax.f32 %v323, 0.0
  %v388 = vmax.f32 %v324, 0.0
  %v389 = vmax.f32 %v325, 0.0
  %v390 = vmax.f32 %v326, 0.0
  %v391 = vmax.f32 %v327, 0.0
  %v392 = vmax.f32 %v328, 0.0
  %v393 = vmax.f32 %v329, 0.0
  %v394 = vmax.f32 %v330, 0.0
  %v395 = vmax.f32 %v331, 0.0
  %v396 = vmax.f32 %v332, 0.0
  %v397 = vmax.f32 %v333, 0.0
  %v398 = vmax.f32 %v334, 0.0
  %v399 = vmax.f32 %v335, 0.0
  %v400 = vmax.f32 %v336, 0.0
  %v401 = vmax.f32 %v337, 0.0
  %v402 = vmax.f32 %v338, 0.0
  %v403 = vmax.f32 %v339, 0.0
  %v404 = vmax.f32 %v340, 0.0
  %v405 = vmax.f32 %v341, 0.0
  %v406 = vmax.f32 %v342, 0.0
  %v407 = vmax.f32 %v343, 0.0
  %v408 = vmax.f32 %v344, 0.0
  %v409 = vmax.f32 %v345, 0.0
  %v410 = vmax.f32 %v346, 0.0
  %v411 = vmax.f32 %v347, 0.0
  %v412 = vmax.f32 %v348, 0.0
  %v413 = vmax.f32 %v349, 0.0
  %v414 = vmax.f32 %v350, 0.0
  %415 = vst [vmem:[%s4] sm:$0xff] %v351
  %416 = vst [vmem:[%s4 + $0x8] sm:$0xff] %v352
  %417 = vst [vmem:[%s4 + $0x10] sm:$0xff] %v353
  %418 = vst [vmem:[%s4 + $0x18] sm:$0xff] %v354
  %419 = vst [vmem:[%s4 + $0x20] sm:$0xff] %v355
  %420 = vst [vmem:[%s4 + $0x28] sm:$0xff] %v356
  %421 = vst [vmem:[%s4 + $0x30] sm:$0xff] %v357
  %422 = vst [vmem:[%s4 + $0x38] sm:$0xff] %v358
  %423 = vst [vmem:[%s4 + $0x40] sm:$0xff] %v359
  %424 = vst [vmem:[%s4 + $0x48] sm:$0xff] %v360
  %425 = vst [vmem:[%s4 + $0x50] sm:$0xff] %v361
  %426 = vst [vmem:[%s4 + $0x58] sm:$0xff] %v362
  %427 = vst [vmem:[%s4 + $0x60] sm:$0xff] %v363
  %428 = vst [vmem:[%s4 + $0x68] sm:$0xff] %v364
  %429 = vst [vmem:[%s4 + $0x70] sm:$0xff] %v365
  %430 = vst [vmem:[%s4 + $0x78] sm:$0xff] %v366
  %431 = vst [vmem:[%s4 + $0x80] sm:$0xff] %v367
  %432 = vst [vmem:[%s4 + $0x88] sm:$0xff] %v368
  %433 = vst [vmem:[%s4 + $0x90] sm:$0xff] %v369
  %434 = vst [vmem:[%s4 + $0x98] sm:$0xff] %v370
  %435 = vst [vmem:[%s4 + $0xa0] sm:$0xff] %v371
  %436 = vst [vmem:[%s4 + $0xa8] sm:$0xff] %v372
  %437 = vst [vmem:[%s4 + $0xb0] sm:$0xff] %v373
  %438 = vst [vmem:[%s4 + $0xb8] sm:$0xff] %v374
  %439 = vst [vmem:[%s4 + $0xc0] sm:$0xff] %v375
  %440 = vst [vmem:[%s4 + $0xc8] sm:$0xff] %v376
  %441 = vst [vmem:[%s4 + $0xd0] sm:$0xff] %v377
  %442 = vst [vmem:[%s4 + $0xd8] sm:$0xff] %v378
  %443 = vst [vmem:[%s4 + $0xe0] sm:$0xff] %v379
  %444 = vst [vmem:[%s4 + $0xe8] sm:$0xff] %v380
  %445 = vst [vmem:[%s4 + $0xf0] sm:$0xff] %v381
  %446 = vst [vmem:[%s4 + $0xf8] sm:$0xff] %v382
  %447 = vst [vmem:[%s4 + $0x100] sm:$0xff] %v383
  %448 = vst [vmem:[%s4 + $0x108] sm:$0xff] %v384
  %449 = vst [vmem:[%s4 + $0x110] sm:$0xff] %v385
  %450 = vst [vmem:[%s4 + $0x118] sm:$0xff] %v386
  %451 = vst [vmem:[%s4 + $0x120] sm:$0xff] %v387
  %452 = vst [vmem:[%s4 + $0x128] sm:$0xff] %v388
  %453 = vst [vmem:[%s4 + $0x130] sm:$0xff] %v389
  %454 = vst [vmem:[%s4 + $0x138] sm:$0xff] %v390
  %455 = vst [vmem:[%s4 + $0x140] sm:$0xff] %v391
  %456 = vst [vmem:[%s4 + $0x148] sm:$0xff] %v392
  %457 = vst [vmem:[%s4 + $0x150] sm:$0xff] %v393
  %458 = vst [vmem:[%s4 + $0x158] sm:$0xff] %v394
  %459 = vst [vmem:[%s4 + $0x160] sm:$0xff] %v395
  %460 = vst [vmem:[%s4 + $0x168] sm:$0xff] %v396
  %461 = vst [vmem:[%s4 + $0x170] sm:$0xff] %v397
  %462 = vst [vmem:[%s4 + $0x178] sm:$0xff] %v398
  %463 = vst [vmem:[%s4 + $0x180] sm:$0xff] %v399
  %464 = vst [vmem:[%s4 + $0x188] sm:$0xff] %v400
  %465 = vst [vmem:[%s4 + $0x190] sm:$0xff] %v401
  %466 = vst [vmem:[%s4 + $0x198] sm:$0xff] %v402
  %467 = vst [vmem:[%s4 + $0x1a0] sm:$0xff] %v403
  %468 = vst [vmem:[%s4 + $0x1a8] sm:$0xff] %v404
  %469 = vst [vmem:[%s4 + $0x1b0] sm:$0xff] %v405
  %470 = vst [vmem:[%s4 + $0x1b8] sm:$0xff] %v406
  %471 = vst [vmem:[%s4 + $0x1c0] sm:$0xff] %v407
  %472 = vst [vmem:[%s4 + $0x1c8] sm:$0xff] %v408
  %473 = vst [vmem:[%s4 + $0x1d0] sm:$0xff] %v409
  %474 = vst [vmem:[%s4 + $0x1d8] sm:$0xff] %v410
  %475 = vst [vmem:[%s4 + $0x1e0] sm:$0xff] %v411
  %476 = vst [vmem:[%s4 + $0x1e8] sm:$0xff] %v412
  %477 = vst [vmem:[%s4 + $0x1f0] sm:$0xff] %v413
  %478 = vst [vmem:[%s4 + $0x1f8] sm:$0xff] %v414
  // Predicated region
  $region18: #{block_forward.7} parent=0 // pred_check
    _
  $region19: #{block_forward.7} parent=0 // pred_check_branch
    %480 = sbr.rel (0) target = $region21
  $region20: #{block_forward.7} parent=0 // pred_region
    _
  $region21: #{block_forward.7} parent=0 // pred_fallthru
    _
  // Predicated region
  $region22: #{block_forward.7} parent=0 // pred_check
    _
  $region23: #{block_forward.7} parent=0 // pred_check_branch
    %482 = sbr.rel (0) target = $region25
  $region24: #{block_forward.7} parent=0 // pred_region
    _
  $region25: #{block_forward.7} parent=0 // pred_fallthru
    _

// kernel: block_forward.4
$region0: #{block_forward.4}
  #allocation0 [shape = 'u32[]', space=smem, size = 0x4, offset = 0x4, fixed_abs, tag = 'smem constant byte address 0x4 - core index']
  #allocation1 [shape = 'u32[144,128]{1,0:T(1,128)}', space=vmem, size = 0x12000, scoped, tag = 'internal scratch']
  #allocation2 [shape = 'f32[256,128]{1,0:T(8,128)}', space=vmem, size = 0x20000, scoped, tag = 'scratch operand']
  %s0 = inlined_call_operand.vmem [shape: bf16[2,3,18,16,128], index: 0, kind: input, shape index: {}]
  %s1 = inlined_call_operand.vmem [shape: bf16[9,128,128], index: 1, kind: input, shape index: {}]
  %s2 = inlined_call_operand.vmem [shape: f32[2,256,128], index: 2, kind: output, shape index: {0}]
  %s3 = inlined_call_operand.vmem [shape: f32[2,128], index: 3, kind: output, shape index: {1}]
  %4 = xla_tuple %s2, %s3
  %s5 = sld [smem:[#allocation0]]
  $region53: #{block_forward.4} parent=0
    _
  %s7 = ssub.s32 1, %s5
  %s8 = scalar_select 0, %s7, %s5
  loop: start=0, step=1, limit=4
  $region2: #{block_forward.4} parent=0 // loop_pre_header
    _
  $region3: #{block_forward.4} parent=0 // loop_header
    %s10 = sphi 0, %s14
    %p11 = scmp.ge.s32.totalorder %s10, 4
    %s20 = sphi 0, %s22
    %s23 = sphi 0, %s20
    %s24 = sphi 0, %s23
    %s40 = sphi 0, %s24
    %s44 = sphi 0, %s44
    %s46 = sphi 0, %s44
    %s47 = sphi 0, %s46
    %s61 = sphi 0, %s47
    %s67 = sphi 0, %s69
    %s70 = sphi 0, %s67
    %s71 = sphi 0, %s70
    %s87 = sphi 0, %s71
    %s91 = sphi 0, %s91
    %s93 = sphi 0, %s91
    %s94 = sphi 0, %s93
    %s108 = sphi 0, %s94
  $region4: #{block_forward.4} parent=0 // loop_header_branch
    %13 = sbr.rel (%p11) target = $region8
  $region5: #{block_forward.4} parent=0 // loop_body
    %s15 = ssub.s32 %s10, 1
    %s16 = ssub.s32 %s10, 2
    %s17 = sadd.s32 %s10, 1
    %s18 = ssub.s32 %s10, %s17
    %p19 = scmp.eq.s32.totalorder %s18, 0
    %s21 = sadd.s32 %s20, 1
    %s22 = scalar_select %p19, %s20, %s21
    %p25 = pneg %p19
    %p26 = scmp.eq.s32.totalorder %s10, 1
    %p27 = por %p25, %p26
    %p28 = scmp.ne.s32.totalorder %s20, %s23
    %p29 = scmp.eq.s32.totalorder %s10, 0
    %p30 = por %p28, %p29
    %p31 = scmp.ne.s32.totalorder %s20, %s23
    %p32 = scmp.eq.s32.totalorder %s15, 1
    %p33 = por %p31, %p32
    %p34 = scmp.ne.s32.totalorder %s23, %s24
    %p35 = scmp.eq.s32.totalorder %s15, 0
    %p36 = por %p34, %p35
    %p37 = scmp.ne.s32.totalorder %s23, %s24
    %p38 = scmp.eq.s32.totalorder %s16, 1
    %p39 = por %p37, %p38
    %p41 = scmp.ne.s32.totalorder %s24, %s40
    %p42 = scmp.eq.s32.totalorder %s16, 0
    %p43 = por %p41, %p42
    %s45 = sadd.s32 %s44, 1
    %p48 = scmp.eq.s32.totalorder %s10, 1
    %p49 = scmp.ne.s32.totalorder %s44, %s46
    %p50 = scmp.eq.s32.totalorder %s10, 0
    %p51 = por %p49, %p50
    %p52 = scmp.ne.s32.totalorder %s44, %s46
    %p53 = scmp.eq.s32.totalorder %s15, 1
    %p54 = por %p52, %p53
    %p55 = scmp.ne.s32.totalorder %s46, %s47
    %p56 = scmp.eq.s32.totalorder %s15, 0
    %p57 = por %p55, %p56
    %p58 = scmp.ne.s32.totalorder %s46, %s47
    %p59 = scmp.eq.s32.totalorder %s16, 1
    %p60 = por %p58, %p59
    %p62 = scmp.ne.s32.totalorder %s47, %s61
    %p63 = scmp.eq.s32.totalorder %s16, 0
    %p64 = por %p62, %p63
    %s65 = ssub.s32 %s10, %s17
    %p66 = scmp.eq.s32.totalorder %s65, 0
    %s68 = sadd.s32 %s67, 1
    %s69 = scalar_select %p66, %s67, %s68
    %p72 = pneg %p66
    %p73 = scmp.eq.s32.totalorder %s10, 1
    %p74 = por %p72, %p73
    %p75 = scmp.ne.s32.totalorder %s67, %s70
    %p76 = scmp.eq.s32.totalorder %s10, 0
    %p77 = por %p75, %p76
    %p78 = scmp.ne.s32.totalorder %s67, %s70
    %p79 = scmp.eq.s32.totalorder %s15, 1
    %p80 = por %p78, %p79
    %p81 = scmp.ne.s32.totalorder %s70, %s71
    %p82 = scmp.eq.s32.totalorder %s15, 0
    %p83 = por %p81, %p82
    %p84 = scmp.ne.s32.totalorder %s70, %s71
    %p85 = scmp.eq.s32.totalorder %s16, 1
    %p86 = por %p84, %p85
    %p88 = scmp.ne.s32.totalorder %s71, %s87
    %p89 = scmp.eq.s32.totalorder %s16, 0
    %p90 = por %p88, %p89
    %s92 = sadd.s32 %s91, 1
    %p95 = scmp.eq.s32.totalorder %s10, 1
    %p96 = scmp.ne.s32.totalorder %s91, %s93
    %p97 = scmp.eq.s32.totalorder %s10, 0
    %p98 = por %p96, %p97
    %p99 = scmp.ne.s32.totalorder %s91, %s93
    %p100 = scmp.eq.s32.totalorder %s15, 1
    %p101 = por %p99, %p100
    %p102 = scmp.ne.s32.totalorder %s93, %s94
    %p103 = scmp.eq.s32.totalorder %s15, 0
    %p104 = por %p102, %p103
    %p105 = scmp.ne.s32.totalorder %s93, %s94
    %p106 = scmp.eq.s32.totalorder %s16, 1
    %p107 = por %p105, %p106
    %p109 = scmp.ne.s32.totalorder %s94, %s108
    %p110 = scmp.eq.s32.totalorder %s16, 0
    %p111 = por %p109, %p110
    %p112 = scmp.le.s32.totalorder 1, %s10
    %p113 = scmp.lt.s32.totalorder %s10, 3
    %p114 = pnand %p112, %p113
    %p115 = pneg %p114
    // Predicated region
    $region9: #{block_forward.4} parent=5 // pred_check
      _
    $region10: #{block_forward.4} parent=5 // pred_check_branch
      %117 = sbr.rel (%p114) target = $region12
    $region11: #{block_forward.4} parent=5 // pred_region
      %s118 = ssub.s32 %s10, 1
      // Predicated region
      $region13: #{block_forward.4} parent=11 // pred_check
        %p119 = pneg %p57
      $region14: #{block_forward.4} parent=11 // pred_check_branch
        %121 = sbr.rel (%p119) target = $region16
      $region15: #{block_forward.4} parent=11 // pred_region
        _
      $region16: #{block_forward.4} parent=11 // pred_fallthru
        _
    $region12: #{block_forward.4} parent=5 // pred_fallthru
      _
    %p122 = scmp.lt.s32.totalorder %s10, 2
    // Predicated region
    $region17: #{block_forward.4} parent=5 // pred_check
      %p123 = pneg %p122
    $region18: #{block_forward.4} parent=5 // pred_check_branch
      %125 = sbr.rel (%p123) target = $region20
    $region19: #{block_forward.4} parent=5 // pred_region
      // Predicated region
      $region21: #{block_forward.4} parent=19 // pred_check
        %p126 = pneg %p30
      $region22: #{block_forward.4} parent=19 // pred_check_branch
        %128 = sbr.rel (%p126) target = $region24
      $region23: #{block_forward.4} parent=19 // pred_region
        %p129 = scmp.lt.s32.totalorder %s10, 1
        %s130 = scalar_select %p129, %s10, 1
        %s131 = smul.addr %s130, 108
        %s132 = smul.addr %s131, 4
        %s133 = scalar_lea.vmem %s0, %s132
      $region24: #{block_forward.4} parent=19 // pred_fallthru
        _
    $region20: #{block_forward.4} parent=5 // pred_fallthru
      _
    %p134 = scmp.le.s32.totalorder 1, %s10
    %p135 = scmp.lt.s32.totalorder %s10, 3
    %p136 = pnand %p134, %p135
    %p137 = pneg %p136
    // Predicated region
    $region25: #{block_forward.4} parent=5 // pred_check
      _
    $region26: #{block_forward.4} parent=5 // pred_check_branch
      %139 = sbr.rel (%p136) target = $region28
    $region27: #{block_forward.4} parent=5 // pred_region
      %s140 = ssub.s32 %s10, 1
      %p141 = scmp.lt.s32.totalorder %s15, 1
      %s142 = scalar_select %p141, %s15, 1
      %s143 = smul.addr %s142, 108
      %s144 = smul.addr %s143, 4
      %s145 = scalar_lea.vmem %s0, %s144
      %p146 = pneg %p36
      %p147 = pneg %p33
      %p148 = pneg %p57
      %p149 = pneg %p54
      %p150 = pneg %p83
      %p151 = pneg %p80
      %p152 = scmp.lt.s32.totalorder %s15, 1
      %s153 = scalar_select %p152, %s15, 1
      %s154 = smul.addr %s153, 32
      %s155 = smul.addr %s154, 8
      %s156 = scalar_lea.vmem %s2, %s155
      %p157 = pneg %p104
      %p158 = pneg %p101
      %p159 = scmp.lt.s32.totalorder %s15, 1
      %s160 = scalar_select %p159, %s15, 1
      %s161 = smul.addr %s160, 108
      %s162 = smul.addr %s161, 4
      %s163 = scalar_lea.vmem %s0, %s162
      %p164 = scmp.lt.s32.totalorder %s15, 1
      %s165 = scalar_select %p164, %s15, 1
      %s166 = smul.addr %s165, 32
      %s167 = smul.addr %s166, 8
      %s168 = scalar_lea.vmem %s2, %s167
      %p170 = scmp.eq.s32.totalorder %s15, 0
      // Predicated region
      $region29: #{block_forward.4} parent=27 // pred_check
        %p171 = pneg %p170
      $region30: #{block_forward.4} parent=27 // pred_check_branch
        %173 = sbr.rel (%p171) target = $region32
      $region31: #{block_forward.4} parent=27 // pred_region
        %174 = vst [vmem:[%s3] sm:$0x3] 0.0
      $region32: #{block_forward.4} parent=27 // pred_fallthru
        _
      %175 = vst [vmem:[#allocation2] sm:$0xff] 0.0
      %176 = vst [vmem:[#allocation2 + $0x8] sm:$0xff] 0.0
      %177 = vst [vmem:[#allocation2 + $0x10] sm:$0xff] 0.0
      %178 = vst [vmem:[#allocation2 + $0x18] sm:$0xff] 0.0
      %179 = vst [vmem:[#allocation2 + $0x20] sm:$0xff] 0.0
      %180 = vst [vmem:[#allocation2 + $0x28] sm:$0xff] 0.0
      %181 = vst [vmem:[#allocation2 + $0x30] sm:$0xff] 0.0
      %182 = vst [vmem:[#allocation2 + $0x38] sm:$0xff] 0.0
      %183 = vst [vmem:[#allocation2 + $0x40] sm:$0xff] 0.0
      %184 = vst [vmem:[#allocation2 + $0x48] sm:$0xff] 0.0
      %185 = vst [vmem:[#allocation2 + $0x50] sm:$0xff] 0.0
      %186 = vst [vmem:[#allocation2 + $0x58] sm:$0xff] 0.0
      %187 = vst [vmem:[#allocation2 + $0x60] sm:$0xff] 0.0
      %188 = vst [vmem:[#allocation2 + $0x68] sm:$0xff] 0.0
      %189 = vst [vmem:[#allocation2 + $0x70] sm:$0xff] 0.0
      %190 = vst [vmem:[#allocation2 + $0x78] sm:$0xff] 0.0
      %191 = vst [vmem:[#allocation2 + $0x80] sm:$0xff] 0.0
      %192 = vst [vmem:[#allocation2 + $0x88] sm:$0xff] 0.0
      %193 = vst [vmem:[#allocation2 + $0x90] sm:$0xff] 0.0
      %194 = vst [vmem:[#allocation2 + $0x98] sm:$0xff] 0.0
      %195 = vst [vmem:[#allocation2 + $0xa0] sm:$0xff] 0.0
      %196 = vst [vmem:[#allocation2 + $0xa8] sm:$0xff] 0.0
      %197 = vst [vmem:[#allocation2 + $0xb0] sm:$0xff] 0.0
      %198 = vst [vmem:[#allocation2 + $0xb8] sm:$0xff] 0.0
      %199 = vst [vmem:[#allocation2 + $0xc0] sm:$0xff] 0.0
      %200 = vst [vmem:[#allocation2 + $0xc8] sm:$0xff] 0.0
      %201 = vst [vmem:[#allocation2 + $0xd0] sm:$0xff] 0.0
      %202 = vst [vmem:[#allocation2 + $0xd8] sm:$0xff] 0.0
      %203 = vst [vmem:[#allocation2 + $0xe0] sm:$0xff] 0.0
      %204 = vst [vmem:[#allocation2 + $0xe8] sm:$0xff] 0.0
      %205 = vst [vmem:[#allocation2 + $0xf0] sm:$0xff] 0.0
      %206 = vst [vmem:[#allocation2 + $0xf8] sm:$0xff] 0.0
      %v207 = vld [vmem:[%s163] sm:$0xf]
      %v208 = vld [vmem:[%s163 + $0x4] sm:$0xf]
      %v209 = vld [vmem:[%s163 + $0x8] sm:$0xf]
      %v210 = vld [vmem:[%s163 + $0xc] sm:$0xf]
      %v211 = vld [vmem:[%s163 + $0x10] sm:$0xf]
      %v212 = vld [vmem:[%s163 + $0x14] sm:$0xf]
      %v213 = vld [vmem:[%s163 + $0x18] sm:$0xf]
      %v214 = vld [vmem:[%s163 + $0x1c] sm:$0xf]
      %v215 = vld [vmem:[%s163 + $0x20] sm:$0xf]
      %v216 = vld [vmem:[%s163 + $0x24] sm:$0xf]
      %v217 = vld [vmem:[%s163 + $0x28] sm:$0xf]
      %v218 = vld [vmem:[%s163 + $0x2c] sm:$0xf]
      %v219 = vld [vmem:[%s163 + $0x30] sm:$0xf]
      %v220 = vld [vmem:[%s163 + $0x34] sm:$0xf]
      %v221 = vld [vmem:[%s163 + $0x38] sm:$0xf]
      %v222 = vld [vmem:[%s163 + $0x3c] sm:$0xf]
      %v223 = vld [vmem:[%s163 + $0x40] sm:$0xf]
      %v224 = vld [vmem:[%s163 + $0x44] sm:$0xf]
      %v225 = vld [vmem:[%s163 + $0x48] sm:$0xf]
      %v226 = vld [vmem:[%s163 + $0x4c] sm:$0xf]
      %v227 = vld [vmem:[%s163 + $0x50] sm:$0xf]
      %v228 = vld [vmem:[%s163 + $0x54] sm:$0xf]
      %v229 = vld [vmem:[%s163 + $0x58] sm:$0xf]
      %v230 = vld [vmem:[%s163 + $0x5c] sm:$0xf]
      %v231 = vld [vmem:[%s163 + $0x60] sm:$0xf]
      %v232 = vld [vmem:[%s163 + $0x64] sm:$0xf]
      %v233 = vld [vmem:[%s163 + $0x68] sm:$0xf]
      %v234 = vld [vmem:[%s163 + $0x6c] sm:$0xf]
      %v235 = vld [vmem:[%s163 + $0x70] sm:$0xf]
      %v236 = vld [vmem:[%s163 + $0x74] sm:$0xf]
      %v237 = vld [vmem:[%s163 + $0x78] sm:$0xf]
      %v238 = vld [vmem:[%s163 + $0x7c] sm:$0xf]
      %v239 = vld [vmem:[#allocation2] sm:$0xff]
      %v240 = vld [vmem:[#allocation2 + $0x8] sm:$0xff]
      %v241 = vld [vmem:[#allocation2 + $0x10] sm:$0xff]
      %v242 = vld [vmem:[#allocation2 + $0x18] sm:$0xff]
      %v243 = vld [vmem:[#allocation2 + $0x20] sm:$0xff]
      %v244 = vld [vmem:[#allocation2 + $0x28] sm:$0xff]
      %v245 = vld [vmem:[#allocation2 + $0x30] sm:$0xff]
      %v246 = vld [vmem:[#allocation2 + $0x38] sm:$0xff]
      %v247 = vld [vmem:[#allocation2 + $0x40] sm:$0xff]
      %v248 = vld [vmem:[#allocation2 + $0x48] sm:$0xff]
      %v249 = vld [vmem:[#allocation2 + $0x50] sm:$0xff]
      %v250 = vld [vmem:[#allocation2 + $0x58] sm:$0xff]
      %v251 = vld [vmem:[#allocation2 + $0x60] sm:$0xff]
      %v252 = vld [vmem:[#allocation2 + $0x68] sm:$0xff]
      %v253 = vld [vmem:[#allocation2 + $0x70] sm:$0xff]
      %v254 = vld [vmem:[#allocation2 + $0x78] sm:$0xff]
      %v255 = vld [vmem:[#allocation2 + $0x80] sm:$0xff]
      %v256 = vld [vmem:[#allocation2 + $0x88] sm:$0xff]
      %v257 = vld [vmem:[#allocation2 + $0x90] sm:$0xff]
      %v258 = vld [vmem:[#allocation2 + $0x98] sm:$0xff]
      %v259 = vld [vmem:[#allocation2 + $0xa0] sm:$0xff]
      %v260 = vld [vmem:[#allocation2 + $0xa8] sm:$0xff]
      %v261 = vld [vmem:[#allocation2 + $0xb0] sm:$0xff]
      %v262 = vld [vmem:[#allocation2 + $0xb8] sm:$0xff]
      %v263 = vld [vmem:[#allocation2 + $0xc0] sm:$0xff]
      %v264 = vld [vmem:[#allocation2 + $0xc8] sm:$0xff]
      %v265 = vld [vmem:[#allocation2 + $0xd0] sm:$0xff]
      %v266 = vld [vmem:[#allocation2 + $0xd8] sm:$0xff]
      %v267 = vld [vmem:[#allocation2 + $0xe0] sm:$0xff]
      %v268 = vld [vmem:[#allocation2 + $0xe8] sm:$0xff]
      %v269 = vld [vmem:[#allocation2 + $0xf0] sm:$0xff]
      %v270 = vld [vmem:[#allocation2 + $0xf8] sm:$0xff]
      %v271 = vld [vmem:[%s1] sm:$0xf]
      %v272 = vld [vmem:[%s1 + $0x4] sm:$0xf]
      %v273 = vld [vmem:[%s1 + $0x8] sm:$0xf]
      %v274 = vld [vmem:[%s1 + $0xc] sm:$0xf]
      %v275 = vld [vmem:[%s1 + $0x10] sm:$0xf]
      %v276 = vld [vmem:[%s1 + $0x14] sm:$0xf]
      %v277 = vld [vmem:[%s1 + $0x18] sm:$0xf]
      %v278 = vld [vmem:[%s1 + $0x1c] sm:$0xf]
      %v279 = vld [vmem:[%s1 + $0x20] sm:$0xf]
      %v280 = vld [vmem:[%s1 + $0x24] sm:$0xf]
      %v281 = vld [vmem:[%s1 + $0x28] sm:$0xf]
      %v282 = vld [vmem:[%s1 + $0x2c] sm:$0xf]
      %v283 = vld [vmem:[%s1 + $0x30] sm:$0xf]
      %v284 = vld [vmem:[%s1 + $0x34] sm:$0xf]
      %v285 = vld [vmem:[%s1 + $0x38] sm:$0xf]
      %v286 = vld [vmem:[%s1 + $0x3c] sm:$0xf]
      %v319 = vunpack.c.l.b16 %v207
      %v320 = vunpack.c.l.b16 %v208
      %v321 = vunpack.c.l.b16 %v209
      %v322 = vunpack.c.l.b16 %v210
      %v323 = vunpack.c.l.b16 %v211
      %v324 = vunpack.c.l.b16 %v212
      %v325 = vunpack.c.l.b16 %v213
      %v326 = vunpack.c.l.b16 %v214
      %v327 = vunpack.c.l.b16 %v215
      %v328 = vunpack.c.l.b16 %v216
      %v329 = vunpack.c.l.b16 %v217
      %v330 = vunpack.c.l.b16 %v218
      %v331 = vunpack.c.l.b16 %v219
      %v332 = vunpack.c.l.b16 %v220
      %v333 = vunpack.c.l.b16 %v221
      %v334 = vunpack.c.l.b16 %v222
      %v335 = vunpack.c.l.b16 %v223
      %v336 = vunpack.c.l.b16 %v224
      %v337 = vunpack.c.l.b16 %v225
      %v338 = vunpack.c.l.b16 %v226
      %v339 = vunpack.c.l.b16 %v227
      %v340 = vunpack.c.l.b16 %v228
      %v341 = vunpack.c.l.b16 %v229
      %v342 = vunpack.c.l.b16 %v230
      %v343 = vunpack.c.l.b16 %v231
      %v344 = vunpack.c.l.b16 %v232
      %v345 = vunpack.c.l.b16 %v233
      %v346 = vunpack.c.l.b16 %v234
      %v347 = vunpack.c.l.b16 %v235
      %v348 = vunpack.c.l.b16 %v236
      %v349 = vunpack.c.l.b16 %v237
      %v350 = vunpack.c.l.b16 %v238
      %v351 = vpack.c.b16 %v320, %v319
      %v352 = vpack.c.b16 %v322, %v321
      %v353 = vpack.c.b16 %v324, %v323
      %v354 = vpack.c.b16 %v326, %v325
      %v355 = vpack.c.b16 %v328, %v327
      %v356 = vpack.c.b16 %v330, %v329
      %v357 = vpack.c.b16 %v332, %v331
      %v358 = vpack.c.b16 %v334, %v333
      %v359 = vpack.c.b16 %v336, %v335
      %v360 = vpack.c.b16 %v338, %v337
      %v361 = vpack.c.b16 %v340, %v339
      %v362 = vpack.c.b16 %v342, %v341
      %v363 = vpack.c.b16 %v344, %v343
      %v364 = vpack.c.b16 %v346, %v345
      %v365 = vpack.c.b16 %v348, %v347
      %v366 = vpack.c.b16 %v350, %v349
      %v399 = vunpack.c.l.b16 %v271
      %v400 = vunpack.c.l.b16 %v272
      %v401 = vunpack.c.l.b16 %v273
      %v402 = vunpack.c.l.b16 %v274
      %v403 = vunpack.c.l.b16 %v275
      %v404 = vunpack.c.l.b16 %v276
      %v405 = vunpack.c.l.b16 %v277
      %v406 = vunpack.c.l.b16 %v278
      %v407 = vunpack.c.l.b16 %v279
      %v408 = vunpack.c.l.b16 %v280
      %v409 = vunpack.c.l.b16 %v281
      %v410 = vunpack.c.l.b16 %v282
      %v411 = vunpack.c.l.b16 %v283
      %v412 = vunpack.c.l.b16 %v284
      %v413 = vunpack.c.l.b16 %v285
      %v414 = vunpack.c.l.b16 %v286
      %v415 = vpack.c.b16 %v400, %v399
      %v416 = vpack.c.b16 %v402, %v401
      %v417 = vpack.c.b16 %v404, %v403
      %v418 = vpack.c.b16 %v406, %v405
      %v419 = vpack.c.b16 %v408, %v407
      %v420 = vpack.c.b16 %v410, %v409
      %v421 = vpack.c.b16 %v412, %v411
      %v422 = vpack.c.b16 %v414, %v413
      %431 = vmatprep.subr.bf16.mxu0 0
      %432 = vmatpush1.bf16.msra.mxu0 %v422
      %433 = vmatprep.subr.bf16.mxu0 0
      %434 = vmatpush1.bf16.msra.mxu0 %v421
      %435 = vmatprep.subr.bf16.mxu0 0
      %436 = vmatpush1.bf16.msra.mxu0 %v420
      %437 = vmatprep.subr.bf16.mxu0 0
      %438 = vmatpush1.bf16.msra.mxu0 %v419
      %439 = vmatprep.subr.bf16.mxu0 0
      %440 = vmatpush1.bf16.msra.mxu0 %v418
      %441 = vmatprep.subr.bf16.mxu0 0
      %442 = vmatpush1.bf16.msra.mxu0 %v417
      %443 = vmatprep.subr.bf16.mxu0 0
      %444 = vmatpush1.bf16.msra.mxu0 %v416
      %445 = vmatprep.subr.bf16.mxu0 0
      %446 = vmatpush1.bf16.msra.mxu0 %v415
      %447 = vmatprep.subr.bf16.mxu0 0
      %448 = vmatpush2.bf16.msra.mxu0 0
      %449 = vmatprep.subr.bf16.mxu0 0
      %450 = vmatpush2.bf16.msra.mxu0 0
      %451 = vmatprep.subr.bf16.mxu0 0
      %452 = vmatpush2.bf16.msra.mxu0 0
      %453 = vmatprep.subr.bf16.mxu0 0
      %454 = vmatpush2.bf16.msra.mxu0 0
      %455 = vmatprep.subr.bf16.mxu0 0
      %456 = vmatpush2.bf16.msra.mxu0 0
      %457 = vmatprep.subr.bf16.mxu0 0
      %458 = vmatpush2.bf16.msra.mxu0 0
      %459 = vmatprep.subr.bf16.mxu0 0
      %460 = vmatpush2.bf16.msra.mxu0 0
      %461 = vmatprep.subr.bf16.mxu0 0
      %462 = vmatpush2.bf16.msra.mxu0 0
      %463 = vmatprep.mubr.bf16.mxu0 0
      %464 = vmatmul.mubr.bf16.gmra.mxu0 %v351
      %v465 = vpop.f32.mrf.mxu0
      %v466 = vadd.f32 0.0, %v465
      %v467 = vpop.f32.mrf.mxu0
      %v468 = vpop.f32.mrf.mxu0
      %v469 = vadd.f32 0.0, %v468
      %v470 = vpop.f32.mrf.mxu0
      %471 = vmatprep.mubr.bf16.mxu0 0
      %472 = vmatmul.mubr.bf16.gmra.mxu0 %v352
      %v473 = vpop.f32.mrf.mxu0
      %v474 = vadd.f32 0.0, %v473
      %v475 = vpop.f32.mrf.mxu0
      %v476 = vpop.f32.mrf.mxu0
      %v477 = vadd.f32 0.0, %v476
      %v478 = vpop.f32.mrf.mxu0
      %479 = vmatprep.mubr.bf16.mxu0 0
      %480 = vmatmul.mubr.bf16.gmra.mxu0 %v353
      %v481 = vpop.f32.mrf.mxu0
      %v482 = vadd.f32 0.0, %v481
      %v483 = vpop.f32.mrf.mxu0
      %v484 = vpop.f32.mrf.mxu0
      %v485 = vadd.f32 0.0, %v484
      %v486 = vpop.f32.mrf.mxu0
      %487 = vmatprep.mubr.bf16.mxu0 0
      %488 = vmatmul.mubr.bf16.gmra.mxu0 %v354
      %v489 = vpop.f32.mrf.mxu0
      %v490 = vadd.f32 0.0, %v489
      %v491 = vpop.f32.mrf.mxu0
      %v492 = vpop.f32.mrf.mxu0
      %v493 = vadd.f32 0.0, %v492
      %v494 = vpop.f32.mrf.mxu0
      %495 = vmatprep.mubr.bf16.mxu0 0
      %496 = vmatmul.mubr.bf16.gmra.mxu0 %v355
      %v497 = vpop.f32.mrf.mxu0
      %v498 = vadd.f32 0.0, %v497
      %v499 = vpop.f32.mrf.mxu0
      %v500 = vpop.f32.mrf.mxu0
      %v501 = vadd.f32 0.0, %v500
      %v502 = vpop.f32.mrf.mxu0
      %503 = vmatprep.mubr.bf16.mxu0 0
      %504 = vmatmul.mubr.bf16.gmra.mxu0 %v356
      %v505 = vpop.f32.mrf.mxu0
      %v506 = vadd.f32 0.0, %v505
      %v507 = vpop.f32.mrf.mxu0
      %v508 = vpop.f32.mrf.mxu0
      %v509 = vadd.f32 0.0, %v508
      %v510 = vpop.f32.mrf.mxu0
      %511 = vmatprep.mubr.bf16.mxu0 0
      %512 = vmatmul.mubr.bf16.gmra.mxu0 %v357
      %v513 = vpop.f32.mrf.mxu0
      %v514 = vadd.f32 0.0, %v513
      %v515 = vpop.f32.mrf.mxu0
      %v516 = vpop.f32.mrf.mxu0
      %v517 = vadd.f32 0.0, %v516
      %v518 = vpop.f32.mrf.mxu0
      %519 = vmatprep.mubr.bf16.mxu0 0
      %520 = vmatmul.mubr.bf16.gmra.mxu0 %v358
      %v521 = vpop.f32.mrf.mxu0
      %v522 = vadd.f32 0.0, %v521
      %v523 = vpop.f32.mrf.mxu0
      %v524 = vpop.f32.mrf.mxu0
      %v525 = vadd.f32 0.0, %v524
      %v526 = vpop.f32.mrf.mxu0
      %527 = vmatprep.mubr.bf16.mxu0 0
      %528 = vmatmul.mubr.bf16.gmra.mxu0 %v359
      %v529 = vpop.f32.mrf.mxu0
      %v530 = vadd.f32 0.0, %v529
      %v531 = vpop.f32.mrf.mxu0
      %v532 = vpop.f32.mrf.mxu0
      %v533 = vadd.f32 0.0, %v532
      %v534 = vpop.f32.mrf.mxu0
      %535 = vmatprep.mubr.bf16.mxu0 0
      %536 = vmatmul.mubr.bf16.gmra.mxu0 %v360
      %v537 = vpop.f32.mrf.mxu0
      %v538 = vadd.f32 0.0, %v537
      %v539 = vpop.f32.mrf.mxu0
      %v540 = vpop.f32.mrf.mxu0
      %v541 = vadd.f32 0.0, %v540
      %v542 = vpop.f32.mrf.mxu0
      %543 = vmatprep.mubr.bf16.mxu0 0
      %544 = vmatmul.mubr.bf16.gmra.mxu0 %v361
      %v545 = vpop.f32.mrf.mxu0
      %v546 = vadd.f32 0.0, %v545
      %v547 = vpop.f32.mrf.mxu0
      %v548 = vpop.f32.mrf.mxu0
      %v549 = vadd.f32 0.0, %v548
      %v550 = vpop.f32.mrf.mxu0
      %551 = vmatprep.mubr.bf16.mxu0 0
      %552 = vmatmul.mubr.bf16.gmra.mxu0 %v362
      %v553 = vpop.f32.mrf.mxu0
      %v554 = vadd.f32 0.0, %v553
      %v555 = vpop.f32.mrf.mxu0
      %v556 = vpop.f32.mrf.mxu0
      %v557 = vadd.f32 0.0, %v556
      %v558 = vpop.f32.mrf.mxu0
      %559 = vmatprep.mubr.bf16.mxu0 0
      %560 = vmatmul.mubr.bf16.gmra.mxu0 %v363
      %v561 = vpop.f32.mrf.mxu0
      %v562 = vadd.f32 0.0, %v561
      %v563 = vpop.f32.mrf.mxu0
      %v564 = vpop.f32.mrf.mxu0
      %v565 = vadd.f32 0.0, %v564
      %v566 = vpop.f32.mrf.mxu0
      %567 = vmatprep.mubr.bf16.mxu0 0
      %568 = vmatmul.mubr.bf16.gmra.mxu0 %v364
      %v569 = vpop.f32.mrf.mxu0
      %v570 = vadd.f32 0.0, %v569
      %v571 = vpop.f32.mrf.mxu0
      %v572 = vpop.f32.mrf.mxu0
      %v573 = vadd.f32 0.0, %v572
      %v574 = vpop.f32.mrf.mxu0
      %575 = vmatprep.mubr.bf16.mxu0 0
      %576 = vmatmul.mubr.bf16.gmra.mxu0 %v365
      %v577 = vpop.f32.mrf.mxu0
      %v578 = vadd.f32 0.0, %v577
      %v579 = vpop.f32.mrf.mxu0
      %v580 = vpop.f32.mrf.mxu0
      %v581 = vadd.f32 0.0, %v580
      %v582 = vpop.f32.mrf.mxu0
      %583 = vmatprep.mubr.bf16.mxu0 0
      %584 = vmatmul.mubr.bf16.gmra.mxu0 %v366
      %v585 = vpop.f32.mrf.mxu0
      %v586 = vadd.f32 0.0, %v585
      %v587 = vpop.f32.mrf.mxu0
      %v588 = vpop.f32.mrf.mxu0
      %v589 = vadd.f32 0.0, %v588
      %v590 = vpop.f32.mrf.mxu0
      %591 = vdwg.mxu0
      %v592 = vadd.f32 %v239, %v466
      %v593 = vadd.f32 %v240, %v469
      %v594 = vadd.f32 %v241, %v474
      %v595 = vadd.f32 %v242, %v477
      %v596 = vadd.f32 %v243, %v482
      %v597 = vadd.f32 %v244, %v485
      %v598 = vadd.f32 %v245, %v490
      %v599 = vadd.f32 %v246, %v493
      %v600 = vadd.f32 %v247, %v498
      %v601 = vadd.f32 %v248, %v501
      %v602 = vadd.f32 %v249, %v506
      %v603 = vadd.f32 %v250, %v509
      %v604 = vadd.f32 %v251, %v514
      %v605 = vadd.f32 %v252, %v517
      %v606 = vadd.f32 %v253, %v522
      %v607 = vadd.f32 %v254, %v525
      %v608 = vadd.f32 %v255, %v530
      %v609 = vadd.f32 %v256, %v533
      %v610 = vadd.f32 %v257, %v538
      %v611 = vadd.f32 %v258, %v541
      %v612 = vadd.f32 %v259, %v546
      %v613 = vadd.f32 %v260, %v549
      %v614 = vadd.f32 %v261, %v554
      %v615 = vadd.f32 %v262, %v557
      %v616 = vadd.f32 %v263, %v562
      %v617 = vadd.f32 %v264, %v565
      %v618 = vadd.f32 %v265, %v570
      %v619 = vadd.f32 %v266, %v573
      %v620 = vadd.f32 %v267, %v578
      %v621 = vadd.f32 %v268, %v581
      %v622 = vadd.f32 %v269, %v586
      %v623 = vadd.f32 %v270, %v589
      %624 = vst [vmem:[#allocation2] sm:$0xff] %v592
      %625 = vst [vmem:[#allocation2 + $0x8] sm:$0xff] %v593
      %626 = vst [vmem:[#allocation2 + $0x10] sm:$0xff] %v594
      %627 = vst [vmem:[#allocation2 + $0x18] sm:$0xff] %v595
      %628 = vst [vmem:[#allocation2 + $0x20] sm:$0xff] %v596
      %629 = vst [vmem:[#allocation2 + $0x28] sm:$0xff] %v597
      %630 = vst [vmem:[#allocation2 + $0x30] sm:$0xff] %v598
      %631 = vst [vmem:[#allocation2 + $0x38] sm:$0xff] %v599
      %632 = vst [vmem:[#allocation2 + $0x40] sm:$0xff] %v600
      %633 = vst [vmem:[#allocation2 + $0x48] sm:$0xff] %v601
      %634 = vst [vmem:[#allocation2 + $0x50] sm:$0xff] %v602
      %635 = vst [vmem:[#allocation2 + $0x58] sm:$0xff] %v603
      %636 = vst [vmem:[#allocation2 + $0x60] sm:$0xff] %v604
      %637 = vst [vmem:[#allocation2 + $0x68] sm:$0xff] %v605
      %638 = vst [vmem:[#allocation2 + $0x70] sm:$0xff] %v606
      %639 = vst [vmem:[#allocation2 + $0x78] sm:$0xff] %v607
      %640 = vst [vmem:[#allocation2 + $0x80] sm:$0xff] %v608
      %641 = vst [vmem:[#allocation2 + $0x88] sm:$0xff] %v609
      %642 = vst [vmem:[#allocation2 + $0x90] sm:$0xff] %v610
      %643 = vst [vmem:[#allocation2 + $0x98] sm:$0xff] %v611
      %644 = vst [vmem:[#allocation2 + $0xa0] sm:$0xff] %v612
      %645 = vst [vmem:[#allocation2 + $0xa8] sm:$0xff] %v613
      %646 = vst [vmem:[#allocation2 + $0xb0] sm:$0xff] %v614
      %647 = vst [vmem:[#allocation2 + $0xb8] sm:$0xff] %v615
      %648 = vst [vmem:[#allocation2 + $0xc0] sm:$0xff] %v616
      %649 = vst [vmem:[#allocation2 + $0xc8] sm:$0xff] %v617
      %650 = vst [vmem:[#allocation2 + $0xd0] sm:$0xff] %v618
      %651 = vst [vmem:[#allocation2 + $0xd8] sm:$0xff] %v619
      %652 = vst [vmem:[#allocation2 + $0xe0] sm:$0xff] %v620
      %653 = vst [vmem:[#allocation2 + $0xe8] sm:$0xff] %v621
      %654 = vst [vmem:[#allocation2 + $0xf0] sm:$0xff] %v622
      %655 = vst [vmem:[#allocation2 + $0xf8] sm:$0xff] %v623
      %s656 = scalar_lea.vmem %s163, 144
      %v657 = vld [vmem:[%s656] sm:$0xf]
      %v658 = vld [vmem:[%s656 + $0x4] sm:$0xf]
      %v659 = vld [vmem:[%s656 + $0x8] sm:$0xf]
      %v660 = vld [vmem:[%s656 + $0xc] sm:$0xf]
      %v661 = vld [vmem:[%s656 + $0x10] sm:$0xf]
      %v662 = vld [vmem:[%s656 + $0x14] sm:$0xf]
      %v663 = vld [vmem:[%s656 + $0x18] sm:$0xf]
      %v664 = vld [vmem:[%s656 + $0x1c] sm:$0xf]
      %v665 = vld [vmem:[%s656 + $0x20] sm:$0xf]
      %v666 = vld [vmem:[%s656 + $0x24] sm:$0xf]
      %v667 = vld [vmem:[%s656 + $0x28] sm:$0xf]
      %v668 = vld [vmem:[%s656 + $0x2c] sm:$0xf]
      %v669 = vld [vmem:[%s656 + $0x30] sm:$0xf]
      %v670 = vld [vmem:[%s656 + $0x34] sm:$0xf]
      %v671 = vld [vmem:[%s656 + $0x38] sm:$0xf]
      %v672 = vld [vmem:[%s656 + $0x3c] sm:$0xf]
      %v673 = vld [vmem:[%s656 + $0x40] sm:$0xf]
      %v674 = vld [vmem:[%s656 + $0x44] sm:$0xf]
      %v675 = vld [vmem:[%s656 + $0x48] sm:$0xf]
      %v676 = vld [vmem:[%s656 + $0x4c] sm:$0xf]
      %v677 = vld [vmem:[%s656 + $0x50] sm:$0xf]
      %v678 = vld [vmem:[%s656 + $0x54] sm:$0xf]
      %v679 = vld [vmem:[%s656 + $0x58] sm:$0xf]
      %v680 = vld [vmem:[%s656 + $0x5c] sm:$0xf]
      %v681 = vld [vmem:[%s656 + $0x60] sm:$0xf]
      %v682 = vld [vmem:[%s656 + $0x64] sm:$0xf]
      %v683 = vld [vmem:[%s656 + $0x68] sm:$0xf]
      %v684 = vld [vmem:[%s656 + $0x6c] sm:$0xf]
      %v685 = vld [vmem:[%s656 + $0x70] sm:$0xf]
      %v686 = vld [vmem:[%s656 + $0x74] sm:$0xf]
      %v687 = vld [vmem:[%s656 + $0x78] sm:$0xf]
      %v688 = vld [vmem:[%s656 + $0x7c] sm:$0xf]
      %v689 = vld [vmem:[#allocation2] sm:$0xff]
      %v690 = vld [vmem:[#allocation2 + $0x8] sm:$0xff]
      %v691 = vld [vmem:[#allocation2 + $0x10] sm:$0xff]
      %v692 = vld [vmem:[#allocation2 + $0x18] sm:$0xff]
      %v693 = vld [vmem:[#allocation2 + $0x20] sm:$0xff]
      %v694 = vld [vmem:[#allocation2 + $0x28] sm:$0xff]
      %v695 = vld [vmem:[#allocation2 + $0x30] sm:$0xff]
      %v696 = vld [vmem:[#allocation2 + $0x38] sm:$0xff]
      %v697 = vld [vmem:[#allocation2 + $0x40] sm:$0xff]
      %v698 = vld [vmem:[#allocation2 + $0x48] sm:$0xff]
      %v699 = vld [vmem:[#allocation2 + $0x50] sm:$0xff]
      %v700 = vld [vmem:[#allocation2 + $0x58] sm:$0xff]
      %v701 = vld [vmem:[#allocation2 + $0x60] sm:$0xff]
      %v702 = vld [vmem:[#allocation2 + $0x68] sm:$0xff]
      %v703 = vld [vmem:[#allocation2 + $0x70] sm:$0xff]
      %v704 = vld [vmem:[#allocation2 + $0x78] sm:$0xff]
      %v705 = vld [vmem:[#allocation2 + $0x80] sm:$0xff]
      %v706 = vld [vmem:[#allocation2 + $0x88] sm:$0xff]
      %v707 = vld [vmem:[#allocation2 + $0x90] sm:$0xff]
      %v708 = vld [vmem:[#allocation2 + $0x98] sm:$0xff]
      %v709 = vld [vmem:[#allocation2 + $0xa0] sm:$0xff]
      %v710 = vld [vmem:[#allocation2 + $0xa8] sm:$0xff]
      %v711 = vld [vmem:[#allocation2 + $0xb0] sm:$0xff]
      %v712 = vld [vmem:[#allocation2 + $0xb8] sm:$0xff]
      %v713 = vld [vmem:[#allocation2 + $0xc0] sm:$0xff]
      %v714 = vld [vmem:[#allocation2 + $0xc8] sm:$0xff]
      %v715 = vld [vmem:[#allocation2 + $0xd0] sm:$0xff]
      %v716 = vld [vmem:[#allocation2 + $0xd8] sm:$0xff]
      %v717 = vld [vmem:[#allocation2 + $0xe0] sm:$0xff]
      %v718 = vld [vmem:[#allocation2 + $0xe8] sm:$0xff]
      %v719 = vld [vmem:[#allocation2 + $0xf0] sm:$0xff]
      %v720 = vld [vmem:[#allocation2 + $0xf8] sm:$0xff]
      %s721 = scalar_lea.vmem %s1, 64
      %v722 = vld [vmem:[%s721] sm:$0xf]
      %v723 = vld [vmem:[%s721 + $0x4] sm:$0xf]
      %v724 = vld [vmem:[%s721 + $0x8] sm:$0xf]
      %v725 = vld [vmem:[%s721 + $0xc] sm:$0xf]
      %v726 = vld [vmem:[%s721 + $0x10] sm:$0xf]
      %v727 = vld [vmem:[%s721 + $0x14] sm:$0xf]
      %v728 = vld [vmem:[%s721 + $0x18] sm:$0xf]
      %v729 = vld [vmem:[%s721 + $0x1c] sm:$0xf]
      %v730 = vld [vmem:[%s721 + $0x20] sm:$0xf]
      %v731 = vld [vmem:[%s721 + $0x24] sm:$0xf]
      %v732 = vld [vmem:[%s721 + $0x28] sm:$0xf]
      %v733 = vld [vmem:[%s721 + $0x2c] sm:$0xf]
      %v734 = vld [vmem:[%s721 + $0x30] sm:$0xf]
      %v735 = vld [vmem:[%s721 + $0x34] sm:$0xf]
      %v736 = vld [vmem:[%s721 + $0x38] sm:$0xf]
      %v737 = vld [vmem:[%s721 + $0x3c] sm:$0xf]
      %v770 = vunpack.c.l.b16 %v657
      %v771 = vunpack.c.l.b16 %v658
      %v772 = vunpack.c.l.b16 %v659
      %v773 = vunpack.c.l.b16 %v660
      %v774 = vunpack.c.l.b16 %v661
      %v775 = vunpack.c.l.b16 %v662
      %v776 = vunpack.c.l.b16 %v663
      %v777 = vunpack.c.l.b16 %v664
      %v778 = vunpack.c.l.b16 %v665
      %v779 = vunpack.c.l.b16 %v666
      %v780 = vunpack.c.l.b16 %v667
      %v781 = vunpack.c.l.b16 %v668
      %v782 = vunpack.c.l.b16 %v669
      %v783 = vunpack.c.l.b16 %v670
      %v784 = vunpack.c.l.b16 %v671
      %v785 = vunpack.c.l.b16 %v672
      %v786 = vunpack.c.l.b16 %v673
      %v787 = vunpack.c.l.b16 %v674
      %v788 = vunpack.c.l.b16 %v675
      %v789 = vunpack.c.l.b16 %v676
      %v790 = vunpack.c.l.b16 %v677
      %v791 = vunpack.c.l.b16 %v678
      %v792 = vunpack.c.l.b16 %v679
      %v793 = vunpack.c.l.b16 %v680
      %v794 = vunpack.c.l.b16 %v681
      %v795 = vunpack.c.l.b16 %v682
      %v796 = vunpack.c.l.b16 %v683
      %v797 = vunpack.c.l.b16 %v684
      %v798 = vunpack.c.l.b16 %v685
      %v799 = vunpack.c.l.b16 %v686
      %v800 = vunpack.c.l.b16 %v687
      %v801 = vunpack.c.l.b16 %v688
      %v802 = vpack.c.b16 %v771, %v770
      %v803 = vpack.c.b16 %v773, %v772
      %v804 = vpack.c.b16 %v775, %v774
      %v805 = vpack.c.b16 %v777, %v776
      %v806 = vpack.c.b16 %v779, %v778
      %v807 = vpack.c.b16 %v781, %v780
      %v808 = vpack.c.b16 %v783, %v782
      %v809 = vpack.c.b16 %v785, %v784
      %v810 = vpack.c.b16 %v787, %v786
      %v811 = vpack.c.b16 %v789, %v788
      %v812 = vpack.c.b16 %v791, %v790
      %v813 = vpack.c.b16 %v793, %v792
      %v814 = vpack.c.b16 %v795, %v794
      %v815 = vpack.c.b16 %v797, %v796
      %v816 = vpack.c.b16 %v799, %v798
      %v817 = vpack.c.b16 %v801, %v800
      %v850 = vunpack.c.l.b16 %v722
      %v851 = vunpack.c.l.b16 %v723
      %v852 = vunpack.c.l.b16 %v724
      %v853 = vunpack.c.l.b16 %v725
      %v854 = vunpack.c.l.b16 %v726
      %v855 = vunpack.c.l.b16 %v727
      %v856 = vunpack.c.l.b16 %v728
      %v857 = vunpack.c.l.b16 %v729
      %v858 = vunpack.c.l.b16 %v730
      %v859 = vunpack.c.l.b16 %v731
      %v860 = vunpack.c.l.b16 %v732
      %v861 = vunpack.c.l.b16 %v733
      %v862 = vunpack.c.l.b16 %v734
      %v863 = vunpack.c.l.b16 %v735
      %v864 = vunpack.c.l.b16 %v736
      %v865 = vunpack.c.l.b16 %v737
      %v866 = vpack.c.b16 %v851, %v850
      %v867 = vpack.c.b16 %v853, %v852
      %v868 = vpack.c.b16 %v855, %v854
      %v869 = vpack.c.b16 %v857, %v856
      %v870 = vpack.c.b16 %v859, %v858
      %v871 = vpack.c.b16 %v861, %v860
      %v872 = vpack.c.b16 %v863, %v862
      %v873 = vpack.c.b16 %v865, %v864
      %882 = vmatprep.subr.bf16.mxu0 0
      %883 = vmatpush1.bf16.msra.mxu0 %v873
      %884 = vmatprep.subr.bf16.mxu0 0
      %885 = vmatpush1.bf16.msra.mxu0 %v872
      %886 = vmatprep.subr.bf16.mxu0 0
      %887 = vmatpush1.bf16.msra.mxu0 %v871
      %888 = vmatprep.subr.bf16.mxu0 0
      %889 = vmatpush1.bf16.msra.mxu0 %v870
      %890 = vmatprep.subr.bf16.mxu0 0
      %891 = vmatpush1.bf16.msra.mxu0 %v869
      %892 = vmatprep.subr.bf16.mxu0 0
      %893 = vmatpush1.bf16.msra.mxu0 %v868
      %894 = vmatprep.subr.bf16.mxu0 0
      %895 = vmatpush1.bf16.msra.mxu0 %v867
      %896 = vmatprep.subr.bf16.mxu0 0
      %897 = vmatpush1.bf16.msra.mxu0 %v866
      %898 = vmatprep.subr.bf16.mxu0 0
      %899 = vmatpush2.bf16.msra.mxu0 0
      %900 = vmatprep.subr.bf16.mxu0 0
      %901 = vmatpush2.bf16.msra.mxu0 0
      %902 = vmatprep.subr.bf16.mxu0 0
      %903 = vmatpush2.bf16.msra.mxu0 0
      %904 = vmatprep.subr.bf16.mxu0 0
      %905 = vmatpush2.bf16.msra.mxu0 0
      %906 = vmatprep.subr.bf16.mxu0 0
      %907 = vmatpush2.bf16.msra.mxu0 0
      %908 = vmatprep.subr.bf16.mxu0 0
      %909 = vmatpush2.bf16.msra.mxu0 0
      %910 = vmatprep.subr.bf16.mxu0 0
      %911 = vmatpush2.bf16.msra.mxu0 0
      %912 = vmatprep.subr.bf16.mxu0 0
      %913 = vmatpush2.bf16.msra.mxu0 0
      %914 = vmatprep.mubr.bf16.mxu0 0
      %915 = vmatmul.mubr.bf16.gmra.mxu0 %v802
      %v916 = vpop.f32.mrf.mxu0
      %v917 = vadd.f32 0.0, %v916
      %v918 = vpop.f32.mrf.mxu0
      %v919 = vpop.f32.mrf.mxu0
      %v920 = vadd.f32 0.0, %v919
      %v921 = vpop.f32.mrf.mxu0
      %922 = vmatprep.mubr.bf16.mxu0 0
      %923 = vmatmul.mubr.bf16.gmra.mxu0 %v803
      %v924 = vpop.f32.mrf.mxu0
      %v925 = vadd.f32 0.0, %v924
      %v926 = vpop.f32.mrf.mxu0
      %v927 = vpop.f32.mrf.mxu0
      %v928 = vadd.f32 0.0, %v927
      %v929 = vpop.f32.mrf.mxu0
      %930 = vmatprep.mubr.bf16.mxu0 0
      %931 = vmatmul.mubr.bf16.gmra.mxu0 %v804
      %v932 = vpop.f32.mrf.mxu0
      %v933 = vadd.f32 0.0, %v932
      %v934 = vpop.f32.mrf.mxu0
      %v935 = vpop.f32.mrf.mxu0
      %v936 = vadd.f32 0.0, %v935
      %v937 = vpop.f32.mrf.mxu0
      %938 = vmatprep.mubr.bf16.mxu0 0
      %939 = vmatmul.mubr.bf16.gmra.mxu0 %v805
      %v940 = vpop.f32.mrf.mxu0
      %v941 = vadd.f32 0.0, %v940
      %v942 = vpop.f32.mrf.mxu0
      %v943 = vpop.f32.mrf.mxu0
      %v944 = vadd.f32 0.0, %v943
      %v945 = vpop.f32.mrf.mxu0
      %946 = vmatprep.mubr.bf16.mxu0 0
      %947 = vmatmul.mubr.bf16.gmra.mxu0 %v806
      %v948 = vpop.f32.mrf.mxu0
      %v949 = vadd.f32 0.0, %v948
      %v950 = vpop.f32.mrf.mxu0
      %v951 = vpop.f32.mrf.mxu0
      %v952 = vadd.f32 0.0, %v951
      %v953 = vpop.f32.mrf.mxu0
      %954 = vmatprep.mubr.bf16.mxu0 0
      %955 = vmatmul.mubr.bf16.gmra.mxu0 %v807
      %v956 = vpop.f32.mrf.mxu0
      %v957 = vadd.f32 0.0, %v956
      %v958 = vpop.f32.mrf.mxu0
      %v959 = vpop.f32.mrf.mxu0
      %v960 = vadd.f32 0.0, %v959
      %v961 = vpop.f32.mrf.mxu0
      %962 = vmatprep.mubr.bf16.mxu0 0
      %963 = vmatmul.mubr.bf16.gmra.mxu0 %v808
      %v964 = vpop.f32.mrf.mxu0
      %v965 = vadd.f32 0.0, %v964
      %v966 = vpop.f32.mrf.mxu0
      %v967 = vpop.f32.mrf.mxu0
      %v968 = vadd.f32 0.0, %v967
      %v969 = vpop.f32.mrf.mxu0
      %970 = vmatprep.mubr.bf16.mxu0 0
      %971 = vmatmul.mubr.bf16.gmra.mxu0 %v809
      %v972 = vpop.f32.mrf.mxu0
      %v973 = vadd.f32 0.0, %v972
      %v974 = vpop.f32.mrf.mxu0
      %v975 = vpop.f32.mrf.mxu0
      %v976 = vadd.f32 0.0, %v975
      %v977 = vpop.f32.mrf.mxu0
      %978 = vmatprep.mubr.bf16.mxu0 0
      %979 = vmatmul.mubr.bf16.gmra.mxu0 %v810
      %v980 = vpop.f32.mrf.mxu0
      %v981 = vadd.f32 0.0, %v980
      %v982 = vpop.f32.mrf.mxu0
      %v983 = vpop.f32.mrf.mxu0
      %v984 = vadd.f32 0.0, %v983
      %v985 = vpop.f32.mrf.mxu0
      %986 = vmatprep.mubr.bf16.mxu0 0
      %987 = vmatmul.mubr.bf16.gmra.mxu0 %v811
      %v988 = vpop.f32.mrf.mxu0
      %v989 = vadd.f32 0.0, %v988
      %v990 = vpop.f32.mrf.mxu0
      %v991 = vpop.f32.mrf.mxu0
      %v992 = vadd.f32 0.0, %v991
      %v993 = vpop.f32.mrf.mxu0
      %994 = vmatprep.mubr.bf16.mxu0 0
      %995 = vmatmul.mubr.bf16.gmra.mxu0 %v812
      %v996 = vpop.f32.mrf.mxu0
      %v997 = vadd.f32 0.0, %v996
      %v998 = vpop.f32.mrf.mxu0
      %v999 = vpop.f32.mrf.mxu0
      %v1000 = vadd.f32 0.0, %v999
      %v1001 = vpop.f32.mrf.mxu0
      %1002 = vmatprep.mubr.bf16.mxu0 0
      %1003 = vmatmul.mubr.bf16.gmra.mxu0 %v813
      %v1004 = vpop.f32.mrf.mxu0
      %v1005 = vadd.f32 0.0, %v1004
      %v1006 = vpop.f32.mrf.mxu0
      %v1007 = vpop.f32.mrf.mxu0
      %v1008 = vadd.f32 0.0, %v1007
      %v1009 = vpop.f32.mrf.mxu0
      %1010 = vmatprep.mubr.bf16.mxu0 0
      %1011 = vmatmul.mubr.bf16.gmra.mxu0 %v814
      %v1012 = vpop.f32.mrf.mxu0
      %v1013 = vadd.f32 0.0, %v1012
      %v1014 = vpop.f32.mrf.mxu0
      %v1015 = vpop.f32.mrf.mxu0
      %v1016 = vadd.f32 0.0, %v1015
      %v1017 = vpop.f32.mrf.mxu0
      %1018 = vmatprep.mubr.bf16.mxu0 0
      %1019 = vmatmul.mubr.bf16.gmra.mxu0 %v815
      %v1020 = vpop.f32.mrf.mxu0
      %v1021 = vadd.f32 0.0, %v1020
      %v1022 = vpop.f32.mrf.mxu0
      %v1023 = vpop.f32.mrf.mxu0
      %v1024 = vadd.f32 0.0, %v1023
      %v1025 = vpop.f32.mrf.mxu0
      %1026 = vmatprep.mubr.bf16.mxu0 0
      %1027 = vmatmul.mubr.bf16.gmra.mxu0 %v816
      %v1028 = vpop.f32.mrf.mxu0
      %v1029 = vadd.f32 0.0, %v1028
      %v1030 = vpop.f32.mrf.mxu0
      %v1031 = vpop.f32.mrf.mxu0
      %v1032 = vadd.f32 0.0, %v1031
      %v1033 = vpop.f32.mrf.mxu0
      %1034 = vmatprep.mubr.bf16.mxu0 0
      %1035 = vmatmul.mubr.bf16.gmra.mxu0 %v817
      %v1036 = vpop.f32.mrf.mxu0
      %v1037 = vadd.f32 0.0, %v1036
      %v1038 = vpop.f32.mrf.mxu0
      %v1039 = vpop.f32.mrf.mxu0
      %v1040 = vadd.f32 0.0, %v1039
      %v1041 = vpop.f32.mrf.mxu0
      %1042 = vdwg.mxu0
      %v1043 = vadd.f32 %v689, %v917
      %v1044 = vadd.f32 %v690, %v920
      %v1045 = vadd.f32 %v691, %v925
      %v1046 = vadd.f32 %v692, %v928
      %v1047 = vadd.f32 %v693, %v933
      %v1048 = vadd.f32 %v694, %v936
      %v1049 = vadd.f32 %v695, %v941
      %v1050 = vadd.f32 %v696, %v944
      %v1051 = vadd.f32 %v697, %v949
      %v1052 = vadd.f32 %v698, %v952
      %v1053 = vadd.f32 %v699, %v957
      %v1054 = vadd.f32 %v700, %v960
      %v1055 = vadd.f32 %v701, %v965
      %v1056 = vadd.f32 %v702, %v968
      %v1057 = vadd.f32 %v703, %v973
      %v1058 = vadd.f32 %v704, %v976
      %v1059 = vadd.f32 %v705, %v981
      %v1060 = vadd.f32 %v706, %v984
      %v1061 = vadd.f32 %v707, %v989
      %v1062 = vadd.f32 %v708, %v992
      %v1063 = vadd.f32 %v709, %v997
      %v1064 = vadd.f32 %v710, %v1000
      %v1065 = vadd.f32 %v711, %v1005
      %v1066 = vadd.f32 %v712, %v1008
      %v1067 = vadd.f32 %v713, %v1013
      %v1068 = vadd.f32 %v714, %v1016
      %v1069 = vadd.f32 %v715, %v1021
      %v1070 = vadd.f32 %v716, %v1024
      %v1071 = vadd.f32 %v717, %v1029
      %v1072 = vadd.f32 %v718, %v1032
      %v1073 = vadd.f32 %v719, %v1037
      %v1074 = vadd.f32 %v720, %v1040
      %1075 = vst [vmem:[#allocation2] sm:$0xff] %v1043
      %1076 = vst [vmem:[#allocation2 + $0x8] sm:$0xff] %v1044
      %1077 = vst [vmem:[#allocation2 + $0x10] sm:$0xff] %v1045
      %1078 = vst [vmem:[#allocation2 + $0x18] sm:$0xff] %v1046
      %1079 = vst [vmem:[#allocation2 + $0x20] sm:$0xff] %v1047
      %1080 = vst [vmem:[#allocation2 + $0x28] sm:$0xff] %v1048
      %1081 = vst [vmem:[#allocation2 + $0x30] sm:$0xff] %v1049
      %1082 = vst [vmem:[#allocation2 + $0x38] sm:$0xff] %v1050
      %1083 = vst [vmem:[#allocation2 + $0x40] sm:$0xff] %v1051
      %1084 = vst [vmem:[#allocation2 + $0x48] sm:$0xff] %v1052
      %1085 = vst [vmem:[#allocation2 + $0x50] sm:$0xff] %v1053
      %1086 = vst [vmem:[#allocation2 + $0x58] sm:$0xff] %v1054
      %1087 = vst [vmem:[#allocation2 + $0x60] sm:$0xff] %v1055
      %1088 = vst [vmem:[#allocation2 + $0x68] sm:$0xff] %v1056
      %1089 = vst [vmem:[#allocation2 + $0x70] sm:$0xff] %v1057
      %1090 = vst [vmem:[#allocation2 + $0x78] sm:$0xff] %v1058
      %1091 = vst [vmem:[#allocation2 + $0x80] sm:$0xff] %v1059
      %1092 = vst [vmem:[#allocation2 + $0x88] sm:$0xff] %v1060
      %1093 = vst [vmem:[#allocation2 + $0x90] sm:$0xff] %v1061
      %1094 = vst [vmem:[#allocation2 + $0x98] sm:$0xff] %v1062
      %1095 = vst [vmem:[#allocation2 + $0xa0] sm:$0xff] %v1063
      %1096 = vst [vmem:[#allocation2 + $0xa8] sm:$0xff] %v1064
      %1097 = vst [vmem:[#allocation2 + $0xb0] sm:$0xff] %v1065
      %1098 = vst [vmem:[#allocation2 + $0xb8] sm:$0xff] %v1066
      %1099 = vst [vmem:[#allocation2 + $0xc0] sm:$0xff] %v1067
      %1100 = vst [vmem:[#allocation2 + $0xc8] sm:$0xff] %v1068
      %1101 = vst [vmem:[#allocation2 + $0xd0] sm:$0xff] %v1069
      %1102 = vst [vmem:[#allocation2 + $0xd8] sm:$0xff] %v1070
      %1103 = vst [vmem:[#allocation2 + $0xe0] sm:$0xff] %v1071
      %1104 = vst [vmem:[#allocation2 + $0xe8] sm:$0xff] %v1072
      %1105 = vst [vmem:[#allocation2 + $0xf0] sm:$0xff] %v1073
      %1106 = vst [vmem:[#allocation2 + $0xf8] sm:$0xff] %v1074
      %s1107 = scalar_lea.vmem %s163, 288
      %v1108 = vld [vmem:[%s1107] sm:$0xf]
      %v1109 = vld [vmem:[%s1107 + $0x4] sm:$0xf]
      %v1110 = vld [vmem:[%s1107 + $0x8] sm:$0xf]
      %v1111 = vld [vmem:[%s1107 + $0xc] sm:$0xf]
      %v1112 = vld [vmem:[%s1107 + $0x10] sm:$0xf]
      %v1113 = vld [vmem:[%s1107 + $0x14] sm:$0xf]
      %v1114 = vld [vmem:[%s1107 + $0x18] sm:$0xf]
      %v1115 = vld [vmem:[%s1107 + $0x1c] sm:$0xf]
      %v1116 = vld [vmem:[%s1107 + $0x20] sm:$0xf]
      %v1117 = vld [vmem:[%s1107 + $0x24] sm:$0xf]
      %v1118 = vld [vmem:[%s1107 + $0x28] sm:$0xf]
      %v1119 = vld [vmem:[%s1107 + $0x2c] sm:$0xf]
      %v1120 = vld [vmem:[%s1107 + $0x30] sm:$0xf]
      %v1121 = vld [vmem:[%s1107 + $0x34] sm:$0xf]
      %v1122 = vld [vmem:[%s1107 + $0x38] sm:$0xf]
      %v1123 = vld [vmem:[%s1107 + $0x3c] sm:$0xf]
      %v1124 = vld [vmem:[%s1107 + $0x40] sm:$0xf]
      %v1125 = vld [vmem:[%s1107 + $0x44] sm:$0xf]
      %v1126 = vld [vmem:[%s1107 + $0x48] sm:$0xf]
      %v1127 = vld [vmem:[%s1107 + $0x4c] sm:$0xf]
      %v1128 = vld [vmem:[%s1107 + $0x50] sm:$0xf]
      %v1129 = vld [vmem:[%s1107 + $0x54] sm:$0xf]
      %v1130 = vld [vmem:[%s1107 + $0x58] sm:$0xf]
      %v1131 = vld [vmem:[%s1107 + $0x5c] sm:$0xf]
      %v1132 = vld [vmem:[%s1107 + $0x60] sm:$0xf]
      %v1133 = vld [vmem:[%s1107 + $0x64] sm:$0xf]
      %v1134 = vld [vmem:[%s1107 + $0x68] sm:$0xf]
      %v1135 = vld [vmem:[%s1107 + $0x6c] sm:$0xf]
      %v1136 = vld [vmem:[%s1107 + $0x70] sm:$0xf]
      %v1137 = vld [vmem:[%s1107 + $0x74] sm:$0xf]
      %v1138 = vld [vmem:[%s1107 + $0x78] sm:$0xf]
      %v1139 = vld [vmem:[%s1107 + $0x7c] sm:$0xf]
      %v1140 = vld [vmem:[#allocation2] sm:$0xff]
      %v1141 = vld [vmem:[#allocation2 + $0x8] sm:$0xff]
      %v1142 = vld [vmem:[#allocation2 + $0x10] sm:$0xff]
      %v1143 = vld [vmem:[#allocation2 + $0x18] sm:$0xff]
      %v1144 = vld [vmem:[#allocation2 + $0x20] sm:$0xff]
      %v1145 = vld [vmem:[#allocation2 + $0x28] sm:$0xff]
      %v1146 = vld [vmem:[#allocation2 + $0x30] sm:$0xff]
      %v1147 = vld [vmem:[#allocation2 + $0x38] sm:$0xff]
      %v1148 = vld [vmem:[#allocation2 + $0x40] sm:$0xff]
      %v1149 = vld [vmem:[#allocation2 + $0x48] sm:$0xff]
      %v1150 = vld [vmem:[#allocation2 + $0x50] sm:$0xff]
      %v1151 = vld [vmem:[#allocation2 + $0x58] sm:$0xff]
      %v1152 = vld [vmem:[#allocation2 + $0x60] sm:$0xff]
      %v1153 = vld [vmem:[#allocation2 + $0x68] sm:$0xff]
      %v1154 = vld [vmem:[#allocation2 + $0x70] sm:$0xff]
      %v1155 = vld [vmem:[#allocation2 + $0x78] sm:$0xff]
      %v1156 = vld [vmem:[#allocation2 + $0x80] sm:$0xff]
      %v1157 = vld [vmem:[#allocation2 + $0x88] sm:$0xff]
      %v1158 = vld [vmem:[#allocation2 + $0x90] sm:$0xff]
      %v1159 = vld [vmem:[#allocation2 + $0x98] sm:$0xff]
      %v1160 = vld [vmem:[#allocation2 + $0xa0] sm:$0xff]
      %v1161 = vld [vmem:[#allocation2 + $0xa8] sm:$0xff]
      %v1162 = vld [vmem:[#allocation2 + $0xb0] sm:$0xff]
      %v1163 = vld [vmem:[#allocation2 + $0xb8] sm:$0xff]
      %v1164 = vld [vmem:[#allocation2 + $0xc0] sm:$0xff]
      %v1165 = vld [vmem:[#allocation2 + $0xc8] sm:$0xff]
      %v1166 = vld [vmem:[#allocation2 + $0xd0] sm:$0xff]
      %v1167 = vld [vmem:[#allocation2 + $0xd8] sm:$0xff]
      %v1168 = vld [vmem:[#allocation2 + $0xe0] sm:$0xff]
      %v1169 = vld [vmem:[#allocation2 + $0xe8] sm:$0xff]
      %v1170 = vld [vmem:[#allocation2 + $0xf0] sm:$0xff]
      %v1171 = vld [vmem:[#allocation2 + $0xf8] sm:$0xff]
      %s1172 = scalar_lea.vmem %s1, 128
      %v1173 = vld [vmem:[%s1172] sm:$0xf]
      %v1174 = vld [vmem:[%s1172 + $0x4] sm:$0xf]
      %v1175 = vld [vmem:[%s1172 + $0x8] sm:$0xf]
      %v1176 = vld [vmem:[%s1172 + $0xc] sm:$0xf]
      %v1177 = vld [vmem:[%s1172 + $0x10] sm:$0xf]
      %v1178 = vld [vmem:[%s1172 + $0x14] sm:$0xf]
      %v1179 = vld [vmem:[%s1172 + $0x18] sm:$0xf]
      %v1180 = vld [vmem:[%s1172 + $0x1c] sm:$0xf]
      %v1181 = vld [vmem:[%s1172 + $0x20] sm:$0xf]
      %v1182 = vld [vmem:[%s1172 + $0x24] sm:$0xf]
      %v1183 = vld [vmem:[%s1172 + $0x28] sm:$0xf]
      %v1184 = vld [vmem:[%s1172 + $0x2c] sm:$0xf]
      %v1185 = vld [vmem:[%s1172 + $0x30] sm:$0xf]
      %v1186 = vld [vmem:[%s1172 + $0x34] sm:$0xf]
      %v1187 = vld [vmem:[%s1172 + $0x38] sm:$0xf]
      %v1188 = vld [vmem:[%s1172 + $0x3c] sm:$0xf]
      %v1221 = vunpack.c.l.b16 %v1108
      %v1222 = vunpack.c.l.b16 %v1109
      %v1223 = vunpack.c.l.b16 %v1110
      %v1224 = vunpack.c.l.b16 %v1111
      %v1225 = vunpack.c.l.b16 %v1112
      %v1226 = vunpack.c.l.b16 %v1113
      %v1227 = vunpack.c.l.b16 %v1114
      %v1228 = vunpack.c.l.b16 %v1115
      %v1229 = vunpack.c.l.b16 %v1116
      %v1230 = vunpack.c.l.b16 %v1117
      %v1231 = vunpack.c.l.b16 %v1118
      %v1232 = vunpack.c.l.b16 %v1119
      %v1233 = vunpack.c.l.b16 %v1120
      %v1234 = vunpack.c.l.b16 %v1121
      %v1235 = vunpack.c.l.b16 %v1122
      %v1236 = vunpack.c.l.b16 %v1123
      %v1237 = vunpack.c.l.b16 %v1124
      %v1238 = vunpack.c.l.b16 %v1125
      %v1239 = vunpack.c.l.b16 %v1126
      %v1240 = vunpack.c.l.b16 %v1127
      %v1241 = vunpack.c.l.b16 %v1128
      %v1242 = vunpack.c.l.b16 %v1129
      %v1243 = vunpack.c.l.b16 %v1130
      %v1244 = vunpack.c.l.b16 %v1131
      %v1245 = vunpack.c.l.b16 %v1132
      %v1246 = vunpack.c.l.b16 %v1133
      %v1247 = vunpack.c.l.b16 %v1134
      %v1248 = vunpack.c.l.b16 %v1135
      %v1249 = vunpack.c.l.b16 %v1136
      %v1250 = vunpack.c.l.b16 %v1137
      %v1251 = vunpack.c.l.b16 %v1138
      %v1252 = vunpack.c.l.b16 %v1139
      %v1253 = vpack.c.b16 %v1222, %v1221
      %v1254 = vpack.c.b16 %v1224, %v1223
      %v1255 = vpack.c.b16 %v1226, %v1225
      %v1256 = vpack.c.b16 %v1228, %v1227
      %v1257 = vpack.c.b16 %v1230, %v1229
      %v1258 = vpack.c.b16 %v1232, %v1231
      %v1259 = vpack.c.b16 %v1234, %v1233
      %v1260 = vpack.c.b16 %v1236, %v1235
      %v1261 = vpack.c.b16 %v1238, %v1237
      %v1262 = vpack.c.b16 %v1240, %v1239
      %v1263 = vpack.c.b16 %v1242, %v1241
      %v1264 = vpack.c.b16 %v1244, %v1243
      %v1265 = vpack.c.b16 %v1246, %v1245
      %v1266 = vpack.c.b16 %v1248, %v1247
      %v1267 = vpack.c.b16 %v1250, %v1249
      %v1268 = vpack.c.b16 %v1252, %v1251
      %v1301 = vunpack.c.l.b16 %v1173
      %v1302 = vunpack.c.l.b16 %v1174
      %v1303 = vunpack.c.l.b16 %v1175
      %v1304 = vunpack.c.l.b16 %v1176
      %v1305 = vunpack.c.l.b16 %v1177
      %v1306 = vunpack.c.l.b16 %v1178
      %v1307 = vunpack.c.l.b16 %v1179
      %v1308 = vunpack.c.l.b16 %v1180
      %v1309 = vunpack.c.l.b16 %v1181
      %v1310 = vunpack.c.l.b16 %v1182
      %v1311 = vunpack.c.l.b16 %v1183
      %v1312 = vunpack.c.l.b16 %v1184
      %v1313 = vunpack.c.l.b16 %v1185
      %v1314 = vunpack.c.l.b16 %v1186
      %v1315 = vunpack.c.l.b16 %v1187
      %v1316 = vunpack.c.l.b16 %v1188
      %v1317 = vpack.c.b16 %v1302, %v1301
      %v1318 = vpack.c.b16 %v1304, %v1303
      %v1319 = vpack.c.b16 %v1306, %v1305
      %v1320 = vpack.c.b16 %v1308, %v1307
      %v1321 = vpack.c.b16 %v1310, %v1309
      %v1322 = vpack.c.b16 %v1312, %v1311
      %v1323 = vpack.c.b16 %v1314, %v1313
      %v1324 = vpack.c.b16 %v1316, %v1315
      %1333 = vmatprep.subr.bf16.mxu0 0
      %1334 = vmatpush1.bf16.msra.mxu0 %v1324
      %1335 = vmatprep.subr.bf16.mxu0 0
      %1336 = vmatpush1.bf16.msra.mxu0 %v1323
      %1337 = vmatprep.subr.bf16.mxu0 0
      %1338 = vmatpush1.bf16.msra.mxu0 %v1322
      %1339 = vmatprep.subr.bf16.mxu0 0
      %1340 = vmatpush1.bf16.msra.mxu0 %v1321
      %1341 = vmatprep.subr.bf16.mxu0 0
      %1342 = vmatpush1.bf16.msra.mxu0 %v1320
      %1343 = vmatprep.subr.bf16.mxu0 0
      %1344 = vmatpush1.bf16.msra.mxu0 %v1319
      %1345 = vmatprep.subr.bf16.mxu0 0
      %1346 = vmatpush1.bf16.msra.mxu0 %v1318
      %1347 = vmatprep.subr.bf16.mxu0 0
      %1348 = vmatpush1.bf16.msra.mxu0 %v1317
      %1349 = vmatprep.subr.bf16.mxu0 0
      %1350 = vmatpush2.bf16.msra.mxu0 0
      %1351 = vmatprep.subr.bf16.mxu0 0
      %1352 = vmatpush2.bf16.msra.mxu0 0
      %1353 = vmatprep.subr.bf16.mxu0 0
      %1354 = vmatpush2.bf16.msra.mxu0 0
      %1355 = vmatprep.subr.bf16.mxu0 0
      %1356 = vmatpush2.bf16.msra.mxu0 0
      %1357 = vmatprep.subr.bf16.mxu0 0
      %1358 = vmatpush2.bf16.msra.mxu0 0
      %1359 = vmatprep.subr.bf16.mxu0 0
      %1360 = vmatpush2.bf16.msra.mxu0 0
      %1361 = vmatprep.subr.bf16.mxu0 0
      %1362 = vmatpush2.bf16.msra.mxu0 0
      %1363 = vmatprep.subr.bf16.mxu0 0
      %1364 = vmatpush2.bf16.msra.mxu0 0
      %1365 = vmatprep.mubr.bf16.mxu0 0
      %1366 = vmatmul.mubr.bf16.gmra.mxu0 %v1253
      %v1367 = vpop.f32.mrf.mxu0
      %v1368 = vadd.f32 0.0, %v1367
      %v1369 = vpop.f32.mrf.mxu0
      %v1370 = vpop.f32.mrf.mxu0
      %v1371 = vadd.f32 0.0, %v1370
      %v1372 = vpop.f32.mrf.mxu0
      %1373 = vmatprep.mubr.bf16.mxu0 0
      %1374 = vmatmul.mubr.bf16.gmra.mxu0 %v1254
      %v1375 = vpop.f32.mrf.mxu0
      %v1376 = vadd.f32 0.0, %v1375
      %v1377 = vpop.f32.mrf.mxu0
      %v1378 = vpop.f32.mrf.mxu0
      %v1379 = vadd.f32 0.0, %v1378
      %v1380 = vpop.f32.mrf.mxu0
      %1381 = vmatprep.mubr.bf16.mxu0 0
      %1382 = vmatmul.mubr.bf16.gmra.mxu0 %v1255
      %v1383 = vpop.f32.mrf.mxu0
      %v1384 = vadd.f32 0.0, %v1383
      %v1385 = vpop.f32.mrf.mxu0
      %v1386 = vpop.f32.mrf.mxu0
      %v1387 = vadd.f32 0.0, %v1386
      %v1388 = vpop.f32.mrf.mxu0
      %1389 = vmatprep.mubr.bf16.mxu0 0
      %1390 = vmatmul.mubr.bf16.gmra.mxu0 %v1256
      %v1391 = vpop.f32.mrf.mxu0
      %v1392 = vadd.f32 0.0, %v1391
      %v1393 = vpop.f32.mrf.mxu0
      %v1394 = vpop.f32.mrf.mxu0
      %v1395 = vadd.f32 0.0, %v1394
      %v1396 = vpop.f32.mrf.mxu0
      %1397 = vmatprep.mubr.bf16.mxu0 0
      %1398 = vmatmul.mubr.bf16.gmra.mxu0 %v1257
      %v1399 = vpop.f32.mrf.mxu0
      %v1400 = vadd.f32 0.0, %v1399
      %v1401 = vpop.f32.mrf.mxu0
      %v1402 = vpop.f32.mrf.mxu0
      %v1403 = vadd.f32 0.0, %v1402
      %v1404 = vpop.f32.mrf.mxu0
      %1405 = vmatprep.mubr.bf16.mxu0 0
      %1406 = vmatmul.mubr.bf16.gmra.mxu0 %v1258
      %v1407 = vpop.f32.mrf.mxu0
      %v1408 = vadd.f32 0.0, %v1407
      %v1409 = vpop.f32.mrf.mxu0
      %v1410 = vpop.f32.mrf.mxu0
      %v1411 = vadd.f32 0.0, %v1410
      %v1412 = vpop.f32.mrf.mxu0
      %1413 = vmatprep.mubr.bf16.mxu0 0
      %1414 = vmatmul.mubr.bf16.gmra.mxu0 %v1259
      %v1415 = vpop.f32.mrf.mxu0
      %v1416 = vadd.f32 0.0, %v1415
      %v1417 = vpop.f32.mrf.mxu0
      %v1418 = vpop.f32.mrf.mxu0
      %v1419 = vadd.f32 0.0, %v1418
      %v1420 = vpop.f32.mrf.mxu0
      %1421 = vmatprep.mubr.bf16.mxu0 0
      %1422 = vmatmul.mubr.bf16.gmra.mxu0 %v1260
      %v1423 = vpop.f32.mrf.mxu0
      %v1424 = vadd.f32 0.0, %v1423
      %v1425 = vpop.f32.mrf.mxu0
      %v1426 = vpop.f32.mrf.mxu0
      %v1427 = vadd.f32 0.0, %v1426
      %v1428 = vpop.f32.mrf.mxu0
      %1429 = vmatprep.mubr.bf16.mxu0 0
      %1430 = vmatmul.mubr.bf16.gmra.mxu0 %v1261
      %v1431 = vpop.f32.mrf.mxu0
      %v1432 = vadd.f32 0.0, %v1431
      %v1433 = vpop.f32.mrf.mxu0
      %v1434 = vpop.f32.mrf.mxu0
      %v1435 = vadd.f32 0.0, %v1434
      %v1436 = vpop.f32.mrf.mxu0
      %1437 = vmatprep.mubr.bf16.mxu0 0
      %1438 = vmatmul.mubr.bf16.gmra.mxu0 %v1262
      %v1439 = vpop.f32.mrf.mxu0
      %v1440 = vadd.f32 0.0, %v1439
      %v1441 = vpop.f32.mrf.mxu0
      %v1442 = vpop.f32.mrf.mxu0
      %v1443 = vadd.f32 0.0, %v1442
      %v1444 = vpop.f32.mrf.mxu0
      %1445 = vmatprep.mubr.bf16.mxu0 0
      %1446 = vmatmul.mubr.bf16.gmra.mxu0 %v1263
      %v1447 = vpop.f32.mrf.mxu0
      %v1448 = vadd.f32 0.0, %v1447
      %v1449 = vpop.f32.mrf.mxu0
      %v1450 = vpop.f32.mrf.mxu0
      %v1451 = vadd.f32 0.0, %v1450
      %v1452 = vpop.f32.mrf.mxu0
      %1453 = vmatprep.mubr.bf16.mxu0 0
      %1454 = vmatmul.mubr.bf16.gmra.mxu0 %v1264
      %v1455 = vpop.f32.mrf.mxu0
      %v1456 = vadd.f32 0.0, %v1455
      %v1457 = vpop.f32.mrf.mxu0
      %v1458 = vpop.f32.mrf.mxu0
      %v1459 = vadd.f32 0.0, %v1458
      %v1460 = vpop.f32.mrf.mxu0
      %1461 = vmatprep.mubr.bf16.mxu0 0
      %1462 = vmatmul.mubr.bf16.gmra.mxu0 %v1265
      %v1463 = vpop.f32.mrf.mxu0
      %v1464 = vadd.f32 0.0, %v1463
      %v1465 = vpop.f32.mrf.mxu0
      %v1466 = vpop.f32.mrf.mxu0
      %v1467 = vadd.f32 0.0, %v1466
      %v1468 = vpop.f32.mrf.mxu0
      %1469 = vmatprep.mubr.bf16.mxu0 0
      %1470 = vmatmul.mubr.bf16.gmra.mxu0 %v1266
      %v1471 = vpop.f32.mrf.mxu0
      %v1472 = vadd.f32 0.0, %v1471
      %v1473 = vpop.f32.mrf.mxu0
      %v1474 = vpop.f32.mrf.mxu0
      %v1475 = vadd.f32 0.0, %v1474
      %v1476 = vpop.f32.mrf.mxu0
      %1477 = vmatprep.mubr.bf16.mxu0 0
      %1478 = vmatmul.mubr.bf16.gmra.mxu0 %v1267
      %v1479 = vpop.f32.mrf.mxu0
      %v1480 = vadd.f32 0.0, %v1479
      %v1481 = vpop.f32.mrf.mxu0
      %v1482 = vpop.f32.mrf.mxu0
      %v1483 = vadd.f32 0.0, %v1482
      %v1484 = vpop.f32.mrf.mxu0
      %1485 = vmatprep.mubr.bf16.mxu0 0
      %1486 = vmatmul.mubr.bf16.gmra.mxu0 %v1268
      %v1487 = vpop.f32.mrf.mxu0
      %v1488 = vadd.f32 0.0, %v1487
      %v1489 = vpop.f32.mrf.mxu0
      %v1490 = vpop.f32.mrf.mxu0
      %v1491 = vadd.f32 0.0, %v1490
      %v1492 = vpop.f32.mrf.mxu0
      %1493 = vdwg.mxu0
      %v1494 = vadd.f32 %v1140, %v1368
      %v1495 = vadd.f32 %v1141, %v1371
      %v1496 = vadd.f32 %v1142, %v1376
      %v1497 = vadd.f32 %v1143, %v1379
      %v1498 = vadd.f32 %v1144, %v1384
      %v1499 = vadd.f32 %v1145, %v1387
      %v1500 = vadd.f32 %v1146, %v1392
      %v1501 = vadd.f32 %v1147, %v1395
      %v1502 = vadd.f32 %v1148, %v1400
      %v1503 = vadd.f32 %v1149, %v1403
      %v1504 = vadd.f32 %v1150, %v1408
      %v1505 = vadd.f32 %v1151, %v1411
      %v1506 = vadd.f32 %v1152, %v1416
      %v1507 = vadd.f32 %v1153, %v1419
      %v1508 = vadd.f32 %v1154, %v1424
      %v1509 = vadd.f32 %v1155, %v1427
      %v1510 = vadd.f32 %v1156, %v1432
      %v1511 = vadd.f32 %v1157, %v1435
      %v1512 = vadd.f32 %v1158, %v1440
      %v1513 = vadd.f32 %v1159, %v1443
      %v1514 = vadd.f32 %v1160, %v1448
      %v1515 = vadd.f32 %v1161, %v1451
      %v1516 = vadd.f32 %v1162, %v1456
      %v1517 = vadd.f32 %v1163, %v1459
      %v1518 = vadd.f32 %v1164, %v1464
      %v1519 = vadd.f32 %v1165, %v1467
      %v1520 = vadd.f32 %v1166, %v1472
      %v1521 = vadd.f32 %v1167, %v1475
      %v1522 = vadd.f32 %v1168, %v1480
      %v1523 = vadd.f32 %v1169, %v1483
      %v1524 = vadd.f32 %v1170, %v1488
      %v1525 = vadd.f32 %v1171, %v1491
      %1526 = vst [vmem:[#allocation2] sm:$0xff] %v1494
      %1527 = vst [vmem:[#allocation2 + $0x8] sm:$0xff] %v1495
      %1528 = vst [vmem:[#allocation2 + $0x10] sm:$0xff] %v1496
      %1529 = vst [vmem:[#allocation2 + $0x18] sm:$0xff] %v1497
      %1530 = vst [vmem:[#allocation2 + $0x20] sm:$0xff] %v1498
      %1531 = vst [vmem:[#allocation2 + $0x28] sm:$0xff] %v1499
      %1532 = vst [vmem:[#allocation2 + $0x30] sm:$0xff] %v1500
      %1533 = vst [vmem:[#allocation2 + $0x38] sm:$0xff] %v1501
      %1534 = vst [vmem:[#allocation2 + $0x40] sm:$0xff] %v1502
      %1535 = vst [vmem:[#allocation2 + $0x48] sm:$0xff] %v1503
      %1536 = vst [vmem:[#allocation2 + $0x50] sm:$0xff] %v1504
      %1537 = vst [vmem:[#allocation2 + $0x58] sm:$0xff] %v1505
      %1538 = vst [vmem:[#allocation2 + $0x60] sm:$0xff] %v1506
      %1539 = vst [vmem:[#allocation2 + $0x68] sm:$0xff] %v1507
      %1540 = vst [vmem:[#allocation2 + $0x70] sm:$0xff] %v1508
      %1541 = vst [vmem:[#allocation2 + $0x78] sm:$0xff] %v1509
      %1542 = vst [vmem:[#allocation2 + $0x80] sm:$0xff] %v1510
      %1543 = vst [vmem:[#allocation2 + $0x88] sm:$0xff] %v1511
      %1544 = vst [vmem:[#allocation2 + $0x90] sm:$0xff] %v1512
      %1545 = vst [vmem:[#allocation2 + $0x98] sm:$0xff] %v1513
      %1546 = vst [vmem:[#allocation2 + $0xa0] sm:$0xff] %v1514
      %1547 = vst [vmem:[#allocation2 + $0xa8] sm:$0xff] %v1515
      %1548 = vst [vmem:[#allocation2 + $0xb0] sm:$0xff] %v1516
      %1549 = vst [vmem:[#allocation2 + $0xb8] sm:$0xff] %v1517
      %1550 = vst [vmem:[#allocation2 + $0xc0] sm:$0xff] %v1518
      %1551 = vst [vmem:[#allocation2 + $0xc8] sm:$0xff] %v1519
      %1552 = vst [vmem:[#allocation2 + $0xd0] sm:$0xff] %v1520
      %1553 = vst [vmem:[#allocation2 + $0xd8] sm:$0xff] %v1521
      %1554 = vst [vmem:[#allocation2 + $0xe0] sm:$0xff] %v1522
      %1555 = vst [vmem:[#allocation2 + $0xe8] sm:$0xff] %v1523
      %1556 = vst [vmem:[#allocation2 + $0xf0] sm:$0xff] %v1524
      %1557 = vst [vmem:[#allocation2 + $0xf8] sm:$0xff] %v1525
      %s1558 = scalar_lea.vmem %s163, 8
      %v1559 = vld [vmem:[%s1558] sm:$0xf]
      %v1560 = vld [vmem:[%s1558 + $0x4] sm:$0xf]
      %v1561 = vld [vmem:[%s1558 + $0x8] sm:$0xf]
      %v1562 = vld [vmem:[%s1558 + $0xc] sm:$0xf]
      %v1563 = vld [vmem:[%s1558 + $0x10] sm:$0xf]
      %v1564 = vld [vmem:[%s1558 + $0x14] sm:$0xf]
      %v1565 = vld [vmem:[%s1558 + $0x18] sm:$0xf]
      %v1566 = vld [vmem:[%s1558 + $0x1c] sm:$0xf]
      %v1567 = vld [vmem:[%s1558 + $0x20] sm:$0xf]
      %v1568 = vld [vmem:[%s1558 + $0x24] sm:$0xf]
      %v1569 = vld [vmem:[%s1558 + $0x28] sm:$0xf]
      %v1570 = vld [vmem:[%s1558 + $0x2c] sm:$0xf]
      %v1571 = vld [vmem:[%s1558 + $0x30] sm:$0xf]
      %v1572 = vld [vmem:[%s1558 + $0x34] sm:$0xf]
      %v1573 = vld [vmem:[%s1558 + $0x38] sm:$0xf]
      %v1574 = vld [vmem:[%s1558 + $0x3c] sm:$0xf]
      %v1575 = vld [vmem:[%s1558 + $0x40] sm:$0xf]
      %v1576 = vld [vmem:[%s1558 + $0x44] sm:$0xf]
      %v1577 = vld [vmem:[%s1558 + $0x48] sm:$0xf]
      %v1578 = vld [vmem:[%s1558 + $0x4c] sm:$0xf]
      %v1579 = vld [vmem:[%s1558 + $0x50] sm:$0xf]
      %v1580 = vld [vmem:[%s1558 + $0x54] sm:$0xf]
      %v1581 = vld [vmem:[%s1558 + $0x58] sm:$0xf]
      %v1582 = vld [vmem:[%s1558 + $0x5c] sm:$0xf]
      %v1583 = vld [vmem:[%s1558 + $0x60] sm:$0xf]
      %v1584 = vld [vmem:[%s1558 + $0x64] sm:$0xf]
      %v1585 = vld [vmem:[%s1558 + $0x68] sm:$0xf]
      %v1586 = vld [vmem:[%s1558 + $0x6c] sm:$0xf]
      %v1587 = vld [vmem:[%s1558 + $0x70] sm:$0xf]
      %v1588 = vld [vmem:[%s1558 + $0x74] sm:$0xf]
      %v1589 = vld [vmem:[%s1558 + $0x78] sm:$0xf]
      %v1590 = vld [vmem:[%s1558 + $0x7c] sm:$0xf]
      %v1591 = vld [vmem:[#allocation2] sm:$0xff]
      %v1592 = vld [vmem:[#allocation2 + $0x8] sm:$0xff]
      %v1593 = vld [vmem:[#allocation2 + $0x10] sm:$0xff]
      %v1594 = vld [vmem:[#allocation2 + $0x18] sm:$0xff]
      %v1595 = vld [vmem:[#allocation2 + $0x20] sm:$0xff]
      %v1596 = vld [vmem:[#allocation2 + $0x28] sm:$0xff]
      %v1597 = vld [vmem:[#allocation2 + $0x30] sm:$0xff]
      %v1598 = vld [vmem:[#allocation2 + $0x38] sm:$0xff]
      %v1599 = vld [vmem:[#allocation2 + $0x40] sm:$0xff]
      %v1600 = vld [vmem:[#allocation2 + $0x48] sm:$0xff]
      %v1601 = vld [vmem:[#allocation2 + $0x50] sm:$0xff]
      %v1602 = vld [vmem:[#allocation2 + $0x58] sm:$0xff]
      %v1603 = vld [vmem:[#allocation2 + $0x60] sm:$0xff]
      %v1604 = vld [vmem:[#allocation2 + $0x68] sm:$0xff]
      %v1605 = vld [vmem:[#allocation2 + $0x70] sm:$0xff]
      %v1606 = vld [vmem:[#allocation2 + $0x78] sm:$0xff]
      %v1607 = vld [vmem:[#allocation2 + $0x80] sm:$0xff]
      %v1608 = vld [vmem:[#allocation2 + $0x88] sm:$0xff]
      %v1609 = vld [vmem:[#allocation2 + $0x90] sm:$0xff]
      %v1610 = vld [vmem:[#allocation2 + $0x98] sm:$0xff]
      %v1611 = vld [vmem:[#allocation2 + $0xa0] sm:$0xff]
      %v1612 = vld [vmem:[#allocation2 + $0xa8] sm:$0xff]
      %v1613 = vld [vmem:[#allocation2 + $0xb0] sm:$0xff]
      %v1614 = vld [vmem:[#allocation2 + $0xb8] sm:$0xff]
      %v1615 = vld [vmem:[#allocation2 + $0xc0] sm:$0xff]
      %v1616 = vld [vmem:[#allocation2 + $0xc8] sm:$0xff]
      %v1617 = vld [vmem:[#allocation2 + $0xd0] sm:$0xff]
      %v1618 = vld [vmem:[#allocation2 + $0xd8] sm:$0xff]
      %v1619 = vld [vmem:[#allocation2 + $0xe0] sm:$0xff]
      %v1620 = vld [vmem:[#allocation2 + $0xe8] sm:$0xff]
      %v1621 = vld [vmem:[#allocation2 + $0xf0] sm:$0xff]
      %v1622 = vld [vmem:[#allocation2 + $0xf8] sm:$0xff]
      %s1623 = scalar_lea.vmem %s1, 192
      %v1624 = vld [vmem:[%s1623] sm:$0xf]
      %v1625 = vld [vmem:[%s1623 + $0x4] sm:$0xf]
      %v1626 = vld [vmem:[%s1623 + $0x8] sm:$0xf]
      %v1627 = vld [vmem:[%s1623 + $0xc] sm:$0xf]
      %v1628 = vld [vmem:[%s1623 + $0x10] sm:$0xf]
      %v1629 = vld [vmem:[%s1623 + $0x14] sm:$0xf]
      %v1630 = vld [vmem:[%s1623 + $0x18] sm:$0xf]
      %v1631 = vld [vmem:[%s1623 + $0x1c] sm:$0xf]
      %v1632 = vld [vmem:[%s1623 + $0x20] sm:$0xf]
      %v1633 = vld [vmem:[%s1623 + $0x24] sm:$0xf]
      %v1634 = vld [vmem:[%s1623 + $0x28] sm:$0xf]
      %v1635 = vld [vmem:[%s1623 + $0x2c] sm:$0xf]
      %v1636 = vld [vmem:[%s1623 + $0x30] sm:$0xf]
      %v1637 = vld [vmem:[%s1623 + $0x34] sm:$0xf]
      %v1638 = vld [vmem:[%s1623 + $0x38] sm:$0xf]
      %v1639 = vld [vmem:[%s1623 + $0x3c] sm:$0xf]
      %v1672 = vunpack.c.l.b16 %v1559
      %v1673 = vunpack.c.l.b16 %v1560
      %v1674 = vunpack.c.l.b16 %v1561
      %v1675 = vunpack.c.l.b16 %v1562
      %v1676 = vunpack.c.l.b16 %v1563
      %v1677 = vunpack.c.l.b16 %v1564
      %v1678 = vunpack.c.l.b16 %v1565
      %v1679 = vunpack.c.l.b16 %v1566
      %v1680 = vunpack.c.l.b16 %v1567
      %v1681 = vunpack.c.l.b16 %v1568
      %v1682 = vunpack.c.l.b16 %v1569
      %v1683 = vunpack.c.l.b16 %v1570
      %v1684 = vunpack.c.l.b16 %v1571
      %v1685 = vunpack.c.l.b16 %v1572
      %v1686 = vunpack.c.l.b16 %v1573
      %v1687 = vunpack.c.l.b16 %v1574
      %v1688 = vunpack.c.l.b16 %v1575
      %v1689 = vunpack.c.l.b16 %v1576
      %v1690 = vunpack.c.l.b16 %v1577
      %v1691 = vunpack.c.l.b16 %v1578
      %v1692 = vunpack.c.l.b16 %v1579
      %v1693 = vunpack.c.l.b16 %v1580
      %v1694 = vunpack.c.l.b16 %v1581
      %v1695 = vunpack.c.l.b16 %v1582
      %v1696 = vunpack.c.l.b16 %v1583
      %v1697 = vunpack.c.l.b16 %v1584
      %v1698 = vunpack.c.l.b16 %v1585
      %v1699 = vunpack.c.l.b16 %v1586
      %v1700 = vunpack.c.l.b16 %v1587
      %v1701 = vunpack.c.l.b16 %v1588
      %v1702 = vunpack.c.l.b16 %v1589
      %v1703 = vunpack.c.l.b16 %v1590
      %v1704 = vpack.c.b16 %v1673, %v1672
      %v1705 = vpack.c.b16 %v1675, %v1674
      %v1706 = vpack.c.b16 %v1677, %v1676
      %v1707 = vpack.c.b16 %v1679, %v1678
      %v1708 = vpack.c.b16 %v1681, %v1680
      %v1709 = vpack.c.b16 %v1683, %v1682
      %v1710 = vpack.c.b16 %v1685, %v1684
      %v1711 = vpack.c.b16 %v1687, %v1686
      %v1712 = vpack.c.b16 %v1689, %v1688
      %v1713 = vpack.c.b16 %v1691, %v1690
      %v1714 = vpack.c.b16 %v1693, %v1692
      %v1715 = vpack.c.b16 %v1695, %v1694
      %v1716 = vpack.c.b16 %v1697, %v1696
      %v1717 = vpack.c.b16 %v1699, %v1698
      %v1718 = vpack.c.b16 %v1701, %v1700
      %v1719 = vpack.c.b16 %v1703, %v1702
      %v1752 = vunpack.c.l.b16 %v1624
      %v1753 = vunpack.c.l.b16 %v1625
      %v1754 = vunpack.c.l.b16 %v1626
      %v1755 = vunpack.c.l.b16 %v1627
      %v1756 = vunpack.c.l.b16 %v1628
      %v1757 = vunpack.c.l.b16 %v1629
      %v1758 = vunpack.c.l.b16 %v1630
      %v1759 = vunpack.c.l.b16 %v1631
      %v1760 = vunpack.c.l.b16 %v1632
      %v1761 = vunpack.c.l.b16 %v1633
      %v1762 = vunpack.c.l.b16 %v1634
      %v1763 = vunpack.c.l.b16 %v1635
      %v1764 = vunpack.c.l.b16 %v1636
      %v1765 = vunpack.c.l.b16 %v1637
      %v1766 = vunpack.c.l.b16 %v1638
      %v1767 = vunpack.c.l.b16 %v1639
      %v1768 = vpack.c.b16 %v1753, %v1752
      %v1769 = vpack.c.b16 %v1755, %v1754
      %v1770 = vpack.c.b16 %v1757, %v1756
      %v1771 = vpack.c.b16 %v1759, %v1758
      %v1772 = vpack.c.b16 %v1761, %v1760
      %v1773 = vpack.c.b16 %v1763, %v1762
      %v1774 = vpack.c.b16 %v1765, %v1764
      %v1775 = vpack.c.b16 %v1767, %v1766
      %1784 = vmatprep.subr.bf16.mxu0 0
      %1785 = vmatpush1.bf16.msra.mxu0 %v1775
      %1786 = vmatprep.subr.bf16.mxu0 0
      %1787 = vmatpush1.bf16.msra.mxu0 %v1774
      %1788 = vmatprep.subr.bf16.mxu0 0
      %1789 = vmatpush1.bf16.msra.mxu0 %v1773
      %1790 = vmatprep.subr.bf16.mxu0 0
      %1791 = vmatpush1.bf16.msra.mxu0 %v1772
      %1792 = vmatprep.subr.bf16.mxu0 0
      %1793 = vmatpush1.bf16.msra.mxu0 %v1771
      %1794 = vmatprep.subr.bf16.mxu0 0
      %1795 = vmatpush1.bf16.msra.mxu0 %v1770
      %1796 = vmatprep.subr.bf16.mxu0 0
      %1797 = vmatpush1.bf16.msra.mxu0 %v1769
      %1798 = vmatprep.subr.bf16.mxu0 0
      %1799 = vmatpush1.bf16.msra.mxu0 %v1768
      %1800 = vmatprep.subr.bf16.mxu0 0
      %1801 = vmatpush2.bf16.msra.mxu0 0
      %1802 = vmatprep.subr.bf16.mxu0 0
      %1803 = vmatpush2.bf16.msra.mxu0 0
      %1804 = vmatprep.subr.bf16.mxu0 0
      %1805 = vmatpush2.bf16.msra.mxu0 0
      %1806 = vmatprep.subr.bf16.mxu0 0
      %1807 = vmatpush2.bf16.msra.mxu0 0
      %1808 = vmatprep.subr.bf16.mxu0 0
      %1809 = vmatpush2.bf16.msra.mxu0 0
      %1810 = vmatprep.subr.bf16.mxu0 0
      %1811 = vmatpush2.bf16.msra.mxu0 0
      %1812 = vmatprep.subr.bf16.mxu0 0
      %1813 = vmatpush2.bf16.msra.mxu0 0
      %1814 = vmatprep.subr.bf16.mxu0 0
      %1815 = vmatpush2.bf16.msra.mxu0 0
      %1816 = vmatprep.mubr.bf16.mxu0 0
      %1817 = vmatmul.mubr.bf16.gmra.mxu0 %v1704
      %v1818 = vpop.f32.mrf.mxu0
      %v1819 = vadd.f32 0.0, %v1818
      %v1820 = vpop.f32.mrf.mxu0
      %v1821 = vpop.f32.mrf.mxu0
      %v1822 = vadd.f32 0.0, %v1821
      %v1823 = vpop.f32.mrf.mxu0
      %1824 = vmatprep.mubr.bf16.mxu0 0
      %1825 = vmatmul.mubr.bf16.gmra.mxu0 %v1705
      %v1826 = vpop.f32.mrf.mxu0
      %v1827 = vadd.f32 0.0, %v1826
      %v1828 = vpop.f32.mrf.mxu0
      %v1829 = vpop.f32.mrf.mxu0
      %v1830 = vadd.f32 0.0, %v1829
      %v1831 = vpop.f32.mrf.mxu0
      %1832 = vmatprep.mubr.bf16.mxu0 0
      %1833 = vmatmul.mubr.bf16.gmra.mxu0 %v1706
      %v1834 = vpop.f32.mrf.mxu0
      %v1835 = vadd.f32 0.0, %v1834
      %v1836 = vpop.f32.mrf.mxu0
      %v1837 = vpop.f32.mrf.mxu0
      %v1838 = vadd.f32 0.0, %v1837
      %v1839 = vpop.f32.mrf.mxu0
      %1840 = vmatprep.mubr.bf16.mxu0 0
      %1841 = vmatmul.mubr.bf16.gmra.mxu0 %v1707
      %v1842 = vpop.f32.mrf.mxu0
      %v1843 = vadd.f32 0.0, %v1842
      %v1844 = vpop.f32.mrf.mxu0
      %v1845 = vpop.f32.mrf.mxu0
      %v1846 = vadd.f32 0.0, %v1845
      %v1847 = vpop.f32.mrf.mxu0
      %1848 = vmatprep.mubr.bf16.mxu0 0
      %1849 = vmatmul.mubr.bf16.gmra.mxu0 %v1708
      %v1850 = vpop.f32.mrf.mxu0
      %v1851 = vadd.f32 0.0, %v1850
      %v1852 = vpop.f32.mrf.mxu0
      %v1853 = vpop.f32.mrf.mxu0
      %v1854 = vadd.f32 0.0, %v1853
      %v1855 = vpop.f32.mrf.mxu0
      %1856 = vmatprep.mubr.bf16.mxu0 0
      %1857 = vmatmul.mubr.bf16.gmra.mxu0 %v1709
      %v1858 = vpop.f32.mrf.mxu0
      %v1859 = vadd.f32 0.0, %v1858
      %v1860 = vpop.f32.mrf.mxu0
      %v1861 = vpop.f32.mrf.mxu0
      %v1862 = vadd.f32 0.0, %v1861
      %v1863 = vpop.f32.mrf.mxu0
      %1864 = vmatprep.mubr.bf16.mxu0 0
      %1865 = vmatmul.mubr.bf16.gmra.mxu0 %v1710
      %v1866 = vpop.f32.mrf.mxu0
      %v1867 = vadd.f32 0.0, %v1866
      %v1868 = vpop.f32.mrf.mxu0
      %v1869 = vpop.f32.mrf.mxu0
      %v1870 = vadd.f32 0.0, %v1869
      %v1871 = vpop.f32.mrf.mxu0
      %1872 = vmatprep.mubr.bf16.mxu0 0
      %1873 = vmatmul.mubr.bf16.gmra.mxu0 %v1711
      %v1874 = vpop.f32.mrf.mxu0
      %v1875 = vadd.f32 0.0, %v1874
      %v1876 = vpop.f32.mrf.mxu0
      %v1877 = vpop.f32.mrf.mxu0
      %v1878 = vadd.f32 0.0, %v1877
      %v1879 = vpop.f32.mrf.mxu0
      %1880 = vmatprep.mubr.bf16.mxu0 0
      %1881 = vmatmul.mubr.bf16.gmra.mxu0 %v1712
      %v1882 = vpop.f32.mrf.mxu0
      %v1883 = vadd.f32 0.0, %v1882
      %v1884 = vpop.f32.mrf.mxu0
      %v1885 = vpop.f32.mrf.mxu0
      %v1886 = vadd.f32 0.0, %v1885
      %v1887 = vpop.f32.mrf.mxu0
      %1888 = vmatprep.mubr.bf16.mxu0 0
      %1889 = vmatmul.mubr.bf16.gmra.mxu0 %v1713
      %v1890 = vpop.f32.mrf.mxu0
      %v1891 = vadd.f32 0.0, %v1890
      %v1892 = vpop.f32.mrf.mxu0
      %v1893 = vpop.f32.mrf.mxu0
      %v1894 = vadd.f32 0.0, %v1893
      %v1895 = vpop.f32.mrf.mxu0
      %1896 = vmatprep.mubr.bf16.mxu0 0
      %1897 = vmatmul.mubr.bf16.gmra.mxu0 %v1714
      %v1898 = vpop.f32.mrf.mxu0
      %v1899 = vadd.f32 0.0, %v1898
      %v1900 = vpop.f32.mrf.mxu0
      %v1901 = vpop.f32.mrf.mxu0
      %v1902 = vadd.f32 0.0, %v1901
      %v1903 = vpop.f32.mrf.mxu0
      %1904 = vmatprep.mubr.bf16.mxu0 0
      %1905 = vmatmul.mubr.bf16.gmra.mxu0 %v1715
      %v1906 = vpop.f32.mrf.mxu0
      %v1907 = vadd.f32 0.0, %v1906
      %v1908 = vpop.f32.mrf.mxu0
      %v1909 = vpop.f32.mrf.mxu0
      %v1910 = vadd.f32 0.0, %v1909
      %v1911 = vpop.f32.mrf.mxu0
      %1912 = vmatprep.mubr.bf16.mxu0 0
      %1913 = vmatmul.mubr.bf16.gmra.mxu0 %v1716
      %v1914 = vpop.f32.mrf.mxu0
      %v1915 = vadd.f32 0.0, %v1914
      %v1916 = vpop.f32.mrf.mxu0
      %v1917 = vpop.f32.mrf.mxu0
      %v1918 = vadd.f32 0.0, %v1917
      %v1919 = vpop.f32.mrf.mxu0
      %1920 = vmatprep.mubr.bf16.mxu0 0
      %1921 = vmatmul.mubr.bf16.gmra.mxu0 %v1717
      %v1922 = vpop.f32.mrf.mxu0
      %v1923 = vadd.f32 0.0, %v1922
      %v1924 = vpop.f32.mrf.mxu0
      %v1925 = vpop.f32.mrf.mxu0
      %v1926 = vadd.f32 0.0, %v1925
      %v1927 = vpop.f32.mrf.mxu0
      %1928 = vmatprep.mubr.bf16.mxu0 0
      %1929 = vmatmul.mubr.bf16.gmra.mxu0 %v1718
      %v1930 = vpop.f32.mrf.mxu0
      %v1931 = vadd.f32 0.0, %v1930
      %v1932 = vpop.f32.mrf.mxu0
      %v1933 = vpop.f32.mrf.mxu0
      %v1934 = vadd.f32 0.0, %v1933
      %v1935 = vpop.f32.mrf.mxu0
      %1936 = vmatprep.mubr.bf16.mxu0 0
      %1937 = vmatmul.mubr.bf16.gmra.mxu0 %v1719
      %v1938 = vpop.f32.mrf.mxu0
      %v1939 = vadd.f32 0.0, %v1938
      %v1940 = vpop.f32.mrf.mxu0
      %v1941 = vpop.f32.mrf.mxu0
      %v1942 = vadd.f32 0.0, %v1941
      %v1943 = vpop.f32.mrf.mxu0
      %1944 = vdwg.mxu0
      %v1945 = vadd.f32 %v1591, %v1819
      %v1946 = vadd.f32 %v1592, %v1822
      %v1947 = vadd.f32 %v1593, %v1827
      %v1948 = vadd.f32 %v1594, %v1830
      %v1949 = vadd.f32 %v1595, %v1835
      %v1950 = vadd.f32 %v1596, %v1838
      %v1951 = vadd.f32 %v1597, %v1843
      %v1952 = vadd.f32 %v1598, %v1846
      %v1953 = vadd.f32 %v1599, %v1851
      %v1954 = vadd.f32 %v1600, %v1854
      %v1955 = vadd.f32 %v1601, %v1859
      %v1956 = vadd.f32 %v1602, %v1862
      %v1957 = vadd.f32 %v1603, %v1867
      %v1958 = vadd.f32 %v1604, %v1870
      %v1959 = vadd.f32 %v1605, %v1875
      %v1960 = vadd.f32 %v1606, %v1878
      %v1961 = vadd.f32 %v1607, %v1883
      %v1962 = vadd.f32 %v1608, %v1886
      %v1963 = vadd.f32 %v1609, %v1891
      %v1964 = vadd.f32 %v1610, %v1894
      %v1965 = vadd.f32 %v1611, %v1899
      %v1966 = vadd.f32 %v1612, %v1902
      %v1967 = vadd.f32 %v1613, %v1907
      %v1968 = vadd.f32 %v1614, %v1910
      %v1969 = vadd.f32 %v1615, %v1915
      %v1970 = vadd.f32 %v1616, %v1918
      %v1971 = vadd.f32 %v1617, %v1923
      %v1972 = vadd.f32 %v1618, %v1926
      %v1973 = vadd.f32 %v1619, %v1931
      %v1974 = vadd.f32 %v1620, %v1934
      %v1975 = vadd.f32 %v1621, %v1939
      %v1976 = vadd.f32 %v1622, %v1942
      %1977 = vst [vmem:[#allocation2] sm:$0xff] %v1945
      %1978 = vst [vmem:[#allocation2 + $0x8] sm:$0xff] %v1946
      %1979 = vst [vmem:[#allocation2 + $0x10] sm:$0xff] %v1947
      %1980 = vst [vmem:[#allocation2 + $0x18] sm:$0xff] %v1948
      %1981 = vst [vmem:[#allocation2 + $0x20] sm:$0xff] %v1949
      %1982 = vst [vmem:[#allocation2 + $0x28] sm:$0xff] %v1950
      %1983 = vst [vmem:[#allocation2 + $0x30] sm:$0xff] %v1951
      %1984 = vst [vmem:[#allocation2 + $0x38] sm:$0xff] %v1952
      %1985 = vst [vmem:[#allocation2 + $0x40] sm:$0xff] %v1953
      %1986 = vst [vmem:[#allocation2 + $0x48] sm:$0xff] %v1954
      %1987 = vst [vmem:[#allocation2 + $0x50] sm:$0xff] %v1955
      %1988 = vst [vmem:[#allocation2 + $0x58] sm:$0xff] %v1956
      %1989 = vst [vmem:[#allocation2 + $0x60] sm:$0xff] %v1957
      %1990 = vst [vmem:[#allocation2 + $0x68] sm:$0xff] %v1958
      %1991 = vst [vmem:[#allocation2 + $0x70] sm:$0xff] %v1959
      %1992 = vst [vmem:[#allocation2 + $0x78] sm:$0xff] %v1960
      %1993 = vst [vmem:[#allocation2 + $0x80] sm:$0xff] %v1961
      %1994 = vst [vmem:[#allocation2 + $0x88] sm:$0xff] %v1962
      %1995 = vst [vmem:[#allocation2 + $0x90] sm:$0xff] %v1963
      %1996 = vst [vmem:[#allocation2 + $0x98] sm:$0xff] %v1964
      %1997 = vst [vmem:[#allocation2 + $0xa0] sm:$0xff] %v1965
      %1998 = vst [vmem:[#allocation2 + $0xa8] sm:$0xff] %v1966
      %1999 = vst [vmem:[#allocation2 + $0xb0] sm:$0xff] %v1967
      %2000 = vst [vmem:[#allocation2 + $0xb8] sm:$0xff] %v1968
      %2001 = vst [vmem:[#allocation2 + $0xc0] sm:$0xff] %v1969
      %2002 = vst [vmem:[#allocation2 + $0xc8] sm:$0xff] %v1970
      %2003 = vst [vmem:[#allocation2 + $0xd0] sm:$0xff] %v1971
      %2004 = vst [vmem:[#allocation2 + $0xd8] sm:$0xff] %v1972
      %2005 = vst [vmem:[#allocation2 + $0xe0] sm:$0xff] %v1973
      %2006 = vst [vmem:[#allocation2 + $0xe8] sm:$0xff] %v1974
      %2007 = vst [vmem:[#allocation2 + $0xf0] sm:$0xff] %v1975
      %2008 = vst [vmem:[#allocation2 + $0xf8] sm:$0xff] %v1976
      %s2009 = scalar_lea.vmem %s163, 152
      %v2010 = vld [vmem:[%s2009] sm:$0xf]
      %v2011 = vld [vmem:[%s2009 + $0x4] sm:$0xf]
      %v2012 = vld [vmem:[%s2009 + $0x8] sm:$0xf]
      %v2013 = vld [vmem:[%s2009 + $0xc] sm:$0xf]
      %v2014 = vld [vmem:[%s2009 + $0x10] sm:$0xf]
      %v2015 = vld [vmem:[%s2009 + $0x14] sm:$0xf]
      %v2016 = vld [vmem:[%s2009 + $0x18] sm:$0xf]
      %v2017 = vld [vmem:[%s2009 + $0x1c] sm:$0xf]
      %v2018 = vld [vmem:[%s2009 + $0x20] sm:$0xf]
      %v2019 = vld [vmem:[%s2009 + $0x24] sm:$0xf]
      %v2020 = vld [vmem:[%s2009 + $0x28] sm:$0xf]
      %v2021 = vld [vmem:[%s2009 + $0x2c] sm:$0xf]
      %v2022 = vld [vmem:[%s2009 + $0x30] sm:$0xf]
      %v2023 = vld [vmem:[%s2009 + $0x34] sm:$0xf]
      %v2024 = vld [vmem:[%s2009 + $0x38] sm:$0xf]
      %v2025 = vld [vmem:[%s2009 + $0x3c] sm:$0xf]
      %v2026 = vld [vmem:[%s2009 + $0x40] sm:$0xf]
      %v2027 = vld [vmem:[%s2009 + $0x44] sm:$0xf]
      %v2028 = vld [vmem:[%s2009 + $0x48] sm:$0xf]
      %v2029 = vld [vmem:[%s2009 + $0x4c] sm:$0xf]
      %v2030 = vld [vmem:[%s2009 + $0x50] sm:$0xf]
      %v2031 = vld [vmem:[%s2009 + $0x54] sm:$0xf]
      %v2032 = vld [vmem:[%s2009 + $0x58] sm:$0xf]
      %v2033 = vld [vmem:[%s2009 + $0x5c] sm:$0xf]
      %v2034 = vld [vmem:[%s2009 + $0x60] sm:$0xf]
      %v2035 = vld [vmem:[%s2009 + $0x64] sm:$0xf]
      %v2036 = vld [vmem:[%s2009 + $0x68] sm:$0xf]
      %v2037 = vld [vmem:[%s2009 + $0x6c] sm:$0xf]
      %v2038 = vld [vmem:[%s2009 + $0x70] sm:$0xf]
      %v2039 = vld [vmem:[%s2009 + $0x74] sm:$0xf]
      %v2040 = vld [vmem:[%s2009 + $0x78] sm:$0xf]
      %v2041 = vld [vmem:[%s2009 + $0x7c] sm:$0xf]
      %v2042 = vld [vmem:[#allocation2] sm:$0xff]
      %v2043 = vld [vmem:[#allocation2 + $0x8] sm:$0xff]
      %v2044 = vld [vmem:[#allocation2 + $0x10] sm:$0xff]
      %v2045 = vld [vmem:[#allocation2 + $0x18] sm:$0xff]
      %v2046 = vld [vmem:[#allocation2 + $0x20] sm:$0xff]
      %v2047 = vld [vmem:[#allocation2 + $0x28] sm:$0xff]
      %v2048 = vld [vmem:[#allocation2 + $0x30] sm:$0xff]
      %v2049 = vld [vmem:[#allocation2 + $0x38] sm:$0xff]
      %v2050 = vld [vmem:[#allocation2 + $0x40] sm:$0xff]
      %v2051 = vld [vmem:[#allocation2 + $0x48] sm:$0xff]
      %v2052 = vld [vmem:[#allocation2 + $0x50] sm:$0xff]
      %v2053 = vld [vmem:[#allocation2 + $0x58] sm:$0xff]
      %v2054 = vld [vmem:[#allocation2 + $0x60] sm:$0xff]
      %v2055 = vld [vmem:[#allocation2 + $0x68] sm:$0xff]
      %v2056 = vld [vmem:[#allocation2 + $0x70] sm:$0xff]
      %v2057 = vld [vmem:[#allocation2 + $0x78] sm:$0xff]
      %v2058 = vld [vmem:[#allocation2 + $0x80] sm:$0xff]
      %v2059 = vld [vmem:[#allocation2 + $0x88] sm:$0xff]
      %v2060 = vld [vmem:[#allocation2 + $0x90] sm:$0xff]
      %v2061 = vld [vmem:[#allocation2 + $0x98] sm:$0xff]
      %v2062 = vld [vmem:[#allocation2 + $0xa0] sm:$0xff]
      %v2063 = vld [vmem:[#allocation2 + $0xa8] sm:$0xff]
      %v2064 = vld [vmem:[#allocation2 + $0xb0] sm:$0xff]
      %v2065 = vld [vmem:[#allocation2 + $0xb8] sm:$0xff]
      %v2066 = vld [vmem:[#allocation2 + $0xc0] sm:$0xff]
      %v2067 = vld [vmem:[#allocation2 + $0xc8] sm:$0xff]
      %v2068 = vld [vmem:[#allocation2 + $0xd0] sm:$0xff]
      %v2069 = vld [vmem:[#allocation2 + $0xd8] sm:$0xff]
      %v2070 = vld [vmem:[#allocation2 + $0xe0] sm:$0xff]
      %v2071 = vld [vmem:[#allocation2 + $0xe8] sm:$0xff]
      %v2072 = vld [vmem:[#allocation2 + $0xf0] sm:$0xff]
      %v2073 = vld [vmem:[#allocation2 + $0xf8] sm:$0xff]
      %s2074 = scalar_lea.vmem %s1, 256
      %v2075 = vld [vmem:[%s2074] sm:$0xf]
      %v2076 = vld [vmem:[%s2074 + $0x4] sm:$0xf]
      %v2077 = vld [vmem:[%s2074 + $0x8] sm:$0xf]
      %v2078 = vld [vmem:[%s2074 + $0xc] sm:$0xf]
      %v2079 = vld [vmem:[%s2074 + $0x10] sm:$0xf]
      %v2080 = vld [vmem:[%s2074 + $0x14] sm:$0xf]
      %v2081 = vld [vmem:[%s2074 + $0x18] sm:$0xf]
      %v2082 = vld [vmem:[%s2074 + $0x1c] sm:$0xf]
      %v2083 = vld [vmem:[%s2074 + $0x20] sm:$0xf]
      %v2084 = vld [vmem:[%s2074 + $0x24] sm:$0xf]
      %v2085 = vld [vmem:[%s2074 + $0x28] sm:$0xf]
      %v2086 = vld [vmem:[%s2074 + $0x2c] sm:$0xf]
      %v2087 = vld [vmem:[%s2074 + $0x30] sm:$0xf]
      %v2088 = vld [vmem:[%s2074 + $0x34] sm:$0xf]
      %v2089 = vld [vmem:[%s2074 + $0x38] sm:$0xf]
      %v2090 = vld [vmem:[%s2074 + $0x3c] sm:$0xf]
      %v2123 = vunpack.c.l.b16 %v2010
      %v2124 = vunpack.c.l.b16 %v2011
      %v2125 = vunpack.c.l.b16 %v2012
      %v2126 = vunpack.c.l.b16 %v2013
      %v2127 = vunpack.c.l.b16 %v2014
      %v2128 = vunpack.c.l.b16 %v2015
      %v2129 = vunpack.c.l.b16 %v2016
      %v2130 = vunpack.c.l.b16 %v2017
      %v2131 = vunpack.c.l.b16 %v2018
      %v2132 = vunpack.c.l.b16 %v2019
      %v2133 = vunpack.c.l.b16 %v2020
      %v2134 = vunpack.c.l.b16 %v2021
      %v2135 = vunpack.c.l.b16 %v2022
      %v2136 = vunpack.c.l.b16 %v2023
      %v2137 = vunpack.c.l.b16 %v2024
      %v2138 = vunpack.c.l.b16 %v2025
      %v2139 = vunpack.c.l.b16 %v2026
      %v2140 = vunpack.c.l.b16 %v2027
      %v2141 = vunpack.c.l.b16 %v2028
      %v2142 = vunpack.c.l.b16 %v2029
      %v2143 = vunpack.c.l.b16 %v2030
      %v2144 = vunpack.c.l.b16 %v2031
      %v2145 = vunpack.c.l.b16 %v2032
      %v2146 = vunpack.c.l.b16 %v2033
      %v2147 = vunpack.c.l.b16 %v2034
      %v2148 = vunpack.c.l.b16 %v2035
      %v2149 = vunpack.c.l.b16 %v2036
      %v2150 = vunpack.c.l.b16 %v2037
      %v2151 = vunpack.c.l.b16 %v2038
      %v2152 = vunpack.c.l.b16 %v2039
      %v2153 = vunpack.c.l.b16 %v2040
      %v2154 = vunpack.c.l.b16 %v2041
      %v2155 = vpack.c.b16 %v2124, %v2123
      %v2156 = vpack.c.b16 %v2126, %v2125
      %v2157 = vpack.c.b16 %v2128, %v2127
      %v2158 = vpack.c.b16 %v2130, %v2129
      %v2159 = vpack.c.b16 %v2132, %v2131
      %v2160 = vpack.c.b16 %v2134, %v2133
      %v2161 = vpack.c.b16 %v2136, %v2135
      %v2162 = vpack.c.b16 %v2138, %v2137
      %v2163 = vpack.c.b16 %v2140, %v2139
      %v2164 = vpack.c.b16 %v2142, %v2141
      %v2165 = vpack.c.b16 %v2144, %v2143
      %v2166 = vpack.c.b16 %v2146, %v2145
      %v2167 = vpack.c.b16 %v2148, %v2147
      %v2168 = vpack.c.b16 %v2150, %v2149
      %v2169 = vpack.c.b16 %v2152, %v2151
      %v2170 = vpack.c.b16 %v2154, %v2153
      %v2203 = vunpack.c.l.b16 %v2075
      %v2204 = vunpack.c.l.b16 %v2076
      %v2205 = vunpack.c.l.b16 %v2077
      %v2206 = vunpack.c.l.b16 %v2078
      %v2207 = vunpack.c.l.b16 %v2079
      %v2208 = vunpack.c.l.b16 %v2080
      %v2209 = vunpack.c.l.b16 %v2081
      %v2210 = vunpack.c.l.b16 %v2082
      %v2211 = vunpack.c.l.b16 %v2083
      %v2212 = vunpack.c.l.b16 %v2084
      %v2213 = vunpack.c.l.b16 %v2085
      %v2214 = vunpack.c.l.b16 %v2086
      %v2215 = vunpack.c.l.b16 %v2087
      %v2216 = vunpack.c.l.b16 %v2088
      %v2217 = vunpack.c.l.b16 %v2089
      %v2218 = vunpack.c.l.b16 %v2090
      %v2219 = vpack.c.b16 %v2204, %v2203
      %v2220 = vpack.c.b16 %v2206, %v2205
      %v2221 = vpack.c.b16 %v2208, %v2207
      %v2222 = vpack.c.b16 %v2210, %v2209
      %v2223 = vpack.c.b16 %v2212, %v2211
      %v2224 = vpack.c.b16 %v2214, %v2213
      %v2225 = vpack.c.b16 %v2216, %v2215
      %v2226 = vpack.c.b16 %v2218, %v2217
      %2235 = vmatprep.subr.bf16.mxu0 0
      %2236 = vmatpush1.bf16.msra.mxu0 %v2226
      %2237 = vmatprep.subr.bf16.mxu0 0
      %2238 = vmatpush1.bf16.msra.mxu0 %v2225
      %2239 = vmatprep.subr.bf16.mxu0 0
      %2240 = vmatpush1.bf16.msra.mxu0 %v2224
      %2241 = vmatprep.subr.bf16.mxu0 0
      %2242 = vmatpush1.bf16.msra.mxu0 %v2223
      %2243 = vmatprep.subr.bf16.mxu0 0
      %2244 = vmatpush1.bf16.msra.mxu0 %v2222
      %2245 = vmatprep.subr.bf16.mxu0 0
      %2246 = vmatpush1.bf16.msra.mxu0 %v2221
      %2247 = vmatprep.subr.bf16.mxu0 0
      %2248 = vmatpush1.bf16.msra.mxu0 %v2220
      %2249 = vmatprep.subr.bf16.mxu0 0
      %2250 = vmatpush1.bf16.msra.mxu0 %v2219
      %2251 = vmatprep.subr.bf16.mxu0 0
      %2252 = vmatpush2.bf16.msra.mxu0 0
      %2253 = vmatprep.subr.bf16.mxu0 0
      %2254 = vmatpush2.bf16.msra.mxu0 0
      %2255 = vmatprep.subr.bf16.mxu0 0
      %2256 = vmatpush2.bf16.msra.mxu0 0
      %2257 = vmatprep.subr.bf16.mxu0 0
      %2258 = vmatpush2.bf16.msra.mxu0 0
      %2259 = vmatprep.subr.bf16.mxu0 0
      %2260 = vmatpush2.bf16.msra.mxu0 0
      %2261 = vmatprep.subr.bf16.mxu0 0
      %2262 = vmatpush2.bf16.msra.mxu0 0
      %2263 = vmatprep.subr.bf16.mxu0 0
      %2264 = vmatpush2.bf16.msra.mxu0 0
      %2265 = vmatprep.subr.bf16.mxu0 0
      %2266 = vmatpush2.bf16.msra.mxu0 0
      %2267 = vmatprep.mubr.bf16.mxu0 0
      %2268 = vmatmul.mubr.bf16.gmra.mxu0 %v2155
      %v2269 = vpop.f32.mrf.mxu0
      %v2270 = vadd.f32 0.0, %v2269
      %v2271 = vpop.f32.mrf.mxu0
      %v2272 = vpop.f32.mrf.mxu0
      %v2273 = vadd.f32 0.0, %v2272
      %v2274 = vpop.f32.mrf.mxu0
      %2275 = vmatprep.mubr.bf16.mxu0 0
      %2276 = vmatmul.mubr.bf16.gmra.mxu0 %v2156
      %v2277 = vpop.f32.mrf.mxu0
      %v2278 = vadd.f32 0.0, %v2277
      %v2279 = vpop.f32.mrf.mxu0
      %v2280 = vpop.f32.mrf.mxu0
      %v2281 = vadd.f32 0.0, %v2280
      %v2282 = vpop.f32.mrf.mxu0
      %2283 = vmatprep.mubr.bf16.mxu0 0
      %2284 = vmatmul.mubr.bf16.gmra.mxu0 %v2157
      %v2285 = vpop.f32.mrf.mxu0
      %v2286 = vadd.f32 0.0, %v2285
      %v2287 = vpop.f32.mrf.mxu0
      %v2288 = vpop.f32.mrf.mxu0
      %v2289 = vadd.f32 0.0, %v2288
      %v2290 = vpop.f32.mrf.mxu0
      %2291 = vmatprep.mubr.bf16.mxu0 0
      %2292 = vmatmul.mubr.bf16.gmra.mxu0 %v2158
      %v2293 = vpop.f32.mrf.mxu0
      %v2294 = vadd.f32 0.0, %v2293
      %v2295 = vpop.f32.mrf.mxu0
      %v2296 = vpop.f32.mrf.mxu0
      %v2297 = vadd.f32 0.0, %v2296
      %v2298 = vpop.f32.mrf.mxu0
      %2299 = vmatprep.mubr.bf16.mxu0 0
      %2300 = vmatmul.mubr.bf16.gmra.mxu0 %v2159
      %v2301 = vpop.f32.mrf.mxu0
      %v2302 = vadd.f32 0.0, %v2301
      %v2303 = vpop.f32.mrf.mxu0
      %v2304 = vpop.f32.mrf.mxu0
      %v2305 = vadd.f32 0.0, %v2304
      %v2306 = vpop.f32.mrf.mxu0
      %2307 = vmatprep.mubr.bf16.mxu0 0
      %2308 = vmatmul.mubr.bf16.gmra.mxu0 %v2160
      %v2309 = vpop.f32.mrf.mxu0
      %v2310 = vadd.f32 0.0, %v2309
      %v2311 = vpop.f32.mrf.mxu0
      %v2312 = vpop.f32.mrf.mxu0
      %v2313 = vadd.f32 0.0, %v2312
      %v2314 = vpop.f32.mrf.mxu0
      %2315 = vmatprep.mubr.bf16.mxu0 0
      %2316 = vmatmul.mubr.bf16.gmra.mxu0 %v2161
      %v2317 = vpop.f32.mrf.mxu0
      %v2318 = vadd.f32 0.0, %v2317
      %v2319 = vpop.f32.mrf.mxu0
      %v2320 = vpop.f32.mrf.mxu0
      %v2321 = vadd.f32 0.0, %v2320
      %v2322 = vpop.f32.mrf.mxu0
      %2323 = vmatprep.mubr.bf16.mxu0 0
      %2324 = vmatmul.mubr.bf16.gmra.mxu0 %v2162
      %v2325 = vpop.f32.mrf.mxu0
      %v2326 = vadd.f32 0.0, %v2325
      %v2327 = vpop.f32.mrf.mxu0
      %v2328 = vpop.f32.mrf.mxu0
      %v2329 = vadd.f32 0.0, %v2328
      %v2330 = vpop.f32.mrf.mxu0
      %2331 = vmatprep.mubr.bf16.mxu0 0
      %2332 = vmatmul.mubr.bf16.gmra.mxu0 %v2163
      %v2333 = vpop.f32.mrf.mxu0
      %v2334 = vadd.f32 0.0, %v2333
      %v2335 = vpop.f32.mrf.mxu0
      %v2336 = vpop.f32.mrf.mxu0
      %v2337 = vadd.f32 0.0, %v2336
      %v2338 = vpop.f32.mrf.mxu0
      %2339 = vmatprep.mubr.bf16.mxu0 0
      %2340 = vmatmul.mubr.bf16.gmra.mxu0 %v2164
      %v2341 = vpop.f32.mrf.mxu0
      %v2342 = vadd.f32 0.0, %v2341
      %v2343 = vpop.f32.mrf.mxu0
      %v2344 = vpop.f32.mrf.mxu0
      %v2345 = vadd.f32 0.0, %v2344
      %v2346 = vpop.f32.mrf.mxu0
      %2347 = vmatprep.mubr.bf16.mxu0 0
      %2348 = vmatmul.mubr.bf16.gmra.mxu0 %v2165
      %v2349 = vpop.f32.mrf.mxu0
      %v2350 = vadd.f32 0.0, %v2349
      %v2351 = vpop.f32.mrf.mxu0
      %v2352 = vpop.f32.mrf.mxu0
      %v2353 = vadd.f32 0.0, %v2352
      %v2354 = vpop.f32.mrf.mxu0
      %2355 = vmatprep.mubr.bf16.mxu0 0
      %2356 = vmatmul.mubr.bf16.gmra.mxu0 %v2166
      %v2357 = vpop.f32.mrf.mxu0
      %v2358 = vadd.f32 0.0, %v2357
      %v2359 = vpop.f32.mrf.mxu0
      %v2360 = vpop.f32.mrf.mxu0
      %v2361 = vadd.f32 0.0, %v2360
      %v2362 = vpop.f32.mrf.mxu0
      %2363 = vmatprep.mubr.bf16.mxu0 0
      %2364 = vmatmul.mubr.bf16.gmra.mxu0 %v2167
      %v2365 = vpop.f32.mrf.mxu0
      %v2366 = vadd.f32 0.0, %v2365
      %v2367 = vpop.f32.mrf.mxu0
      %v2368 = vpop.f32.mrf.mxu0
      %v2369 = vadd.f32 0.0, %v2368
      %v2370 = vpop.f32.mrf.mxu0
      %2371 = vmatprep.mubr.bf16.mxu0 0
      %2372 = vmatmul.mubr.bf16.gmra.mxu0 %v2168
      %v2373 = vpop.f32.mrf.mxu0
      %v2374 = vadd.f32 0.0, %v2373
      %v2375 = vpop.f32.mrf.mxu0
      %v2376 = vpop.f32.mrf.mxu0
      %v2377 = vadd.f32 0.0, %v2376
      %v2378 = vpop.f32.mrf.mxu0
      %2379 = vmatprep.mubr.bf16.mxu0 0
      %2380 = vmatmul.mubr.bf16.gmra.mxu0 %v2169
      %v2381 = vpop.f32.mrf.mxu0
      %v2382 = vadd.f32 0.0, %v2381
      %v2383 = vpop.f32.mrf.mxu0
      %v2384 = vpop.f32.mrf.mxu0
      %v2385 = vadd.f32 0.0, %v2384
      %v2386 = vpop.f32.mrf.mxu0
      %2387 = vmatprep.mubr.bf16.mxu0 0
      %2388 = vmatmul.mubr.bf16.gmra.mxu0 %v2170
      %v2389 = vpop.f32.mrf.mxu0
      %v2390 = vadd.f32 0.0, %v2389
      %v2391 = vpop.f32.mrf.mxu0
      %v2392 = vpop.f32.mrf.mxu0
      %v2393 = vadd.f32 0.0, %v2392
      %v2394 = vpop.f32.mrf.mxu0
      %2395 = vdwg.mxu0
      %v2396 = vadd.f32 %v2042, %v2270
      %v2397 = vadd.f32 %v2043, %v2273
      %v2398 = vadd.f32 %v2044, %v2278
      %v2399 = vadd.f32 %v2045, %v2281
      %v2400 = vadd.f32 %v2046, %v2286
      %v2401 = vadd.f32 %v2047, %v2289
      %v2402 = vadd.f32 %v2048, %v2294
      %v2403 = vadd.f32 %v2049, %v2297
      %v2404 = vadd.f32 %v2050, %v2302
      %v2405 = vadd.f32 %v2051, %v2305
      %v2406 = vadd.f32 %v2052, %v2310
      %v2407 = vadd.f32 %v2053, %v2313
      %v2408 = vadd.f32 %v2054, %v2318
      %v2409 = vadd.f32 %v2055, %v2321
      %v2410 = vadd.f32 %v2056, %v2326
      %v2411 = vadd.f32 %v2057, %v2329
      %v2412 = vadd.f32 %v2058, %v2334
      %v2413 = vadd.f32 %v2059, %v2337
      %v2414 = vadd.f32 %v2060, %v2342
      %v2415 = vadd.f32 %v2061, %v2345
      %v2416 = vadd.f32 %v2062, %v2350
      %v2417 = vadd.f32 %v2063, %v2353
      %v2418 = vadd.f32 %v2064, %v2358
      %v2419 = vadd.f32 %v2065, %v2361
      %v2420 = vadd.f32 %v2066, %v2366
      %v2421 = vadd.f32 %v2067, %v2369
      %v2422 = vadd.f32 %v2068, %v2374
      %v2423 = vadd.f32 %v2069, %v2377
      %v2424 = vadd.f32 %v2070, %v2382
      %v2425 = vadd.f32 %v2071, %v2385
      %v2426 = vadd.f32 %v2072, %v2390
      %v2427 = vadd.f32 %v2073, %v2393
      %2428 = vst [vmem:[#allocation2] sm:$0xff] %v2396
      %2429 = vst [vmem:[#allocation2 + $0x8] sm:$0xff] %v2397
      %2430 = vst [vmem:[#allocation2 + $0x10] sm:$0xff] %v2398
      %2431 = vst [vmem:[#allocation2 + $0x18] sm:$0xff] %v2399
      %2432 = vst [vmem:[#allocation2 + $0x20] sm:$0xff] %v2400
      %2433 = vst [vmem:[#allocation2 + $0x28] sm:$0xff] %v2401
      %2434 = vst [vmem:[#allocation2 + $0x30] sm:$0xff] %v2402
      %2435 = vst [vmem:[#allocation2 + $0x38] sm:$0xff] %v2403
      %2436 = vst [vmem:[#allocation2 + $0x40] sm:$0xff] %v2404
      %2437 = vst [vmem:[#allocation2 + $0x48] sm:$0xff] %v2405
      %2438 = vst [vmem:[#allocation2 + $0x50] sm:$0xff] %v2406
      %2439 = vst [vmem:[#allocation2 + $0x58] sm:$0xff] %v2407
      %2440 = vst [vmem:[#allocation2 + $0x60] sm:$0xff] %v2408
      %2441 = vst [vmem:[#allocation2 + $0x68] sm:$0xff] %v2409
      %2442 = vst [vmem:[#allocation2 + $0x70] sm:$0xff] %v2410
      %2443 = vst [vmem:[#allocation2 + $0x78] sm:$0xff] %v2411
      %2444 = vst [vmem:[#allocation2 + $0x80] sm:$0xff] %v2412
      %2445 = vst [vmem:[#allocation2 + $0x88] sm:$0xff] %v2413
      %2446 = vst [vmem:[#allocation2 + $0x90] sm:$0xff] %v2414
      %2447 = vst [vmem:[#allocation2 + $0x98] sm:$0xff] %v2415
      %2448 = vst [vmem:[#allocation2 + $0xa0] sm:$0xff] %v2416
      %2449 = vst [vmem:[#allocation2 + $0xa8] sm:$0xff] %v2417
      %2450 = vst [vmem:[#allocation2 + $0xb0] sm:$0xff] %v2418
      %2451 = vst [vmem:[#allocation2 + $0xb8] sm:$0xff] %v2419
      %2452 = vst [vmem:[#allocation2 + $0xc0] sm:$0xff] %v2420
      %2453 = vst [vmem:[#allocation2 + $0xc8] sm:$0xff] %v2421
      %2454 = vst [vmem:[#allocation2 + $0xd0] sm:$0xff] %v2422
      %2455 = vst [vmem:[#allocation2 + $0xd8] sm:$0xff] %v2423
      %2456 = vst [vmem:[#allocation2 + $0xe0] sm:$0xff] %v2424
      %2457 = vst [vmem:[#allocation2 + $0xe8] sm:$0xff] %v2425
      %2458 = vst [vmem:[#allocation2 + $0xf0] sm:$0xff] %v2426
      %2459 = vst [vmem:[#allocation2 + $0xf8] sm:$0xff] %v2427
      %s2460 = scalar_lea.vmem %s163, 296
      %v2461 = vld [vmem:[%s2460] sm:$0xf]
      %v2462 = vld [vmem:[%s2460 + $0x4] sm:$0xf]
      %v2463 = vld [vmem:[%s2460 + $0x8] sm:$0xf]
      %v2464 = vld [vmem:[%s2460 + $0xc] sm:$0xf]
      %v2465 = vld [vmem:[%s2460 + $0x10] sm:$0xf]
      %v2466 = vld [vmem:[%s2460 + $0x14] sm:$0xf]
      %v2467 = vld [vmem:[%s2460 + $0x18] sm:$0xf]
      %v2468 = vld [vmem:[%s2460 + $0x1c] sm:$0xf]
      %v2469 = vld [vmem:[%s2460 + $0x20] sm:$0xf]
      %v2470 = vld [vmem:[%s2460 + $0x24] sm:$0xf]
      %v2471 = vld [vmem:[%s2460 + $0x28] sm:$0xf]
      %v2472 = vld [vmem:[%s2460 + $0x2c] sm:$0xf]
      %v2473 = vld [vmem:[%s2460 + $0x30] sm:$0xf]
      %v2474 = vld [vmem:[%s2460 + $0x34] sm:$0xf]
      %v2475 = vld [vmem:[%s2460 + $0x38] sm:$0xf]
      %v2476 = vld [vmem:[%s2460 + $0x3c] sm:$0xf]
      %v2477 = vld [vmem:[%s2460 + $0x40] sm:$0xf]
      %v2478 = vld [vmem:[%s2460 + $0x44] sm:$0xf]
      %v2479 = vld [vmem:[%s2460 + $0x48] sm:$0xf]
      %v2480 = vld [vmem:[%s2460 + $0x4c] sm:$0xf]
      %v2481 = vld [vmem:[%s2460 + $0x50] sm:$0xf]
      %v2482 = vld [vmem:[%s2460 + $0x54] sm:$0xf]
      %v2483 = vld [vmem:[%s2460 + $0x58] sm:$0xf]
      %v2484 = vld [vmem:[%s2460 + $0x5c] sm:$0xf]
      %v2485 = vld [vmem:[%s2460 + $0x60] sm:$0xf]
      %v2486 = vld [vmem:[%s2460 + $0x64] sm:$0xf]
      %v2487 = vld [vmem:[%s2460 + $0x68] sm:$0xf]
      %v2488 = vld [vmem:[%s2460 + $0x6c] sm:$0xf]
      %v2489 = vld [vmem:[%s2460 + $0x70] sm:$0xf]
      %v2490 = vld [vmem:[%s2460 + $0x74] sm:$0xf]
      %v2491 = vld [vmem:[%s2460 + $0x78] sm:$0xf]
      %v2492 = vld [vmem:[%s2460 + $0x7c] sm:$0xf]
      %v2493 = vld [vmem:[#allocation2] sm:$0xff]
      %v2494 = vld [vmem:[#allocation2 + $0x8] sm:$0xff]
      %v2495 = vld [vmem:[#allocation2 + $0x10] sm:$0xff]
      %v2496 = vld [vmem:[#allocation2 + $0x18] sm:$0xff]
      %v2497 = vld [vmem:[#allocation2 + $0x20] sm:$0xff]
      %v2498 = vld [vmem:[#allocation2 + $0x28] sm:$0xff]
      %v2499 = vld [vmem:[#allocation2 + $0x30] sm:$0xff]
      %v2500 = vld [vmem:[#allocation2 + $0x38] sm:$0xff]
      %v2501 = vld [vmem:[#allocation2 + $0x40] sm:$0xff]
      %v2502 = vld [vmem:[#allocation2 + $0x48] sm:$0xff]
      %v2503 = vld [vmem:[#allocation2 + $0x50] sm:$0xff]
      %v2504 = vld [vmem:[#allocation2 + $0x58] sm:$0xff]
      %v2505 = vld [vmem:[#allocation2 + $0x60] sm:$0xff]
      %v2506 = vld [vmem:[#allocation2 + $0x68] sm:$0xff]
      %v2507 = vld [vmem:[#allocation2 + $0x70] sm:$0xff]
      %v2508 = vld [vmem:[#allocation2 + $0x78] sm:$0xff]
      %v2509 = vld [vmem:[#allocation2 + $0x80] sm:$0xff]
      %v2510 = vld [vmem:[#allocation2 + $0x88] sm:$0xff]
      %v2511 = vld [vmem:[#allocation2 + $0x90] sm:$0xff]
      %v2512 = vld [vmem:[#allocation2 + $0x98] sm:$0xff]
      %v2513 = vld [vmem:[#allocation2 + $0xa0] sm:$0xff]
      %v2514 = vld [vmem:[#allocation2 + $0xa8] sm:$0xff]
      %v2515 = vld [vmem:[#allocation2 + $0xb0] sm:$0xff]
      %v2516 = vld [vmem:[#allocation2 + $0xb8] sm:$0xff]
      %v2517 = vld [vmem:[#allocation2 + $0xc0] sm:$0xff]
      %v2518 = vld [vmem:[#allocation2 + $0xc8] sm:$0xff]
      %v2519 = vld [vmem:[#allocation2 + $0xd0] sm:$0xff]
      %v2520 = vld [vmem:[#allocation2 + $0xd8] sm:$0xff]
      %v2521 = vld [vmem:[#allocation2 + $0xe0] sm:$0xff]
      %v2522 = vld [vmem:[#allocation2 + $0xe8] sm:$0xff]
      %v2523 = vld [vmem:[#allocation2 + $0xf0] sm:$0xff]
      %v2524 = vld [vmem:[#allocation2 + $0xf8] sm:$0xff]
      %s2525 = scalar_lea.vmem %s1, 320
      %v2526 = vld [vmem:[%s2525] sm:$0xf]
      %v2527 = vld [vmem:[%s2525 + $0x4] sm:$0xf]
      %v2528 = vld [vmem:[%s2525 + $0x8] sm:$0xf]
      %v2529 = vld [vmem:[%s2525 + $0xc] sm:$0xf]
      %v2530 = vld [vmem:[%s2525 + $0x10] sm:$0xf]
      %v2531 = vld [vmem:[%s2525 + $0x14] sm:$0xf]
      %v2532 = vld [vmem:[%s2525 + $0x18] sm:$0xf]
      %v2533 = vld [vmem:[%s2525 + $0x1c] sm:$0xf]
      %v2534 = vld [vmem:[%s2525 + $0x20] sm:$0xf]
      %v2535 = vld [vmem:[%s2525 + $0x24] sm:$0xf]
      %v2536 = vld [vmem:[%s2525 + $0x28] sm:$0xf]
      %v2537 = vld [vmem:[%s2525 + $0x2c] sm:$0xf]
      %v2538 = vld [vmem:[%s2525 + $0x30] sm:$0xf]
      %v2539 = vld [vmem:[%s2525 + $0x34] sm:$0xf]
      %v2540 = vld [vmem:[%s2525 + $0x38] sm:$0xf]
      %v2541 = vld [vmem:[%s2525 + $0x3c] sm:$0xf]
      %v2574 = vunpack.c.l.b16 %v2461
      %v2575 = vunpack.c.l.b16 %v2462
      %v2576 = vunpack.c.l.b16 %v2463
      %v2577 = vunpack.c.l.b16 %v2464
      %v2578 = vunpack.c.l.b16 %v2465
      %v2579 = vunpack.c.l.b16 %v2466
      %v2580 = vunpack.c.l.b16 %v2467
      %v2581 = vunpack.c.l.b16 %v2468
      %v2582 = vunpack.c.l.b16 %v2469
      %v2583 = vunpack.c.l.b16 %v2470
      %v2584 = vunpack.c.l.b16 %v2471
      %v2585 = vunpack.c.l.b16 %v2472
      %v2586 = vunpack.c.l.b16 %v2473
      %v2587 = vunpack.c.l.b16 %v2474
      %v2588 = vunpack.c.l.b16 %v2475
      %v2589 = vunpack.c.l.b16 %v2476
      %v2590 = vunpack.c.l.b16 %v2477
      %v2591 = vunpack.c.l.b16 %v2478
      %v2592 = vunpack.c.l.b16 %v2479
      %v2593 = vunpack.c.l.b16 %v2480
      %v2594 = vunpack.c.l.b16 %v2481
      %v2595 = vunpack.c.l.b16 %v2482
      %v2596 = vunpack.c.l.b16 %v2483
      %v2597 = vunpack.c.l.b16 %v2484
      %v2598 = vunpack.c.l.b16 %v2485
      %v2599 = vunpack.c.l.b16 %v2486
      %v2600 = vunpack.c.l.b16 %v2487
      %v2601 = vunpack.c.l.b16 %v2488
      %v2602 = vunpack.c.l.b16 %v2489
      %v2603 = vunpack.c.l.b16 %v2490
      %v2604 = vunpack.c.l.b16 %v2491
      %v2605 = vunpack.c.l.b16 %v2492
      %v2606 = vpack.c.b16 %v2575, %v2574
      %v2607 = vpack.c.b16 %v2577, %v2576
      %v2608 = vpack.c.b16 %v2579, %v2578
      %v2609 = vpack.c.b16 %v2581, %v2580
      %v2610 = vpack.c.b16 %v2583, %v2582
      %v2611 = vpack.c.b16 %v2585, %v2584
      %v2612 = vpack.c.b16 %v2587, %v2586
      %v2613 = vpack.c.b16 %v2589, %v2588
      %v2614 = vpack.c.b16 %v2591, %v2590
      %v2615 = vpack.c.b16 %v2593, %v2592
      %v2616 = vpack.c.b16 %v2595, %v2594
      %v2617 = vpack.c.b16 %v2597, %v2596
      %v2618 = vpack.c.b16 %v2599, %v2598
      %v2619 = vpack.c.b16 %v2601, %v2600
      %v2620 = vpack.c.b16 %v2603, %v2602
      %v2621 = vpack.c.b16 %v2605, %v2604
      %v2654 = vunpack.c.l.b16 %v2526
      %v2655 = vunpack.c.l.b16 %v2527
      %v2656 = vunpack.c.l.b16 %v2528
      %v2657 = vunpack.c.l.b16 %v2529
      %v2658 = vunpack.c.l.b16 %v2530
      %v2659 = vunpack.c.l.b16 %v2531
      %v2660 = vunpack.c.l.b16 %v2532
      %v2661 = vunpack.c.l.b16 %v2533
      %v2662 = vunpack.c.l.b16 %v2534
      %v2663 = vunpack.c.l.b16 %v2535
      %v2664 = vunpack.c.l.b16 %v2536
      %v2665 = vunpack.c.l.b16 %v2537
      %v2666 = vunpack.c.l.b16 %v2538
      %v2667 = vunpack.c.l.b16 %v2539
      %v2668 = vunpack.c.l.b16 %v2540
      %v2669 = vunpack.c.l.b16 %v2541
      %v2670 = vpack.c.b16 %v2655, %v2654
      %v2671 = vpack.c.b16 %v2657, %v2656
      %v2672 = vpack.c.b16 %v2659, %v2658
      %v2673 = vpack.c.b16 %v2661, %v2660
      %v2674 = vpack.c.b16 %v2663, %v2662
      %v2675 = vpack.c.b16 %v2665, %v2664
      %v2676 = vpack.c.b16 %v2667, %v2666
      %v2677 = vpack.c.b16 %v2669, %v2668
      %2686 = vmatprep.subr.bf16.mxu0 0
      %2687 = vmatpush1.bf16.msra.mxu0 %v2677
      %2688 = vmatprep.subr.bf16.mxu0 0
      %2689 = vmatpush1.bf16.msra.mxu0 %v2676
      %2690 = vmatprep.subr.bf16.mxu0 0
      %2691 = vmatpush1.bf16.msra.mxu0 %v2675
      %2692 = vmatprep.subr.bf16.mxu0 0
      %2693 = vmatpush1.bf16.msra.mxu0 %v2674
      %2694 = vmatprep.subr.bf16.mxu0 0
      %2695 = vmatpush1.bf16.msra.mxu0 %v2673
      %2696 = vmatprep.subr.bf16.mxu0 0
      %2697 = vmatpush1.bf16.msra.mxu0 %v2672
      %2698 = vmatprep.subr.bf16.mxu0 0
      %2699 = vmatpush1.bf16.msra.mxu0 %v2671
      %2700 = vmatprep.subr.bf16.mxu0 0
      %2701 = vmatpush1.bf16.msra.mxu0 %v2670
      %2702 = vmatprep.subr.bf16.mxu0 0
      %2703 = vmatpush2.bf16.msra.mxu0 0
      %2704 = vmatprep.subr.bf16.mxu0 0
      %2705 = vmatpush2.bf16.msra.mxu0 0
      %2706 = vmatprep.subr.bf16.mxu0 0
      %2707 = vmatpush2.bf16.msra.mxu0 0
      %2708 = vmatprep.subr.bf16.mxu0 0
      %2709 = vmatpush2.bf16.msra.mxu0 0
      %2710 = vmatprep.subr.bf16.mxu0 0
      %2711 = vmatpush2.bf16.msra.mxu0 0
      %2712 = vmatprep.subr.bf16.mxu0 0
      %2713 = vmatpush2.bf16.msra.mxu0 0
      %2714 = vmatprep.subr.bf16.mxu0 0
      %2715 = vmatpush2.bf16.msra.mxu0 0
      %2716 = vmatprep.subr.bf16.mxu0 0
      %2717 = vmatpush2.bf16.msra.mxu0 0
      %2718 = vmatprep.mubr.bf16.mxu0 0
      %2719 = vmatmul.mubr.bf16.gmra.mxu0 %v2606
      %v2720 = vpop.f32.mrf.mxu0
      %v2721 = vadd.f32 0.0, %v2720
      %v2722 = vpop.f32.mrf.mxu0
      %v2723 = vpop.f32.mrf.mxu0
      %v2724 = vadd.f32 0.0, %v2723
      %v2725 = vpop.f32.mrf.mxu0
      %2726 = vmatprep.mubr.bf16.mxu0 0
      %2727 = vmatmul.mubr.bf16.gmra.mxu0 %v2607
      %v2728 = vpop.f32.mrf.mxu0
      %v2729 = vadd.f32 0.0, %v2728
      %v2730 = vpop.f32.mrf.mxu0
      %v2731 = vpop.f32.mrf.mxu0
      %v2732 = vadd.f32 0.0, %v2731
      %v2733 = vpop.f32.mrf.mxu0
      %2734 = vmatprep.mubr.bf16.mxu0 0
      %2735 = vmatmul.mubr.bf16.gmra.mxu0 %v2608
      %v2736 = vpop.f32.mrf.mxu0
      %v2737 = vadd.f32 0.0, %v2736
      %v2738 = vpop.f32.mrf.mxu0
      %v2739 = vpop.f32.mrf.mxu0
      %v2740 = vadd.f32 0.0, %v2739
      %v2741 = vpop.f32.mrf.mxu0
      %2742 = vmatprep.mubr.bf16.mxu0 0
      %2743 = vmatmul.mubr.bf16.gmra.mxu0 %v2609
      %v2744 = vpop.f32.mrf.mxu0
      %v2745 = vadd.f32 0.0, %v2744
      %v2746 = vpop.f32.mrf.mxu0
      %v2747 = vpop.f32.mrf.mxu0
      %v2748 = vadd.f32 0.0, %v2747
      %v2749 = vpop.f32.mrf.mxu0
      %2750 = vmatprep.mubr.bf16.mxu0 0
      %2751 = vmatmul.mubr.bf16.gmra.mxu0 %v2610
      %v2752 = vpop.f32.mrf.mxu0
      %v2753 = vadd.f32 0.0, %v2752
      %v2754 = vpop.f32.mrf.mxu0
      %v2755 = vpop.f32.mrf.mxu0
      %v2756 = vadd.f32 0.0, %v2755
      %v2757 = vpop.f32.mrf.mxu0
      %2758 = vmatprep.mubr.bf16.mxu0 0
      %2759 = vmatmul.mubr.bf16.gmra.mxu0 %v2611
      %v2760 = vpop.f32.mrf.mxu0
      %v2761 = vadd.f32 0.0, %v2760
      %v2762 = vpop.f32.mrf.mxu0
      %v2763 = vpop.f32.mrf.mxu0
      %v2764 = vadd.f32 0.0, %v2763
      %v2765 = vpop.f32.mrf.mxu0
      %2766 = vmatprep.mubr.bf16.mxu0 0
      %2767 = vmatmul.mubr.bf16.gmra.mxu0 %v2612
      %v2768 = vpop.f32.mrf.mxu0
      %v2769 = vadd.f32 0.0, %v2768
      %v2770 = vpop.f32.mrf.mxu0
      %v2771 = vpop.f32.mrf.mxu0
      %v2772 = vadd.f32 0.0, %v2771
      %v2773 = vpop.f32.mrf.mxu0
      %2774 = vmatprep.mubr.bf16.mxu0 0
      %2775 = vmatmul.mubr.bf16.gmra.mxu0 %v2613
      %v2776 = vpop.f32.mrf.mxu0
      %v2777 = vadd.f32 0.0, %v2776
      %v2778 = vpop.f32.mrf.mxu0
      %v2779 = vpop.f32.mrf.mxu0
      %v2780 = vadd.f32 0.0, %v2779
      %v2781 = vpop.f32.mrf.mxu0
      %2782 = vmatprep.mubr.bf16.mxu0 0
      %2783 = vmatmul.mubr.bf16.gmra.mxu0 %v2614
      %v2784 = vpop.f32.mrf.mxu0
      %v2785 = vadd.f32 0.0, %v2784
      %v2786 = vpop.f32.mrf.mxu0
      %v2787 = vpop.f32.mrf.mxu0
      %v2788 = vadd.f32 0.0, %v2787
      %v2789 = vpop.f32.mrf.mxu0
      %2790 = vmatprep.mubr.bf16.mxu0 0
      %2791 = vmatmul.mubr.bf16.gmra.mxu0 %v2615
      %v2792 = vpop.f32.mrf.mxu0
      %v2793 = vadd.f32 0.0, %v2792
      %v2794 = vpop.f32.mrf.mxu0
      %v2795 = vpop.f32.mrf.mxu0
      %v2796 = vadd.f32 0.0, %v2795
      %v2797 = vpop.f32.mrf.mxu0
      %2798 = vmatprep.mubr.bf16.mxu0 0
      %2799 = vmatmul.mubr.bf16.gmra.mxu0 %v2616
      %v2800 = vpop.f32.mrf.mxu0
      %v2801 = vadd.f32 0.0, %v2800
      %v2802 = vpop.f32.mrf.mxu0
      %v2803 = vpop.f32.mrf.mxu0
      %v2804 = vadd.f32 0.0, %v2803
      %v2805 = vpop.f32.mrf.mxu0
      %2806 = vmatprep.mubr.bf16.mxu0 0
      %2807 = vmatmul.mubr.bf16.gmra.mxu0 %v2617
      %v2808 = vpop.f32.mrf.mxu0
      %v2809 = vadd.f32 0.0, %v2808
      %v2810 = vpop.f32.mrf.mxu0
      %v2811 = vpop.f32.mrf.mxu0
      %v2812 = vadd.f32 0.0, %v2811
      %v2813 = vpop.f32.mrf.mxu0
      %2814 = vmatprep.mubr.bf16.mxu0 0
      %2815 = vmatmul.mubr.bf16.gmra.mxu0 %v2618
      %v2816 = vpop.f32.mrf.mxu0
      %v2817 = vadd.f32 0.0, %v2816
      %v2818 = vpop.f32.mrf.mxu0
      %v2819 = vpop.f32.mrf.mxu0
      %v2820 = vadd.f32 0.0, %v2819
      %v2821 = vpop.f32.mrf.mxu0
      %2822 = vmatprep.mubr.bf16.mxu0 0
      %2823 = vmatmul.mubr.bf16.gmra.mxu0 %v2619
      %v2824 = vpop.f32.mrf.mxu0
      %v2825 = vadd.f32 0.0, %v2824
      %v2826 = vpop.f32.mrf.mxu0
      %v2827 = vpop.f32.mrf.mxu0
      %v2828 = vadd.f32 0.0, %v2827
      %v2829 = vpop.f32.mrf.mxu0
      %2830 = vmatprep.mubr.bf16.mxu0 0
      %2831 = vmatmul.mubr.bf16.gmra.mxu0 %v2620
      %v2832 = vpop.f32.mrf.mxu0
      %v2833 = vadd.f32 0.0, %v2832
      %v2834 = vpop.f32.mrf.mxu0
      %v2835 = vpop.f32.mrf.mxu0
      %v2836 = vadd.f32 0.0, %v2835
      %v2837 = vpop.f32.mrf.mxu0
      %2838 = vmatprep.mubr.bf16.mxu0 0
      %2839 = vmatmul.mubr.bf16.gmra.mxu0 %v2621
      %v2840 = vpop.f32.mrf.mxu0
      %v2841 = vadd.f32 0.0, %v2840
      %v2842 = vpop.f32.mrf.mxu0
      %v2843 = vpop.f32.mrf.mxu0
      %v2844 = vadd.f32 0.0, %v2843
      %v2845 = vpop.f32.mrf.mxu0
      %2846 = vdwg.mxu0
      %v2847 = vadd.f32 %v2493, %v2721
      %v2848 = vadd.f32 %v2494, %v2724
      %v2849 = vadd.f32 %v2495, %v2729
      %v2850 = vadd.f32 %v2496, %v2732
      %v2851 = vadd.f32 %v2497, %v2737
      %v2852 = vadd.f32 %v2498, %v2740
      %v2853 = vadd.f32 %v2499, %v2745
      %v2854 = vadd.f32 %v2500, %v2748
      %v2855 = vadd.f32 %v2501, %v2753
      %v2856 = vadd.f32 %v2502, %v2756
      %v2857 = vadd.f32 %v2503, %v2761
      %v2858 = vadd.f32 %v2504, %v2764
      %v2859 = vadd.f32 %v2505, %v2769
      %v2860 = vadd.f32 %v2506, %v2772
      %v2861 = vadd.f32 %v2507, %v2777
      %v2862 = vadd.f32 %v2508, %v2780
      %v2863 = vadd.f32 %v2509, %v2785
      %v2864 = vadd.f32 %v2510, %v2788
      %v2865 = vadd.f32 %v2511, %v2793
      %v2866 = vadd.f32 %v2512, %v2796
      %v2867 = vadd.f32 %v2513, %v2801
      %v2868 = vadd.f32 %v2514, %v2804
      %v2869 = vadd.f32 %v2515, %v2809
      %v2870 = vadd.f32 %v2516, %v2812
      %v2871 = vadd.f32 %v2517, %v2817
      %v2872 = vadd.f32 %v2518, %v2820
      %v2873 = vadd.f32 %v2519, %v2825
      %v2874 = vadd.f32 %v2520, %v2828
      %v2875 = vadd.f32 %v2521, %v2833
      %v2876 = vadd.f32 %v2522, %v2836
      %v2877 = vadd.f32 %v2523, %v2841
      %v2878 = vadd.f32 %v2524, %v2844
      %2879 = vst [vmem:[#allocation2] sm:$0xff] %v2847
      %2880 = vst [vmem:[#allocation2 + $0x8] sm:$0xff] %v2848
      %2881 = vst [vmem:[#allocation2 + $0x10] sm:$0xff] %v2849
      %2882 = vst [vmem:[#allocation2 + $0x18] sm:$0xff] %v2850
      %2883 = vst [vmem:[#allocation2 + $0x20] sm:$0xff] %v2851
      %2884 = vst [vmem:[#allocation2 + $0x28] sm:$0xff] %v2852
      %2885 = vst [vmem:[#allocation2 + $0x30] sm:$0xff] %v2853
      %2886 = vst [vmem:[#allocation2 + $0x38] sm:$0xff] %v2854
      %2887 = vst [vmem:[#allocation2 + $0x40] sm:$0xff] %v2855
      %2888 = vst [vmem:[#allocation2 + $0x48] sm:$0xff] %v2856
      %2889 = vst [vmem:[#allocation2 + $0x50] sm:$0xff] %v2857
      %2890 = vst [vmem:[#allocation2 + $0x58] sm:$0xff] %v2858
      %2891 = vst [vmem:[#allocation2 + $0x60] sm:$0xff] %v2859
      %2892 = vst [vmem:[#allocation2 + $0x68] sm:$0xff] %v2860
      %2893 = vst [vmem:[#allocation2 + $0x70] sm:$0xff] %v2861
      %2894 = vst [vmem:[#allocation2 + $0x78] sm:$0xff] %v2862
      %2895 = vst [vmem:[#allocation2 + $0x80] sm:$0xff] %v2863
      %2896 = vst [vmem:[#allocation2 + $0x88] sm:$0xff] %v2864
      %2897 = vst [vmem:[#allocation2 + $0x90] sm:$0xff] %v2865
      %2898 = vst [vmem:[#allocation2 + $0x98] sm:$0xff] %v2866
      %2899 = vst [vmem:[#allocation2 + $0xa0] sm:$0xff] %v2867
      %2900 = vst [vmem:[#allocation2 + $0xa8] sm:$0xff] %v2868
      %2901 = vst [vmem:[#allocation2 + $0xb0] sm:$0xff] %v2869
      %2902 = vst [vmem:[#allocation2 + $0xb8] sm:$0xff] %v2870
      %2903 = vst [vmem:[#allocation2 + $0xc0] sm:$0xff] %v2871
      %2904 = vst [vmem:[#allocation2 + $0xc8] sm:$0xff] %v2872
      %2905 = vst [vmem:[#allocation2 + $0xd0] sm:$0xff] %v2873
      %2906 = vst [vmem:[#allocation2 + $0xd8] sm:$0xff] %v2874
      %2907 = vst [vmem:[#allocation2 + $0xe0] sm:$0xff] %v2875
      %2908 = vst [vmem:[#allocation2 + $0xe8] sm:$0xff] %v2876
      %2909 = vst [vmem:[#allocation2 + $0xf0] sm:$0xff] %v2877
      %2910 = vst [vmem:[#allocation2 + $0xf8] sm:$0xff] %v2878
      %s2911 = scalar_lea.vmem %s163, 16
      %v2912 = vld [vmem:[%s2911] sm:$0xf]
      %v2913 = vld [vmem:[%s2911 + $0x4] sm:$0xf]
      %v2914 = vld [vmem:[%s2911 + $0x8] sm:$0xf]
      %v2915 = vld [vmem:[%s2911 + $0xc] sm:$0xf]
      %v2916 = vld [vmem:[%s2911 + $0x10] sm:$0xf]
      %v2917 = vld [vmem:[%s2911 + $0x14] sm:$0xf]
      %v2918 = vld [vmem:[%s2911 + $0x18] sm:$0xf]
      %v2919 = vld [vmem:[%s2911 + $0x1c] sm:$0xf]
      %v2920 = vld [vmem:[%s2911 + $0x20] sm:$0xf]
      %v2921 = vld [vmem:[%s2911 + $0x24] sm:$0xf]
      %v2922 = vld [vmem:[%s2911 + $0x28] sm:$0xf]
      %v2923 = vld [vmem:[%s2911 + $0x2c] sm:$0xf]
      %v2924 = vld [vmem:[%s2911 + $0x30] sm:$0xf]
      %v2925 = vld [vmem:[%s2911 + $0x34] sm:$0xf]
      %v2926 = vld [vmem:[%s2911 + $0x38] sm:$0xf]
      %v2927 = vld [vmem:[%s2911 + $0x3c] sm:$0xf]
      %v2928 = vld [vmem:[%s2911 + $0x40] sm:$0xf]
      %v2929 = vld [vmem:[%s2911 + $0x44] sm:$0xf]
      %v2930 = vld [vmem:[%s2911 + $0x48] sm:$0xf]
      %v2931 = vld [vmem:[%s2911 + $0x4c] sm:$0xf]
      %v2932 = vld [vmem:[%s2911 + $0x50] sm:$0xf]
      %v2933 = vld [vmem:[%s2911 + $0x54] sm:$0xf]
      %v2934 = vld [vmem:[%s2911 + $0x58] sm:$0xf]
      %v2935 = vld [vmem:[%s2911 + $0x5c] sm:$0xf]
      %v2936 = vld [vmem:[%s2911 + $0x60] sm:$0xf]
      %v2937 = vld [vmem:[%s2911 + $0x64] sm:$0xf]
      %v2938 = vld [vmem:[%s2911 + $0x68] sm:$0xf]
      %v2939 = vld [vmem:[%s2911 + $0x6c] sm:$0xf]
      %v2940 = vld [vmem:[%s2911 + $0x70] sm:$0xf]
      %v2941 = vld [vmem:[%s2911 + $0x74] sm:$0xf]
      %v2942 = vld [vmem:[%s2911 + $0x78] sm:$0xf]
      %v2943 = vld [vmem:[%s2911 + $0x7c] sm:$0xf]
      %v2944 = vld [vmem:[#allocation2] sm:$0xff]
      %v2945 = vld [vmem:[#allocation2 + $0x8] sm:$0xff]
      %v2946 = vld [vmem:[#allocation2 + $0x10] sm:$0xff]
      %v2947 = vld [vmem:[#allocation2 + $0x18] sm:$0xff]
      %v2948 = vld [vmem:[#allocation2 + $0x20] sm:$0xff]
      %v2949 = vld [vmem:[#allocation2 + $0x28] sm:$0xff]
      %v2950 = vld [vmem:[#allocation2 + $0x30] sm:$0xff]
      %v2951 = vld [vmem:[#allocation2 + $0x38] sm:$0xff]
      %v2952 = vld [vmem:[#allocation2 + $0x40] sm:$0xff]
      %v2953 = vld [vmem:[#allocation2 + $0x48] sm:$0xff]
      %v2954 = vld [vmem:[#allocation2 + $0x50] sm:$0xff]
      %v2955 = vld [vmem:[#allocation2 + $0x58] sm:$0xff]
      %v2956 = vld [vmem:[#allocation2 + $0x60] sm:$0xff]
      %v2957 = vld [vmem:[#allocation2 + $0x68] sm:$0xff]
      %v2958 = vld [vmem:[#allocation2 + $0x70] sm:$0xff]
      %v2959 = vld [vmem:[#allocation2 + $0x78] sm:$0xff]
      %v2960 = vld [vmem:[#allocation2 + $0x80] sm:$0xff]
      %v2961 = vld [vmem:[#allocation2 + $0x88] sm:$0xff]
      %v2962 = vld [vmem:[#allocation2 + $0x90] sm:$0xff]
      %v2963 = vld [vmem:[#allocation2 + $0x98] sm:$0xff]
      %v2964 = vld [vmem:[#allocation2 + $0xa0] sm:$0xff]
      %v2965 = vld [vmem:[#allocation2 + $0xa8] sm:$0xff]
      %v2966 = vld [vmem:[#allocation2 + $0xb0] sm:$0xff]
      %v2967 = vld [vmem:[#allocation2 + $0xb8] sm:$0xff]
      %v2968 = vld [vmem:[#allocation2 + $0xc0] sm:$0xff]
      %v2969 = vld [vmem:[#allocation2 + $0xc8] sm:$0xff]
      %v2970 = vld [vmem:[#allocation2 + $0xd0] sm:$0xff]
      %v2971 = vld [vmem:[#allocation2 + $0xd8] sm:$0xff]
      %v2972 = vld [vmem:[#allocation2 + $0xe0] sm:$0xff]
      %v2973 = vld [vmem:[#allocation2 + $0xe8] sm:$0xff]
      %v2974 = vld [vmem:[#allocation2 + $0xf0] sm:$0xff]
      %v2975 = vld [vmem:[#allocation2 + $0xf8] sm:$0xff]
      %s2976 = scalar_lea.vmem %s1, 384
      %v2977 = vld [vmem:[%s2976] sm:$0xf]
      %v2978 = vld [vmem:[%s2976 + $0x4] sm:$0xf]
      %v2979 = vld [vmem:[%s2976 + $0x8] sm:$0xf]
      %v2980 = vld [vmem:[%s2976 + $0xc] sm:$0xf]
      %v2981 = vld [vmem:[%s2976 + $0x10] sm:$0xf]
      %v2982 = vld [vmem:[%s2976 + $0x14] sm:$0xf]
      %v2983 = vld [vmem:[%s2976 + $0x18] sm:$0xf]
      %v2984 = vld [vmem:[%s2976 + $0x1c] sm:$0xf]
      %v2985 = vld [vmem:[%s2976 + $0x20] sm:$0xf]
      %v2986 = vld [vmem:[%s2976 + $0x24] sm:$0xf]
      %v2987 = vld [vmem:[%s2976 + $0x28] sm:$0xf]
      %v2988 = vld [vmem:[%s2976 + $0x2c] sm:$0xf]
      %v2989 = vld [vmem:[%s2976 + $0x30] sm:$0xf]
      %v2990 = vld [vmem:[%s2976 + $0x34] sm:$0xf]
      %v2991 = vld [vmem:[%s2976 + $0x38] sm:$0xf]
      %v2992 = vld [vmem:[%s2976 + $0x3c] sm:$0xf]
      %v3025 = vunpack.c.l.b16 %v2912
      %v3026 = vunpack.c.l.b16 %v2913
      %v3027 = vunpack.c.l.b16 %v2914
      %v3028 = vunpack.c.l.b16 %v2915
      %v3029 = vunpack.c.l.b16 %v2916
      %v3030 = vunpack.c.l.b16 %v2917
      %v3031 = vunpack.c.l.b16 %v2918
      %v3032 = vunpack.c.l.b16 %v2919
      %v3033 = vunpack.c.l.b16 %v2920
      %v3034 = vunpack.c.l.b16 %v2921
      %v3035 = vunpack.c.l.b16 %v2922
      %v3036 = vunpack.c.l.b16 %v2923
      %v3037 = vunpack.c.l.b16 %v2924
      %v3038 = vunpack.c.l.b16 %v2925
      %v3039 = vunpack.c.l.b16 %v2926
      %v3040 = vunpack.c.l.b16 %v2927
      %v3041 = vunpack.c.l.b16 %v2928
      %v3042 = vunpack.c.l.b16 %v2929
      %v3043 = vunpack.c.l.b16 %v2930
      %v3044 = vunpack.c.l.b16 %v2931
      %v3045 = vunpack.c.l.b16 %v2932
      %v3046 = vunpack.c.l.b16 %v2933
      %v3047 = vunpack.c.l.b16 %v2934
      %v3048 = vunpack.c.l.b16 %v2935
      %v3049 = vunpack.c.l.b16 %v2936
      %v3050 = vunpack.c.l.b16 %v2937
      %v3051 = vunpack.c.l.b16 %v2938
      %v3052 = vunpack.c.l.b16 %v2939
      %v3053 = vunpack.c.l.b16 %v2940
      %v3054 = vunpack.c.l.b16 %v2941
      %v3055 = vunpack.c.l.b16 %v2942
      %v3056 = vunpack.c.l.b16 %v2943
      %v3057 = vpack.c.b16 %v3026, %v3025
      %v3058 = vpack.c.b16 %v3028, %v3027
      %v3059 = vpack.c.b16 %v3030, %v3029
      %v3060 = vpack.c.b16 %v3032, %v3031
      %v3061 = vpack.c.b16 %v3034, %v3033
      %v3062 = vpack.c.b16 %v3036, %v3035
      %v3063 = vpack.c.b16 %v3038, %v3037
      %v3064 = vpack.c.b16 %v3040, %v3039
      %v3065 = vpack.c.b16 %v3042, %v3041
      %v3066 = vpack.c.b16 %v3044, %v3043
      %v3067 = vpack.c.b16 %v3046, %v3045
      %v3068 = vpack.c.b16 %v3048, %v3047
      %v3069 = vpack.c.b16 %v3050, %v3049
      %v3070 = vpack.c.b16 %v3052, %v3051
      %v3071 = vpack.c.b16 %v3054, %v3053
      %v3072 = vpack.c.b16 %v3056, %v3055
      %v3105 = vunpack.c.l.b16 %v2977
      %v3106 = vunpack.c.l.b16 %v2978
      %v3107 = vunpack.c.l.b16 %v2979
      %v3108 = vunpack.c.l.b16 %v2980
      %v3109 = vunpack.c.l.b16 %v2981
      %v3110 = vunpack.c.l.b16 %v2982
      %v3111 = vunpack.c.l.b16 %v2983
      %v3112 = vunpack.c.l.b16 %v2984
      %v3113 = vunpack.c.l.b16 %v2985
      %v3114 = vunpack.c.l.b16 %v2986
      %v3115 = vunpack.c.l.b16 %v2987
      %v3116 = vunpack.c.l.b16 %v2988
      %v3117 = vunpack.c.l.b16 %v2989
      %v3118 = vunpack.c.l.b16 %v2990
      %v3119 = vunpack.c.l.b16 %v2991
      %v3120 = vunpack.c.l.b16 %v2992
      %v3121 = vpack.c.b16 %v3106, %v3105
      %v3122 = vpack.c.b16 %v3108, %v3107
      %v3123 = vpack.c.b16 %v3110, %v3109
      %v3124 = vpack.c.b16 %v3112, %v3111
      %v3125 = vpack.c.b16 %v3114, %v3113
      %v3126 = vpack.c.b16 %v3116, %v3115
      %v3127 = vpack.c.b16 %v3118, %v3117
      %v3128 = vpack.c.b16 %v3120, %v3119
      %3137 = vmatprep.subr.bf16.mxu0 0
      %3138 = vmatpush1.bf16.msra.mxu0 %v3128
      %3139 = vmatprep.subr.bf16.mxu0 0
      %3140 = vmatpush1.bf16.msra.mxu0 %v3127
      %3141 = vmatprep.subr.bf16.mxu0 0
      %3142 = vmatpush1.bf16.msra.mxu0 %v3126
      %3143 = vmatprep.subr.bf16.mxu0 0
      %3144 = vmatpush1.bf16.msra.mxu0 %v3125
      %3145 = vmatprep.subr.bf16.mxu0 0
      %3146 = vmatpush1.bf16.msra.mxu0 %v3124
      %3147 = vmatprep.subr.bf16.mxu0 0
      %3148 = vmatpush1.bf16.msra.mxu0 %v3123
      %3149 = vmatprep.subr.bf16.mxu0 0
      %3150 = vmatpush1.bf16.msra.mxu0 %v3122
      %3151 = vmatprep.subr.bf16.mxu0 0
      %3152 = vmatpush1.bf16.msra.mxu0 %v3121
      %3153 = vmatprep.subr.bf16.mxu0 0
      %3154 = vmatpush2.bf16.msra.mxu0 0
      %3155 = vmatprep.subr.bf16.mxu0 0
      %3156 = vmatpush2.bf16.msra.mxu0 0
      %3157 = vmatprep.subr.bf16.mxu0 0
      %3158 = vmatpush2.bf16.msra.mxu0 0
      %3159 = vmatprep.subr.bf16.mxu0 0
      %3160 = vmatpush2.bf16.msra.mxu0 0
      %3161 = vmatprep.subr.bf16.mxu0 0
      %3162 = vmatpush2.bf16.msra.mxu0 0
      %3163 = vmatprep.subr.bf16.mxu0 0
      %3164 = vmatpush2.bf16.msra.mxu0 0
      %3165 = vmatprep.subr.bf16.mxu0 0
      %3166 = vmatpush2.bf16.msra.mxu0 0
      %3167 = vmatprep.subr.bf16.mxu0 0
      %3168 = vmatpush2.bf16.msra.mxu0 0
      %3169 = vmatprep.mubr.bf16.mxu0 0
      %3170 = vmatmul.mubr.bf16.gmra.mxu0 %v3057
      %v3171 = vpop.f32.mrf.mxu0
      %v3172 = vadd.f32 0.0, %v3171
      %v3173 = vpop.f32.mrf.mxu0
      %v3174 = vpop.f32.mrf.mxu0
      %v3175 = vadd.f32 0.0, %v3174
      %v3176 = vpop.f32.mrf.mxu0
      %3177 = vmatprep.mubr.bf16.mxu0 0
      %3178 = vmatmul.mubr.bf16.gmra.mxu0 %v3058
      %v3179 = vpop.f32.mrf.mxu0
      %v3180 = vadd.f32 0.0, %v3179
      %v3181 = vpop.f32.mrf.mxu0
      %v3182 = vpop.f32.mrf.mxu0
      %v3183 = vadd.f32 0.0, %v3182
      %v3184 = vpop.f32.mrf.mxu0
      %3185 = vmatprep.mubr.bf16.mxu0 0
      %3186 = vmatmul.mubr.bf16.gmra.mxu0 %v3059
      %v3187 = vpop.f32.mrf.mxu0
      %v3188 = vadd.f32 0.0, %v3187
      %v3189 = vpop.f32.mrf.mxu0
      %v3190 = vpop.f32.mrf.mxu0
      %v3191 = vadd.f32 0.0, %v3190
      %v3192 = vpop.f32.mrf.mxu0
      %3193 = vmatprep.mubr.bf16.mxu0 0
      %3194 = vmatmul.mubr.bf16.gmra.mxu0 %v3060
      %v3195 = vpop.f32.mrf.mxu0
      %v3196 = vadd.f32 0.0, %v3195
      %v3197 = vpop.f32.mrf.mxu0
      %v3198 = vpop.f32.mrf.mxu0
      %v3199 = vadd.f32 0.0, %v3198
      %v3200 = vpop.f32.mrf.mxu0
      %3201 = vmatprep.mubr.bf16.mxu0 0
      %3202 = vmatmul.mubr.bf16.gmra.mxu0 %v3061
      %v3203 = vpop.f32.mrf.mxu0
      %v3204 = vadd.f32 0.0, %v3203
      %v3205 = vpop.f32.mrf.mxu0
      %v3206 = vpop.f32.mrf.mxu0
      %v3207 = vadd.f32 0.0, %v3206
      %v3208 = vpop.f32.mrf.mxu0
      %3209 = vmatprep.mubr.bf16.mxu0 0
      %3210 = vmatmul.mubr.bf16.gmra.mxu0 %v3062
      %v3211 = vpop.f32.mrf.mxu0
      %v3212 = vadd.f32 0.0, %v3211
      %v3213 = vpop.f32.mrf.mxu0
      %v3214 = vpop.f32.mrf.mxu0
      %v3215 = vadd.f32 0.0, %v3214
      %v3216 = vpop.f32.mrf.mxu0
      %3217 = vmatprep.mubr.bf16.mxu0 0
      %3218 = vmatmul.mubr.bf16.gmra.mxu0 %v3063
      %v3219 = vpop.f32.mrf.mxu0
      %v3220 = vadd.f32 0.0, %v3219
      %v3221 = vpop.f32.mrf.mxu0
      %v3222 = vpop.f32.mrf.mxu0
      %v3223 = vadd.f32 0.0, %v3222
      %v3224 = vpop.f32.mrf.mxu0
      %3225 = vmatprep.mubr.bf16.mxu0 0
      %3226 = vmatmul.mubr.bf16.gmra.mxu0 %v3064
      %v3227 = vpop.f32.mrf.mxu0
      %v3228 = vadd.f32 0.0, %v3227
      %v3229 = vpop.f32.mrf.mxu0
      %v3230 = vpop.f32.mrf.mxu0
      %v3231 = vadd.f32 0.0, %v3230
      %v3232 = vpop.f32.mrf.mxu0
      %3233 = vmatprep.mubr.bf16.mxu0 0
      %3234 = vmatmul.mubr.bf16.gmra.mxu0 %v3065
      %v3235 = vpop.f32.mrf.mxu0
      %v3236 = vadd.f32 0.0, %v3235
      %v3237 = vpop.f32.mrf.mxu0
      %v3238 = vpop.f32.mrf.mxu0
      %v3239 = vadd.f32 0.0, %v3238
      %v3240 = vpop.f32.mrf.mxu0
      %3241 = vmatprep.mubr.bf16.mxu0 0
      %3242 = vmatmul.mubr.bf16.gmra.mxu0 %v3066
      %v3243 = vpop.f32.mrf.mxu0
      %v3244 = vadd.f32 0.0, %v3243
      %v3245 = vpop.f32.mrf.mxu0
      %v3246 = vpop.f32.mrf.mxu0
      %v3247 = vadd.f32 0.0, %v3246
      %v3248 = vpop.f32.mrf.mxu0
      %3249 = vmatprep.mubr.bf16.mxu0 0
      %3250 = vmatmul.mubr.bf16.gmra.mxu0 %v3067
      %v3251 = vpop.f32.mrf.mxu0
      %v3252 = vadd.f32 0.0, %v3251
      %v3253 = vpop.f32.mrf.mxu0
      %v3254 = vpop.f32.mrf.mxu0
      %v3255 = vadd.f32 0.0, %v3254
      %v3256 = vpop.f32.mrf.mxu0
      %3257 = vmatprep.mubr.bf16.mxu0 0
      %3258 = vmatmul.mubr.bf16.gmra.mxu0 %v3068
      %v3259 = vpop.f32.mrf.mxu0
      %v3260 = vadd.f32 0.0, %v3259
      %v3261 = vpop.f32.mrf.mxu0
      %v3262 = vpop.f32.mrf.mxu0
      %v3263 = vadd.f32 0.0, %v3262
      %v3264 = vpop.f32.mrf.mxu0
      %3265 = vmatprep.mubr.bf16.mxu0 0
      %3266 = vmatmul.mubr.bf16.gmra.mxu0 %v3069
      %v3267 = vpop.f32.mrf.mxu0
      %v3268 = vadd.f32 0.0, %v3267
      %v3269 = vpop.f32.mrf.mxu0
      %v3270 = vpop.f32.mrf.mxu0
      %v3271 = vadd.f32 0.0, %v3270
      %v3272 = vpop.f32.mrf.mxu0
      %3273 = vmatprep.mubr.bf16.mxu0 0
      %3274 = vmatmul.mubr.bf16.gmra.mxu0 %v3070
      %v3275 = vpop.f32.mrf.mxu0
      %v3276 = vadd.f32 0.0, %v3275
      %v3277 = vpop.f32.mrf.mxu0
      %v3278 = vpop.f32.mrf.mxu0
      %v3279 = vadd.f32 0.0, %v3278
      %v3280 = vpop.f32.mrf.mxu0
      %3281 = vmatprep.mubr.bf16.mxu0 0
      %3282 = vmatmul.mubr.bf16.gmra.mxu0 %v3071
      %v3283 = vpop.f32.mrf.mxu0
      %v3284 = vadd.f32 0.0, %v3283
      %v3285 = vpop.f32.mrf.mxu0
      %v3286 = vpop.f32.mrf.mxu0
      %v3287 = vadd.f32 0.0, %v3286
      %v3288 = vpop.f32.mrf.mxu0
      %3289 = vmatprep.mubr.bf16.mxu0 0
      %3290 = vmatmul.mubr.bf16.gmra.mxu0 %v3072
      %v3291 = vpop.f32.mrf.mxu0
      %v3292 = vadd.f32 0.0, %v3291
      %v3293 = vpop.f32.mrf.mxu0
      %v3294 = vpop.f32.mrf.mxu0
      %v3295 = vadd.f32 0.0, %v3294
      %v3296 = vpop.f32.mrf.mxu0
      %3297 = vdwg.mxu0
      %v3298 = vadd.f32 %v2944, %v3172
      %v3299 = vadd.f32 %v2945, %v3175
      %v3300 = vadd.f32 %v2946, %v3180
      %v3301 = vadd.f32 %v2947, %v3183
      %v3302 = vadd.f32 %v2948, %v3188
      %v3303 = vadd.f32 %v2949, %v3191
      %v3304 = vadd.f32 %v2950, %v3196
      %v3305 = vadd.f32 %v2951, %v3199
      %v3306 = vadd.f32 %v2952, %v3204
      %v3307 = vadd.f32 %v2953, %v3207
      %v3308 = vadd.f32 %v2954, %v3212
      %v3309 = vadd.f32 %v2955, %v3215
      %v3310 = vadd.f32 %v2956, %v3220
      %v3311 = vadd.f32 %v2957, %v3223
      %v3312 = vadd.f32 %v2958, %v3228
      %v3313 = vadd.f32 %v2959, %v3231
      %v3314 = vadd.f32 %v2960, %v3236
      %v3315 = vadd.f32 %v2961, %v3239
      %v3316 = vadd.f32 %v2962, %v3244
      %v3317 = vadd.f32 %v2963, %v3247
      %v3318 = vadd.f32 %v2964, %v3252
      %v3319 = vadd.f32 %v2965, %v3255
      %v3320 = vadd.f32 %v2966, %v3260
      %v3321 = vadd.f32 %v2967, %v3263
      %v3322 = vadd.f32 %v2968, %v3268
      %v3323 = vadd.f32 %v2969, %v3271
      %v3324 = vadd.f32 %v2970, %v3276
      %v3325 = vadd.f32 %v2971, %v3279
      %v3326 = vadd.f32 %v2972, %v3284
      %v3327 = vadd.f32 %v2973, %v3287
      %v3328 = vadd.f32 %v2974, %v3292
      %v3329 = vadd.f32 %v2975, %v3295
      %3330 = vst [vmem:[#allocation2] sm:$0xff] %v3298
      %3331 = vst [vmem:[#allocation2 + $0x8] sm:$0xff] %v3299
      %3332 = vst [vmem:[#allocation2 + $0x10] sm:$0xff] %v3300
      %3333 = vst [vmem:[#allocation2 + $0x18] sm:$0xff] %v3301
      %3334 = vst [vmem:[#allocation2 + $0x20] sm:$0xff] %v3302
      %3335 = vst [vmem:[#allocation2 + $0x28] sm:$0xff] %v3303
      %3336 = vst [vmem:[#allocation2 + $0x30] sm:$0xff] %v3304
      %3337 = vst [vmem:[#allocation2 + $0x38] sm:$0xff] %v3305
      %3338 = vst [vmem:[#allocation2 + $0x40] sm:$0xff] %v3306
      %3339 = vst [vmem:[#allocation2 + $0x48] sm:$0xff] %v3307
      %3340 = vst [vmem:[#allocation2 + $0x50] sm:$0xff] %v3308
      %3341 = vst [vmem:[#allocation2 + $0x58] sm:$0xff] %v3309
      %3342 = vst [vmem:[#allocation2 + $0x60] sm:$0xff] %v3310
      %3343 = vst [vmem:[#allocation2 + $0x68] sm:$0xff] %v3311
      %3344 = vst [vmem:[#allocation2 + $0x70] sm:$0xff] %v3312
      %3345 = vst [vmem:[#allocation2 + $0x78] sm:$0xff] %v3313
      %3346 = vst [vmem:[#allocation2 + $0x80] sm:$0xff] %v3314
      %3347 = vst [vmem:[#allocation2 + $0x88] sm:$0xff] %v3315
      %3348 = vst [vmem:[#allocation2 + $0x90] sm:$0xff] %v3316
      %3349 = vst [vmem:[#allocation2 + $0x98] sm:$0xff] %v3317
      %3350 = vst [vmem:[#allocation2 + $0xa0] sm:$0xff] %v3318
      %3351 = vst [vmem:[#allocation2 + $0xa8] sm:$0xff] %v3319
      %3352 = vst [vmem:[#allocation2 + $0xb0] sm:$0xff] %v3320
      %3353 = vst [vmem:[#allocation2 + $0xb8] sm:$0xff] %v3321
      %3354 = vst [vmem:[#allocation2 + $0xc0] sm:$0xff] %v3322
      %3355 = vst [vmem:[#allocation2 + $0xc8] sm:$0xff] %v3323
      %3356 = vst [vmem:[#allocation2 + $0xd0] sm:$0xff] %v3324
      %3357 = vst [vmem:[#allocation2 + $0xd8] sm:$0xff] %v3325
      %3358 = vst [vmem:[#allocation2 + $0xe0] sm:$0xff] %v3326
      %3359 = vst [vmem:[#allocation2 + $0xe8] sm:$0xff] %v3327
      %3360 = vst [vmem:[#allocation2 + $0xf0] sm:$0xff] %v3328
      %3361 = vst [vmem:[#allocation2 + $0xf8] sm:$0xff] %v3329
      %s3362 = scalar_lea.vmem %s163, 160
      %v3363 = vld [vmem:[%s3362] sm:$0xf]
      %v3364 = vld [vmem:[%s3362 + $0x4] sm:$0xf]
      %v3365 = vld [vmem:[%s3362 + $0x8] sm:$0xf]
      %v3366 = vld [vmem:[%s3362 + $0xc] sm:$0xf]
      %v3367 = vld [vmem:[%s3362 + $0x10] sm:$0xf]
      %v3368 = vld [vmem:[%s3362 + $0x14] sm:$0xf]
      %v3369 = vld [vmem:[%s3362 + $0x18] sm:$0xf]
      %v3370 = vld [vmem:[%s3362 + $0x1c] sm:$0xf]
      %v3371 = vld [vmem:[%s3362 + $0x20] sm:$0xf]
      %v3372 = vld [vmem:[%s3362 + $0x24] sm:$0xf]
      %v3373 = vld [vmem:[%s3362 + $0x28] sm:$0xf]
      %v3374 = vld [vmem:[%s3362 + $0x2c] sm:$0xf]
      %v3375 = vld [vmem:[%s3362 + $0x30] sm:$0xf]
      %v3376 = vld [vmem:[%s3362 + $0x34] sm:$0xf]
      %v3377 = vld [vmem:[%s3362 + $0x38] sm:$0xf]
      %v3378 = vld [vmem:[%s3362 + $0x3c] sm:$0xf]
      %v3379 = vld [vmem:[%s3362 + $0x40] sm:$0xf]
      %v3380 = vld [vmem:[%s3362 + $0x44] sm:$0xf]
      %v3381 = vld [vmem:[%s3362 + $0x48] sm:$0xf]
      %v3382 = vld [vmem:[%s3362 + $0x4c] sm:$0xf]
      %v3383 = vld [vmem:[%s3362 + $0x50] sm:$0xf]
      %v3384 = vld [vmem:[%s3362 + $0x54] sm:$0xf]
      %v3385 = vld [vmem:[%s3362 + $0x58] sm:$0xf]
      %v3386 = vld [vmem:[%s3362 + $0x5c] sm:$0xf]
      %v3387 = vld [vmem:[%s3362 + $0x60] sm:$0xf]
      %v3388 = vld [vmem:[%s3362 + $0x64] sm:$0xf]
      %v3389 = vld [vmem:[%s3362 + $0x68] sm:$0xf]
      %v3390 = vld [vmem:[%s3362 + $0x6c] sm:$0xf]
      %v3391 = vld [vmem:[%s3362 + $0x70] sm:$0xf]
      %v3392 = vld [vmem:[%s3362 + $0x74] sm:$0xf]
      %v3393 = vld [vmem:[%s3362 + $0x78] sm:$0xf]
      %v3394 = vld [vmem:[%s3362 + $0x7c] sm:$0xf]
      %v3395 = vld [vmem:[#allocation2] sm:$0xff]
      %v3396 = vld [vmem:[#allocation2 + $0x8] sm:$0xff]
      %v3397 = vld [vmem:[#allocation2 + $0x10] sm:$0xff]
      %v3398 = vld [vmem:[#allocation2 + $0x18] sm:$0xff]
      %v3399 = vld [vmem:[#allocation2 + $0x20] sm:$0xff]
      %v3400 = vld [vmem:[#allocation2 + $0x28] sm:$0xff]
      %v3401 = vld [vmem:[#allocation2 + $0x30] sm:$0xff]
      %v3402 = vld [vmem:[#allocation2 + $0x38] sm:$0xff]
      %v3403 = vld [vmem:[#allocation2 + $0x40] sm:$0xff]
      %v3404 = vld [vmem:[#allocation2 + $0x48] sm:$0xff]
      %v3405 = vld [vmem:[#allocation2 + $0x50] sm:$0xff]
      %v3406 = vld [vmem:[#allocation2 + $0x58] sm:$0xff]
      %v3407 = vld [vmem:[#allocation2 + $0x60] sm:$0xff]
      %v3408 = vld [vmem:[#allocation2 + $0x68] sm:$0xff]
      %v3409 = vld [vmem:[#allocation2 + $0x70] sm:$0xff]
      %v3410 = vld [vmem:[#allocation2 + $0x78] sm:$0xff]
      %v3411 = vld [vmem:[#allocation2 + $0x80] sm:$0xff]
      %v3412 = vld [vmem:[#allocation2 + $0x88] sm:$0xff]
      %v3413 = vld [vmem:[#allocation2 + $0x90] sm:$0xff]
      %v3414 = vld [vmem:[#allocation2 + $0x98] sm:$0xff]
      %v3415 = vld [vmem:[#allocation2 + $0xa0] sm:$0xff]
      %v3416 = vld [vmem:[#allocation2 + $0xa8] sm:$0xff]
      %v3417 = vld [vmem:[#allocation2 + $0xb0] sm:$0xff]
      %v3418 = vld [vmem:[#allocation2 + $0xb8] sm:$0xff]
      %v3419 = vld [vmem:[#allocation2 + $0xc0] sm:$0xff]
      %v3420 = vld [vmem:[#allocation2 + $0xc8] sm:$0xff]
      %v3421 = vld [vmem:[#allocation2 + $0xd0] sm:$0xff]
      %v3422 = vld [vmem:[#allocation2 + $0xd8] sm:$0xff]
      %v3423 = vld [vmem:[#allocation2 + $0xe0] sm:$0xff]
      %v3424 = vld [vmem:[#allocation2 + $0xe8] sm:$0xff]
      %v3425 = vld [vmem:[#allocation2 + $0xf0] sm:$0xff]
      %v3426 = vld [vmem:[#allocation2 + $0xf8] sm:$0xff]
      %s3427 = scalar_lea.vmem %s1, 448
      %v3428 = vld [vmem:[%s3427] sm:$0xf]
      %v3429 = vld [vmem:[%s3427 + $0x4] sm:$0xf]
      %v3430 = vld [vmem:[%s3427 + $0x8] sm:$0xf]
      %v3431 = vld [vmem:[%s3427 + $0xc] sm:$0xf]
      %v3432 = vld [vmem:[%s3427 + $0x10] sm:$0xf]
      %v3433 = vld [vmem:[%s3427 + $0x14] sm:$0xf]
      %v3434 = vld [vmem:[%s3427 + $0x18] sm:$0xf]
      %v3435 = vld [vmem:[%s3427 + $0x1c] sm:$0xf]
      %v3436 = vld [vmem:[%s3427 + $0x20] sm:$0xf]
      %v3437 = vld [vmem:[%s3427 + $0x24] sm:$0xf]
      %v3438 = vld [vmem:[%s3427 + $0x28] sm:$0xf]
      %v3439 = vld [vmem:[%s3427 + $0x2c] sm:$0xf]
      %v3440 = vld [vmem:[%s3427 + $0x30] sm:$0xf]
      %v3441 = vld [vmem:[%s3427 + $0x34] sm:$0xf]
      %v3442 = vld [vmem:[%s3427 + $0x38] sm:$0xf]
      %v3443 = vld [vmem:[%s3427 + $0x3c] sm:$0xf]
      %v3476 = vunpack.c.l.b16 %v3363
      %v3477 = vunpack.c.l.b16 %v3364
      %v3478 = vunpack.c.l.b16 %v3365
      %v3479 = vunpack.c.l.b16 %v3366
      %v3480 = vunpack.c.l.b16 %v3367
      %v3481 = vunpack.c.l.b16 %v3368
      %v3482 = vunpack.c.l.b16 %v3369
      %v3483 = vunpack.c.l.b16 %v3370
      %v3484 = vunpack.c.l.b16 %v3371
      %v3485 = vunpack.c.l.b16 %v3372
      %v3486 = vunpack.c.l.b16 %v3373
      %v3487 = vunpack.c.l.b16 %v3374
      %v3488 = vunpack.c.l.b16 %v3375
      %v3489 = vunpack.c.l.b16 %v3376
      %v3490 = vunpack.c.l.b16 %v3377
      %v3491 = vunpack.c.l.b16 %v3378
      %v3492 = vunpack.c.l.b16 %v3379
      %v3493 = vunpack.c.l.b16 %v3380
      %v3494 = vunpack.c.l.b16 %v3381
      %v3495 = vunpack.c.l.b16 %v3382
      %v3496 = vunpack.c.l.b16 %v3383
      %v3497 = vunpack.c.l.b16 %v3384
      %v3498 = vunpack.c.l.b16 %v3385
      %v3499 = vunpack.c.l.b16 %v3386
      %v3500 = vunpack.c.l.b16 %v3387
      %v3501 = vunpack.c.l.b16 %v3388
      %v3502 = vunpack.c.l.b16 %v3389
      %v3503 = vunpack.c.l.b16 %v3390
      %v3504 = vunpack.c.l.b16 %v3391
      %v3505 = vunpack.c.l.b16 %v3392
      %v3506 = vunpack.c.l.b16 %v3393
      %v3507 = vunpack.c.l.b16 %v3394
      %v3508 = vpack.c.b16 %v3477, %v3476
      %v3509 = vpack.c.b16 %v3479, %v3478
      %v3510 = vpack.c.b16 %v3481, %v3480
      %v3511 = vpack.c.b16 %v3483, %v3482
      %v3512 = vpack.c.b16 %v3485, %v3484
      %v3513 = vpack.c.b16 %v3487, %v3486
      %v3514 = vpack.c.b16 %v3489, %v3488
      %v3515 = vpack.c.b16 %v3491, %v3490
      %v3516 = vpack.c.b16 %v3493, %v3492
      %v3517 = vpack.c.b16 %v3495, %v3494
      %v3518 = vpack.c.b16 %v3497, %v3496
      %v3519 = vpack.c.b16 %v3499, %v3498
      %v3520 = vpack.c.b16 %v3501, %v3500
      %v3521 = vpack.c.b16 %v3503, %v3502
      %v3522 = vpack.c.b16 %v3505, %v3504
      %v3523 = vpack.c.b16 %v3507, %v3506
      %v3556 = vunpack.c.l.b16 %v3428
      %v3557 = vunpack.c.l.b16 %v3429
      %v3558 = vunpack.c.l.b16 %v3430
      %v3559 = vunpack.c.l.b16 %v3431
      %v3560 = vunpack.c.l.b16 %v3432
      %v3561 = vunpack.c.l.b16 %v3433
      %v3562 = vunpack.c.l.b16 %v3434
      %v3563 = vunpack.c.l.b16 %v3435
      %v3564 = vunpack.c.l.b16 %v3436
      %v3565 = vunpack.c.l.b16 %v3437
      %v3566 = vunpack.c.l.b16 %v3438
      %v3567 = vunpack.c.l.b16 %v3439
      %v3568 = vunpack.c.l.b16 %v3440
      %v3569 = vunpack.c.l.b16 %v3441
      %v3570 = vunpack.c.l.b16 %v3442
      %v3571 = vunpack.c.l.b16 %v3443
      %v3572 = vpack.c.b16 %v3557, %v3556
      %v3573 = vpack.c.b16 %v3559, %v3558
      %v3574 = vpack.c.b16 %v3561, %v3560
      %v3575 = vpack.c.b16 %v3563, %v3562
      %v3576 = vpack.c.b16 %v3565, %v3564
      %v3577 = vpack.c.b16 %v3567, %v3566
      %v3578 = vpack.c.b16 %v3569, %v3568
      %v3579 = vpack.c.b16 %v3571, %v3570
      %3588 = vmatprep.subr.bf16.mxu0 0
      %3589 = vmatpush1.bf16.msra.mxu0 %v3579
      %3590 = vmatprep.subr.bf16.mxu0 0
      %3591 = vmatpush1.bf16.msra.mxu0 %v3578
      %3592 = vmatprep.subr.bf16.mxu0 0
      %3593 = vmatpush1.bf16.msra.mxu0 %v3577
      %3594 = vmatprep.subr.bf16.mxu0 0
      %3595 = vmatpush1.bf16.msra.mxu0 %v3576
      %3596 = vmatprep.subr.bf16.mxu0 0
      %3597 = vmatpush1.bf16.msra.mxu0 %v3575
      %3598 = vmatprep.subr.bf16.mxu0 0
      %3599 = vmatpush1.bf16.msra.mxu0 %v3574
      %3600 = vmatprep.subr.bf16.mxu0 0
      %3601 = vmatpush1.bf16.msra.mxu0 %v3573
      %3602 = vmatprep.subr.bf16.mxu0 0
      %3603 = vmatpush1.bf16.msra.mxu0 %v3572
      %3604 = vmatprep.subr.bf16.mxu0 0
      %3605 = vmatpush2.bf16.msra.mxu0 0
      %3606 = vmatprep.subr.bf16.mxu0 0
      %3607 = vmatpush2.bf16.msra.mxu0 0
      %3608 = vmatprep.subr.bf16.mxu0 0
      %3609 = vmatpush2.bf16.msra.mxu0 0
      %3610 = vmatprep.subr.bf16.mxu0 0
      %3611 = vmatpush2.bf16.msra.mxu0 0
      %3612 = vmatprep.subr.bf16.mxu0 0
      %3613 = vmatpush2.bf16.msra.mxu0 0
      %3614 = vmatprep.subr.bf16.mxu0 0
      %3615 = vmatpush2.bf16.msra.mxu0 0
      %3616 = vmatprep.subr.bf16.mxu0 0
      %3617 = vmatpush2.bf16.msra.mxu0 0
      %3618 = vmatprep.subr.bf16.mxu0 0
      %3619 = vmatpush2.bf16.msra.mxu0 0
      %3620 = vmatprep.mubr.bf16.mxu0 0
      %3621 = vmatmul.mubr.bf16.gmra.mxu0 %v3508
      %v3622 = vpop.f32.mrf.mxu0
      %v3623 = vadd.f32 0.0, %v3622
      %v3624 = vpop.f32.mrf.mxu0
      %v3625 = vpop.f32.mrf.mxu0
      %v3626 = vadd.f32 0.0, %v3625
      %v3627 = vpop.f32.mrf.mxu0
      %3628 = vmatprep.mubr.bf16.mxu0 0
      %3629 = vmatmul.mubr.bf16.gmra.mxu0 %v3509
      %v3630 = vpop.f32.mrf.mxu0
      %v3631 = vadd.f32 0.0, %v3630
      %v3632 = vpop.f32.mrf.mxu0
      %v3633 = vpop.f32.mrf.mxu0
      %v3634 = vadd.f32 0.0, %v3633
      %v3635 = vpop.f32.mrf.mxu0
      %3636 = vmatprep.mubr.bf16.mxu0 0
      %3637 = vmatmul.mubr.bf16.gmra.mxu0 %v3510
      %v3638 = vpop.f32.mrf.mxu0
      %v3639 = vadd.f32 0.0, %v3638
      %v3640 = vpop.f32.mrf.mxu0
      %v3641 = vpop.f32.mrf.mxu0
      %v3642 = vadd.f32 0.0, %v3641
      %v3643 = vpop.f32.mrf.mxu0
      %3644 = vmatprep.mubr.bf16.mxu0 0
      %3645 = vmatmul.mubr.bf16.gmra.mxu0 %v3511
      %v3646 = vpop.f32.mrf.mxu0
      %v3647 = vadd.f32 0.0, %v3646
      %v3648 = vpop.f32.mrf.mxu0
      %v3649 = vpop.f32.mrf.mxu0
      %v3650 = vadd.f32 0.0, %v3649
      %v3651 = vpop.f32.mrf.mxu0
      %3652 = vmatprep.mubr.bf16.mxu0 0
      %3653 = vmatmul.mubr.bf16.gmra.mxu0 %v3512
      %v3654 = vpop.f32.mrf.mxu0
      %v3655 = vadd.f32 0.0, %v3654
      %v3656 = vpop.f32.mrf.mxu0
      %v3657 = vpop.f32.mrf.mxu0
      %v3658 = vadd.f32 0.0, %v3657
      %v3659 = vpop.f32.mrf.mxu0
      %3660 = vmatprep.mubr.bf16.mxu0 0
      %3661 = vmatmul.mubr.bf16.gmra.mxu0 %v3513
      %v3662 = vpop.f32.mrf.mxu0
      %v3663 = vadd.f32 0.0, %v3662
      %v3664 = vpop.f32.mrf.mxu0
      %v3665 = vpop.f32.mrf.mxu0
      %v3666 = vadd.f32 0.0, %v3665
      %v3667 = vpop.f32.mrf.mxu0
      %3668 = vmatprep.mubr.bf16.mxu0 0
      %3669 = vmatmul.mubr.bf16.gmra.mxu0 %v3514
      %v3670 = vpop.f32.mrf.mxu0
      %v3671 = vadd.f32 0.0, %v3670
      %v3672 = vpop.f32.mrf.mxu0
      %v3673 = vpop.f32.mrf.mxu0
      %v3674 = vadd.f32 0.0, %v3673
      %v3675 = vpop.f32.mrf.mxu0
      %3676 = vmatprep.mubr.bf16.mxu0 0
      %3677 = vmatmul.mubr.bf16.gmra.mxu0 %v3515
      %v3678 = vpop.f32.mrf.mxu0
      %v3679 = vadd.f32 0.0, %v3678
      %v3680 = vpop.f32.mrf.mxu0
      %v3681 = vpop.f32.mrf.mxu0
      %v3682 = vadd.f32 0.0, %v3681
      %v3683 = vpop.f32.mrf.mxu0
      %3684 = vmatprep.mubr.bf16.mxu0 0
      %3685 = vmatmul.mubr.bf16.gmra.mxu0 %v3516
      %v3686 = vpop.f32.mrf.mxu0
      %v3687 = vadd.f32 0.0, %v3686
      %v3688 = vpop.f32.mrf.mxu0
      %v3689 = vpop.f32.mrf.mxu0
      %v3690 = vadd.f32 0.0, %v3689
      %v3691 = vpop.f32.mrf.mxu0
      %3692 = vmatprep.mubr.bf16.mxu0 0
      %3693 = vmatmul.mubr.bf16.gmra.mxu0 %v3517
      %v3694 = vpop.f32.mrf.mxu0
      %v3695 = vadd.f32 0.0, %v3694
      %v3696 = vpop.f32.mrf.mxu0
      %v3697 = vpop.f32.mrf.mxu0
      %v3698 = vadd.f32 0.0, %v3697
      %v3699 = vpop.f32.mrf.mxu0
      %3700 = vmatprep.mubr.bf16.mxu0 0
      %3701 = vmatmul.mubr.bf16.gmra.mxu0 %v3518
      %v3702 = vpop.f32.mrf.mxu0
      %v3703 = vadd.f32 0.0, %v3702
      %v3704 = vpop.f32.mrf.mxu0
      %v3705 = vpop.f32.mrf.mxu0
      %v3706 = vadd.f32 0.0, %v3705
      %v3707 = vpop.f32.mrf.mxu0
      %3708 = vmatprep.mubr.bf16.mxu0 0
      %3709 = vmatmul.mubr.bf16.gmra.mxu0 %v3519
      %v3710 = vpop.f32.mrf.mxu0
      %v3711 = vadd.f32 0.0, %v3710
      %v3712 = vpop.f32.mrf.mxu0
      %v3713 = vpop.f32.mrf.mxu0
      %v3714 = vadd.f32 0.0, %v3713
      %v3715 = vpop.f32.mrf.mxu0
      %3716 = vmatprep.mubr.bf16.mxu0 0
      %3717 = vmatmul.mubr.bf16.gmra.mxu0 %v3520
      %v3718 = vpop.f32.mrf.mxu0
      %v3719 = vadd.f32 0.0, %v3718
      %v3720 = vpop.f32.mrf.mxu0
      %v3721 = vpop.f32.mrf.mxu0
      %v3722 = vadd.f32 0.0, %v3721
      %v3723 = vpop.f32.mrf.mxu0
      %3724 = vmatprep.mubr.bf16.mxu0 0
      %3725 = vmatmul.mubr.bf16.gmra.mxu0 %v3521
      %v3726 = vpop.f32.mrf.mxu0
      %v3727 = vadd.f32 0.0, %v3726
      %v3728 = vpop.f32.mrf.mxu0
      %v3729 = vpop.f32.mrf.mxu0
      %v3730 = vadd.f32 0.0, %v3729
      %v3731 = vpop.f32.mrf.mxu0
      %3732 = vmatprep.mubr.bf16.mxu0 0
      %3733 = vmatmul.mubr.bf16.gmra.mxu0 %v3522
      %v3734 = vpop.f32.mrf.mxu0
      %v3735 = vadd.f32 0.0, %v3734
      %v3736 = vpop.f32.mrf.mxu0
      %v3737 = vpop.f32.mrf.mxu0
      %v3738 = vadd.f32 0.0, %v3737
      %v3739 = vpop.f32.mrf.mxu0
      %3740 = vmatprep.mubr.bf16.mxu0 0
      %3741 = vmatmul.mubr.bf16.gmra.mxu0 %v3523
      %v3742 = vpop.f32.mrf.mxu0
      %v3743 = vadd.f32 0.0, %v3742
      %v3744 = vpop.f32.mrf.mxu0
      %v3745 = vpop.f32.mrf.mxu0
      %v3746 = vadd.f32 0.0, %v3745
      %v3747 = vpop.f32.mrf.mxu0
      %3748 = vdwg.mxu0
      %v3749 = vadd.f32 %v3395, %v3623
      %v3750 = vadd.f32 %v3396, %v3626
      %v3751 = vadd.f32 %v3397, %v3631
      %v3752 = vadd.f32 %v3398, %v3634
      %v3753 = vadd.f32 %v3399, %v3639
      %v3754 = vadd.f32 %v3400, %v3642
      %v3755 = vadd.f32 %v3401, %v3647
      %v3756 = vadd.f32 %v3402, %v3650
      %v3757 = vadd.f32 %v3403, %v3655
      %v3758 = vadd.f32 %v3404, %v3658
      %v3759 = vadd.f32 %v3405, %v3663
      %v3760 = vadd.f32 %v3406, %v3666
      %v3761 = vadd.f32 %v3407, %v3671
      %v3762 = vadd.f32 %v3408, %v3674
      %v3763 = vadd.f32 %v3409, %v3679
      %v3764 = vadd.f32 %v3410, %v3682
      %v3765 = vadd.f32 %v3411, %v3687
      %v3766 = vadd.f32 %v3412, %v3690
      %v3767 = vadd.f32 %v3413, %v3695
      %v3768 = vadd.f32 %v3414, %v3698
      %v3769 = vadd.f32 %v3415, %v3703
      %v3770 = vadd.f32 %v3416, %v3706
      %v3771 = vadd.f32 %v3417, %v3711
      %v3772 = vadd.f32 %v3418, %v3714
      %v3773 = vadd.f32 %v3419, %v3719
      %v3774 = vadd.f32 %v3420, %v3722
      %v3775 = vadd.f32 %v3421, %v3727
      %v3776 = vadd.f32 %v3422, %v3730
      %v3777 = vadd.f32 %v3423, %v3735
      %v3778 = vadd.f32 %v3424, %v3738
      %v3779 = vadd.f32 %v3425, %v3743
      %v3780 = vadd.f32 %v3426, %v3746
      %3781 = vst [vmem:[#allocation2] sm:$0xff] %v3749
      %3782 = vst [vmem:[#allocation2 + $0x8] sm:$0xff] %v3750
      %3783 = vst [vmem:[#allocation2 + $0x10] sm:$0xff] %v3751
      %3784 = vst [vmem:[#allocation2 + $0x18] sm:$0xff] %v3752
      %3785 = vst [vmem:[#allocation2 + $0x20] sm:$0xff] %v3753
      %3786 = vst [vmem:[#allocation2 + $0x28] sm:$0xff] %v3754
      %3787 = vst [vmem:[#allocation2 + $0x30] sm:$0xff] %v3755
      %3788 = vst [vmem:[#allocation2 + $0x38] sm:$0xff] %v3756
      %3789 = vst [vmem:[#allocation2 + $0x40] sm:$0xff] %v3757
      %3790 = vst [vmem:[#allocation2 + $0x48] sm:$0xff] %v3758
      %3791 = vst [vmem:[#allocation2 + $0x50] sm:$0xff] %v3759
      %3792 = vst [vmem:[#allocation2 + $0x58] sm:$0xff] %v3760
      %3793 = vst [vmem:[#allocation2 + $0x60] sm:$0xff] %v3761
      %3794 = vst [vmem:[#allocation2 + $0x68] sm:$0xff] %v3762
      %3795 = vst [vmem:[#allocation2 + $0x70] sm:$0xff] %v3763
      %3796 = vst [vmem:[#allocation2 + $0x78] sm:$0xff] %v3764
      %3797 = vst [vmem:[#allocation2 + $0x80] sm:$0xff] %v3765
      %3798 = vst [vmem:[#allocation2 + $0x88] sm:$0xff] %v3766
      %3799 = vst [vmem:[#allocation2 + $0x90] sm:$0xff] %v3767
      %3800 = vst [vmem:[#allocation2 + $0x98] sm:$0xff] %v3768
      %3801 = vst [vmem:[#allocation2 + $0xa0] sm:$0xff] %v3769
      %3802 = vst [vmem:[#allocation2 + $0xa8] sm:$0xff] %v3770
      %3803 = vst [vmem:[#allocation2 + $0xb0] sm:$0xff] %v3771
      %3804 = vst [vmem:[#allocation2 + $0xb8] sm:$0xff] %v3772
      %3805 = vst [vmem:[#allocation2 + $0xc0] sm:$0xff] %v3773
      %3806 = vst [vmem:[#allocation2 + $0xc8] sm:$0xff] %v3774
      %3807 = vst [vmem:[#allocation2 + $0xd0] sm:$0xff] %v3775
      %3808 = vst [vmem:[#allocation2 + $0xd8] sm:$0xff] %v3776
      %3809 = vst [vmem:[#allocation2 + $0xe0] sm:$0xff] %v3777
      %3810 = vst [vmem:[#allocation2 + $0xe8] sm:$0xff] %v3778
      %3811 = vst [vmem:[#allocation2 + $0xf0] sm:$0xff] %v3779
      %3812 = vst [vmem:[#allocation2 + $0xf8] sm:$0xff] %v3780
      %s3813 = scalar_lea.vmem %s163, 304
      %v3814 = vld [vmem:[%s3813] sm:$0xf]
      %v3815 = vld [vmem:[%s3813 + $0x4] sm:$0xf]
      %v3816 = vld [vmem:[%s3813 + $0x8] sm:$0xf]
      %v3817 = vld [vmem:[%s3813 + $0xc] sm:$0xf]
      %v3818 = vld [vmem:[%s3813 + $0x10] sm:$0xf]
      %v3819 = vld [vmem:[%s3813 + $0x14] sm:$0xf]
      %v3820 = vld [vmem:[%s3813 + $0x18] sm:$0xf]
      %v3821 = vld [vmem:[%s3813 + $0x1c] sm:$0xf]
      %v3822 = vld [vmem:[%s3813 + $0x20] sm:$0xf]
      %v3823 = vld [vmem:[%s3813 + $0x24] sm:$0xf]
      %v3824 = vld [vmem:[%s3813 + $0x28] sm:$0xf]
      %v3825 = vld [vmem:[%s3813 + $0x2c] sm:$0xf]
      %v3826 = vld [vmem:[%s3813 + $0x30] sm:$0xf]
      %v3827 = vld [vmem:[%s3813 + $0x34] sm:$0xf]
      %v3828 = vld [vmem:[%s3813 + $0x38] sm:$0xf]
      %v3829 = vld [vmem:[%s3813 + $0x3c] sm:$0xf]
      %v3830 = vld [vmem:[%s3813 + $0x40] sm:$0xf]
      %v3831 = vld [vmem:[%s3813 + $0x44] sm:$0xf]
      %v3832 = vld [vmem:[%s3813 + $0x48] sm:$0xf]
      %v3833 = vld [vmem:[%s3813 + $0x4c] sm:$0xf]
      %v3834 = vld [vmem:[%s3813 + $0x50] sm:$0xf]
      %v3835 = vld [vmem:[%s3813 + $0x54] sm:$0xf]
      %v3836 = vld [vmem:[%s3813 + $0x58] sm:$0xf]
      %v3837 = vld [vmem:[%s3813 + $0x5c] sm:$0xf]
      %v3838 = vld [vmem:[%s3813 + $0x60] sm:$0xf]
      %v3839 = vld [vmem:[%s3813 + $0x64] sm:$0xf]
      %v3840 = vld [vmem:[%s3813 + $0x68] sm:$0xf]
      %v3841 = vld [vmem:[%s3813 + $0x6c] sm:$0xf]
      %v3842 = vld [vmem:[%s3813 + $0x70] sm:$0xf]
      %v3843 = vld [vmem:[%s3813 + $0x74] sm:$0xf]
      %v3844 = vld [vmem:[%s3813 + $0x78] sm:$0xf]
      %v3845 = vld [vmem:[%s3813 + $0x7c] sm:$0xf]
      %v3846 = vld [vmem:[#allocation2] sm:$0xff]
      %v3847 = vld [vmem:[#allocation2 + $0x8] sm:$0xff]
      %v3848 = vld [vmem:[#allocation2 + $0x10] sm:$0xff]
      %v3849 = vld [vmem:[#allocation2 + $0x18] sm:$0xff]
      %v3850 = vld [vmem:[#allocation2 + $0x20] sm:$0xff]
      %v3851 = vld [vmem:[#allocation2 + $0x28] sm:$0xff]
      %v3852 = vld [vmem:[#allocation2 + $0x30] sm:$0xff]
      %v3853 = vld [vmem:[#allocation2 + $0x38] sm:$0xff]
      %v3854 = vld [vmem:[#allocation2 + $0x40] sm:$0xff]
      %v3855 = vld [vmem:[#allocation2 + $0x48] sm:$0xff]
      %v3856 = vld [vmem:[#allocation2 + $0x50] sm:$0xff]
      %v3857 = vld [vmem:[#allocation2 + $0x58] sm:$0xff]
      %v3858 = vld [vmem:[#allocation2 + $0x60] sm:$0xff]
      %v3859 = vld [vmem:[#allocation2 + $0x68] sm:$0xff]
      %v3860 = vld [vmem:[#allocation2 + $0x70] sm:$0xff]
      %v3861 = vld [vmem:[#allocation2 + $0x78] sm:$0xff]
      %v3862 = vld [vmem:[#allocation2 + $0x80] sm:$0xff]
      %v3863 = vld [vmem:[#allocation2 + $0x88] sm:$0xff]
      %v3864 = vld [vmem:[#allocation2 + $0x90] sm:$0xff]
      %v3865 = vld [vmem:[#allocation2 + $0x98] sm:$0xff]
      %v3866 = vld [vmem:[#allocation2 + $0xa0] sm:$0xff]
      %v3867 = vld [vmem:[#allocation2 + $0xa8] sm:$0xff]
      %v3868 = vld [vmem:[#allocation2 + $0xb0] sm:$0xff]
      %v3869 = vld [vmem:[#allocation2 + $0xb8] sm:$0xff]
      %v3870 = vld [vmem:[#allocation2 + $0xc0] sm:$0xff]
      %v3871 = vld [vmem:[#allocation2 + $0xc8] sm:$0xff]
      %v3872 = vld [vmem:[#allocation2 + $0xd0] sm:$0xff]
      %v3873 = vld [vmem:[#allocation2 + $0xd8] sm:$0xff]
      %v3874 = vld [vmem:[#allocation2 + $0xe0] sm:$0xff]
      %v3875 = vld [vmem:[#allocation2 + $0xe8] sm:$0xff]
      %v3876 = vld [vmem:[#allocation2 + $0xf0] sm:$0xff]
      %v3877 = vld [vmem:[#allocation2 + $0xf8] sm:$0xff]
      %s3878 = scalar_lea.vmem %s1, 512
      %v3879 = vld [vmem:[%s3878] sm:$0xf]
      %v3880 = vld [vmem:[%s3878 + $0x4] sm:$0xf]
      %v3881 = vld [vmem:[%s3878 + $0x8] sm:$0xf]
      %v3882 = vld [vmem:[%s3878 + $0xc] sm:$0xf]
      %v3883 = vld [vmem:[%s3878 + $0x10] sm:$0xf]
      %v3884 = vld [vmem:[%s3878 + $0x14] sm:$0xf]
      %v3885 = vld [vmem:[%s3878 + $0x18] sm:$0xf]
      %v3886 = vld [vmem:[%s3878 + $0x1c] sm:$0xf]
      %v3887 = vld [vmem:[%s3878 + $0x20] sm:$0xf]
      %v3888 = vld [vmem:[%s3878 + $0x24] sm:$0xf]
      %v3889 = vld [vmem:[%s3878 + $0x28] sm:$0xf]
      %v3890 = vld [vmem:[%s3878 + $0x2c] sm:$0xf]
      %v3891 = vld [vmem:[%s3878 + $0x30] sm:$0xf]
      %v3892 = vld [vmem:[%s3878 + $0x34] sm:$0xf]
      %v3893 = vld [vmem:[%s3878 + $0x38] sm:$0xf]
      %v3894 = vld [vmem:[%s3878 + $0x3c] sm:$0xf]
      %v3927 = vunpack.c.l.b16 %v3814
      %v3928 = vunpack.c.l.b16 %v3815
      %v3929 = vunpack.c.l.b16 %v3816
      %v3930 = vunpack.c.l.b16 %v3817
      %v3931 = vunpack.c.l.b16 %v3818
      %v3932 = vunpack.c.l.b16 %v3819
      %v3933 = vunpack.c.l.b16 %v3820
      %v3934 = vunpack.c.l.b16 %v3821
      %v3935 = vunpack.c.l.b16 %v3822
      %v3936 = vunpack.c.l.b16 %v3823
      %v3937 = vunpack.c.l.b16 %v3824
      %v3938 = vunpack.c.l.b16 %v3825
      %v3939 = vunpack.c.l.b16 %v3826
      %v3940 = vunpack.c.l.b16 %v3827
      %v3941 = vunpack.c.l.b16 %v3828
      %v3942 = vunpack.c.l.b16 %v3829
      %v3943 = vunpack.c.l.b16 %v3830
      %v3944 = vunpack.c.l.b16 %v3831
      %v3945 = vunpack.c.l.b16 %v3832
      %v3946 = vunpack.c.l.b16 %v3833
      %v3947 = vunpack.c.l.b16 %v3834
      %v3948 = vunpack.c.l.b16 %v3835
      %v3949 = vunpack.c.l.b16 %v3836
      %v3950 = vunpack.c.l.b16 %v3837
      %v3951 = vunpack.c.l.b16 %v3838
      %v3952 = vunpack.c.l.b16 %v3839
      %v3953 = vunpack.c.l.b16 %v3840
      %v3954 = vunpack.c.l.b16 %v3841
      %v3955 = vunpack.c.l.b16 %v3842
      %v3956 = vunpack.c.l.b16 %v3843
      %v3957 = vunpack.c.l.b16 %v3844
      %v3958 = vunpack.c.l.b16 %v3845
      %v3959 = vpack.c.b16 %v3928, %v3927
      %v3960 = vpack.c.b16 %v3930, %v3929
      %v3961 = vpack.c.b16 %v3932, %v3931
      %v3962 = vpack.c.b16 %v3934, %v3933
      %v3963 = vpack.c.b16 %v3936, %v3935
      %v3964 = vpack.c.b16 %v3938, %v3937
      %v3965 = vpack.c.b16 %v3940, %v3939
      %v3966 = vpack.c.b16 %v3942, %v3941
      %v3967 = vpack.c.b16 %v3944, %v3943
      %v3968 = vpack.c.b16 %v3946, %v3945
      %v3969 = vpack.c.b16 %v3948, %v3947
      %v3970 = vpack.c.b16 %v3950, %v3949
      %v3971 = vpack.c.b16 %v3952, %v3951
      %v3972 = vpack.c.b16 %v3954, %v3953
      %v3973 = vpack.c.b16 %v3956, %v3955
      %v3974 = vpack.c.b16 %v3958, %v3957
      %v4007 = vunpack.c.l.b16 %v3879
      %v4008 = vunpack.c.l.b16 %v3880
      %v4009 = vunpack.c.l.b16 %v3881
      %v4010 = vunpack.c.l.b16 %v3882
      %v4011 = vunpack.c.l.b16 %v3883
      %v4012 = vunpack.c.l.b16 %v3884
      %v4013 = vunpack.c.l.b16 %v3885
      %v4014 = vunpack.c.l.b16 %v3886
      %v4015 = vunpack.c.l.b16 %v3887
      %v4016 = vunpack.c.l.b16 %v3888
      %v4017 = vunpack.c.l.b16 %v3889
      %v4018 = vunpack.c.l.b16 %v3890
      %v4019 = vunpack.c.l.b16 %v3891
      %v4020 = vunpack.c.l.b16 %v3892
      %v4021 = vunpack.c.l.b16 %v3893
      %v4022 = vunpack.c.l.b16 %v3894
      %v4023 = vpack.c.b16 %v4008, %v4007
      %v4024 = vpack.c.b16 %v4010, %v4009
      %v4025 = vpack.c.b16 %v4012, %v4011
      %v4026 = vpack.c.b16 %v4014, %v4013
      %v4027 = vpack.c.b16 %v4016, %v4015
      %v4028 = vpack.c.b16 %v4018, %v4017
      %v4029 = vpack.c.b16 %v4020, %v4019
      %v4030 = vpack.c.b16 %v4022, %v4021
      %4039 = vmatprep.subr.bf16.mxu0 0
      %4040 = vmatpush1.bf16.msra.mxu0 %v4030
      %4041 = vmatprep.subr.bf16.mxu0 0
      %4042 = vmatpush1.bf16.msra.mxu0 %v4029
      %4043 = vmatprep.subr.bf16.mxu0 0
      %4044 = vmatpush1.bf16.msra.mxu0 %v4028
      %4045 = vmatprep.subr.bf16.mxu0 0
      %4046 = vmatpush1.bf16.msra.mxu0 %v4027
      %4047 = vmatprep.subr.bf16.mxu0 0
      %4048 = vmatpush1.bf16.msra.mxu0 %v4026
      %4049 = vmatprep.subr.bf16.mxu0 0
      %4050 = vmatpush1.bf16.msra.mxu0 %v4025
      %4051 = vmatprep.subr.bf16.mxu0 0
      %4052 = vmatpush1.bf16.msra.mxu0 %v4024
      %4053 = vmatprep.subr.bf16.mxu0 0
      %4054 = vmatpush1.bf16.msra.mxu0 %v4023
      %4055 = vmatprep.subr.bf16.mxu0 0
      %4056 = vmatpush2.bf16.msra.mxu0 0
      %4057 = vmatprep.subr.bf16.mxu0 0
      %4058 = vmatpush2.bf16.msra.mxu0 0
      %4059 = vmatprep.subr.bf16.mxu0 0
      %4060 = vmatpush2.bf16.msra.mxu0 0
      %4061 = vmatprep.subr.bf16.mxu0 0
      %4062 = vmatpush2.bf16.msra.mxu0 0
      %4063 = vmatprep.subr.bf16.mxu0 0
      %4064 = vmatpush2.bf16.msra.mxu0 0
      %4065 = vmatprep.subr.bf16.mxu0 0
      %4066 = vmatpush2.bf16.msra.mxu0 0
      %4067 = vmatprep.subr.bf16.mxu0 0
      %4068 = vmatpush2.bf16.msra.mxu0 0
      %4069 = vmatprep.subr.bf16.mxu0 0
      %4070 = vmatpush2.bf16.msra.mxu0 0
      %4071 = vmatprep.mubr.bf16.mxu0 0
      %4072 = vmatmul.mubr.bf16.gmra.mxu0 %v3959
      %v4073 = vpop.f32.mrf.mxu0
      %v4074 = vadd.f32 0.0, %v4073
      %v4075 = vpop.f32.mrf.mxu0
      %v4076 = vpop.f32.mrf.mxu0
      %v4077 = vadd.f32 0.0, %v4076
      %v4078 = vpop.f32.mrf.mxu0
      %4079 = vmatprep.mubr.bf16.mxu0 0
      %4080 = vmatmul.mubr.bf16.gmra.mxu0 %v3960
      %v4081 = vpop.f32.mrf.mxu0
      %v4082 = vadd.f32 0.0, %v4081
      %v4083 = vpop.f32.mrf.mxu0
      %v4084 = vpop.f32.mrf.mxu0
      %v4085 = vadd.f32 0.0, %v4084
      %v4086 = vpop.f32.mrf.mxu0
      %4087 = vmatprep.mubr.bf16.mxu0 0
      %4088 = vmatmul.mubr.bf16.gmra.mxu0 %v3961
      %v4089 = vpop.f32.mrf.mxu0
      %v4090 = vadd.f32 0.0, %v4089
      %v4091 = vpop.f32.mrf.mxu0
      %v4092 = vpop.f32.mrf.mxu0
      %v4093 = vadd.f32 0.0, %v4092
      %v4094 = vpop.f32.mrf.mxu0
      %4095 = vmatprep.mubr.bf16.mxu0 0
      %4096 = vmatmul.mubr.bf16.gmra.mxu0 %v3962
      %v4097 = vpop.f32.mrf.mxu0
      %v4098 = vadd.f32 0.0, %v4097
      %v4099 = vpop.f32.mrf.mxu0
      %v4100 = vpop.f32.mrf.mxu0
      %v4101 = vadd.f32 0.0, %v4100
      %v4102 = vpop.f32.mrf.mxu0
      %4103 = vmatprep.mubr.bf16.mxu0 0
      %4104 = vmatmul.mubr.bf16.gmra.mxu0 %v3963
      %v4105 = vpop.f32.mrf.mxu0
      %v4106 = vadd.f32 0.0, %v4105
      %v4107 = vpop.f32.mrf.mxu0
      %v4108 = vpop.f32.mrf.mxu0
      %v4109 = vadd.f32 0.0, %v4108
      %v4110 = vpop.f32.mrf.mxu0
      %4111 = vmatprep.mubr.bf16.mxu0 0
      %4112 = vmatmul.mubr.bf16.gmra.mxu0 %v3964
      %v4113 = vpop.f32.mrf.mxu0
      %v4114 = vadd.f32 0.0, %v4113
      %v4115 = vpop.f32.mrf.mxu0
      %v4116 = vpop.f32.mrf.mxu0
      %v4117 = vadd.f32 0.0, %v4116
      %v4118 = vpop.f32.mrf.mxu0
      %4119 = vmatprep.mubr.bf16.mxu0 0
      %4120 = vmatmul.mubr.bf16.gmra.mxu0 %v3965
      %v4121 = vpop.f32.mrf.mxu0
      %v4122 = vadd.f32 0.0, %v4121
      %v4123 = vpop.f32.mrf.mxu0
      %v4124 = vpop.f32.mrf.mxu0
      %v4125 = vadd.f32 0.0, %v4124
      %v4126 = vpop.f32.mrf.mxu0
      %4127 = vmatprep.mubr.bf16.mxu0 0
      %4128 = vmatmul.mubr.bf16.gmra.mxu0 %v3966
      %v4129 = vpop.f32.mrf.mxu0
      %v4130 = vadd.f32 0.0, %v4129
      %v4131 = vpop.f32.mrf.mxu0
      %v4132 = vpop.f32.mrf.mxu0
      %v4133 = vadd.f32 0.0, %v4132
      %v4134 = vpop.f32.mrf.mxu0
      %4135 = vmatprep.mubr.bf16.mxu0 0
      %4136 = vmatmul.mubr.bf16.gmra.mxu0 %v3967
      %v4137 = vpop.f32.mrf.mxu0
      %v4138 = vadd.f32 0.0, %v4137
      %v4139 = vpop.f32.mrf.mxu0
      %v4140 = vpop.f32.mrf.mxu0
      %v4141 = vadd.f32 0.0, %v4140
      %v4142 = vpop.f32.mrf.mxu0
      %4143 = vmatprep.mubr.bf16.mxu0 0
      %4144 = vmatmul.mubr.bf16.gmra.mxu0 %v3968
      %v4145 = vpop.f32.mrf.mxu0
      %v4146 = vadd.f32 0.0, %v4145
      %v4147 = vpop.f32.mrf.mxu0
      %v4148 = vpop.f32.mrf.mxu0
      %v4149 = vadd.f32 0.0, %v4148
      %v4150 = vpop.f32.mrf.mxu0
      %4151 = vmatprep.mubr.bf16.mxu0 0
      %4152 = vmatmul.mubr.bf16.gmra.mxu0 %v3969
      %v4153 = vpop.f32.mrf.mxu0
      %v4154 = vadd.f32 0.0, %v4153
      %v4155 = vpop.f32.mrf.mxu0
      %v4156 = vpop.f32.mrf.mxu0
      %v4157 = vadd.f32 0.0, %v4156
      %v4158 = vpop.f32.mrf.mxu0
      %4159 = vmatprep.mubr.bf16.mxu0 0
      %4160 = vmatmul.mubr.bf16.gmra.mxu0 %v3970
      %v4161 = vpop.f32.mrf.mxu0
      %v4162 = vadd.f32 0.0, %v4161
      %v4163 = vpop.f32.mrf.mxu0
      %v4164 = vpop.f32.mrf.mxu0
      %v4165 = vadd.f32 0.0, %v4164
      %v4166 = vpop.f32.mrf.mxu0
      %4167 = vmatprep.mubr.bf16.mxu0 0
      %4168 = vmatmul.mubr.bf16.gmra.mxu0 %v3971
      %v4169 = vpop.f32.mrf.mxu0
      %v4170 = vadd.f32 0.0, %v4169
      %v4171 = vpop.f32.mrf.mxu0
      %v4172 = vpop.f32.mrf.mxu0
      %v4173 = vadd.f32 0.0, %v4172
      %v4174 = vpop.f32.mrf.mxu0
      %4175 = vmatprep.mubr.bf16.mxu0 0
      %4176 = vmatmul.mubr.bf16.gmra.mxu0 %v3972
      %v4177 = vpop.f32.mrf.mxu0
      %v4178 = vadd.f32 0.0, %v4177
      %v4179 = vpop.f32.mrf.mxu0
      %v4180 = vpop.f32.mrf.mxu0
      %v4181 = vadd.f32 0.0, %v4180
      %v4182 = vpop.f32.mrf.mxu0
      %4183 = vmatprep.mubr.bf16.mxu0 0
      %4184 = vmatmul.mubr.bf16.gmra.mxu0 %v3973
      %v4185 = vpop.f32.mrf.mxu0
      %v4186 = vadd.f32 0.0, %v4185
      %v4187 = vpop.f32.mrf.mxu0
      %v4188 = vpop.f32.mrf.mxu0
      %v4189 = vadd.f32 0.0, %v4188
      %v4190 = vpop.f32.mrf.mxu0
      %4191 = vmatprep.mubr.bf16.mxu0 0
      %4192 = vmatmul.mubr.bf16.gmra.mxu0 %v3974
      %v4193 = vpop.f32.mrf.mxu0
      %v4194 = vadd.f32 0.0, %v4193
      %v4195 = vpop.f32.mrf.mxu0
      %v4196 = vpop.f32.mrf.mxu0
      %v4197 = vadd.f32 0.0, %v4196
      %v4198 = vpop.f32.mrf.mxu0
      %4199 = vdwg.mxu0
      %v4200 = vadd.f32 %v3846, %v4074
      %v4201 = vadd.f32 %v3847, %v4077
      %v4202 = vadd.f32 %v3848, %v4082
      %v4203 = vadd.f32 %v3849, %v4085
      %v4204 = vadd.f32 %v3850, %v4090
      %v4205 = vadd.f32 %v3851, %v4093
      %v4206 = vadd.f32 %v3852, %v4098
      %v4207 = vadd.f32 %v3853, %v4101
      %v4208 = vadd.f32 %v3854, %v4106
      %v4209 = vadd.f32 %v3855, %v4109
      %v4210 = vadd.f32 %v3856, %v4114
      %v4211 = vadd.f32 %v3857, %v4117
      %v4212 = vadd.f32 %v3858, %v4122
      %v4213 = vadd.f32 %v3859, %v4125
      %v4214 = vadd.f32 %v3860, %v4130
      %v4215 = vadd.f32 %v3861, %v4133
      %v4216 = vadd.f32 %v3862, %v4138
      %v4217 = vadd.f32 %v3863, %v4141
      %v4218 = vadd.f32 %v3864, %v4146
      %v4219 = vadd.f32 %v3865, %v4149
      %v4220 = vadd.f32 %v3866, %v4154
      %v4221 = vadd.f32 %v3867, %v4157
      %v4222 = vadd.f32 %v3868, %v4162
      %v4223 = vadd.f32 %v3869, %v4165
      %v4224 = vadd.f32 %v3870, %v4170
      %v4225 = vadd.f32 %v3871, %v4173
      %v4226 = vadd.f32 %v3872, %v4178
      %v4227 = vadd.f32 %v3873, %v4181
      %v4228 = vadd.f32 %v3874, %v4186
      %v4229 = vadd.f32 %v3875, %v4189
      %v4230 = vadd.f32 %v3876, %v4194
      %v4231 = vadd.f32 %v3877, %v4197
      %4232 = vst [vmem:[#allocation2] sm:$0xff] %v4200
      %4233 = vst [vmem:[#allocation2 + $0x8] sm:$0xff] %v4201
      %4234 = vst [vmem:[#allocation2 + $0x10] sm:$0xff] %v4202
      %4235 = vst [vmem:[#allocation2 + $0x18] sm:$0xff] %v4203
      %4236 = vst [vmem:[#allocation2 + $0x20] sm:$0xff] %v4204
      %4237 = vst [vmem:[#allocation2 + $0x28] sm:$0xff] %v4205
      %4238 = vst [vmem:[#allocation2 + $0x30] sm:$0xff] %v4206
      %4239 = vst [vmem:[#allocation2 + $0x38] sm:$0xff] %v4207
      %4240 = vst [vmem:[#allocation2 + $0x40] sm:$0xff] %v4208
      %4241 = vst [vmem:[#allocation2 + $0x48] sm:$0xff] %v4209
      %4242 = vst [vmem:[#allocation2 + $0x50] sm:$0xff] %v4210
      %4243 = vst [vmem:[#allocation2 + $0x58] sm:$0xff] %v4211
      %4244 = vst [vmem:[#allocation2 + $0x60] sm:$0xff] %v4212
      %4245 = vst [vmem:[#allocation2 + $0x68] sm:$0xff] %v4213
      %4246 = vst [vmem:[#allocation2 + $0x70] sm:$0xff] %v4214
      %4247 = vst [vmem:[#allocation2 + $0x78] sm:$0xff] %v4215
      %4248 = vst [vmem:[#allocation2 + $0x80] sm:$0xff] %v4216
      %4249 = vst [vmem:[#allocation2 + $0x88] sm:$0xff] %v4217
      %4250 = vst [vmem:[#allocation2 + $0x90] sm:$0xff] %v4218
      %4251 = vst [vmem:[#allocation2 + $0x98] sm:$0xff] %v4219
      %4252 = vst [vmem:[#allocation2 + $0xa0] sm:$0xff] %v4220
      %4253 = vst [vmem:[#allocation2 + $0xa8] sm:$0xff] %v4221
      %4254 = vst [vmem:[#allocation2 + $0xb0] sm:$0xff] %v4222
      %4255 = vst [vmem:[#allocation2 + $0xb8] sm:$0xff] %v4223
      %4256 = vst [vmem:[#allocation2 + $0xc0] sm:$0xff] %v4224
      %4257 = vst [vmem:[#allocation2 + $0xc8] sm:$0xff] %v4225
      %4258 = vst [vmem:[#allocation2 + $0xd0] sm:$0xff] %v4226
      %4259 = vst [vmem:[#allocation2 + $0xd8] sm:$0xff] %v4227
      %4260 = vst [vmem:[#allocation2 + $0xe0] sm:$0xff] %v4228
      %4261 = vst [vmem:[#allocation2 + $0xe8] sm:$0xff] %v4229
      %4262 = vst [vmem:[#allocation2 + $0xf0] sm:$0xff] %v4230
      %4263 = vst [vmem:[#allocation2 + $0xf8] sm:$0xff] %v4231
      %v4264 = vld [vmem:[#allocation2] sm:$0xff]
      %v4265 = vld [vmem:[#allocation2 + $0x8] sm:$0xff]
      %v4266 = vld [vmem:[#allocation2 + $0x10] sm:$0xff]
      %v4267 = vld [vmem:[#allocation2 + $0x18] sm:$0xff]
      %v4268 = vld [vmem:[#allocation2 + $0x20] sm:$0xff]
      %v4269 = vld [vmem:[#allocation2 + $0x28] sm:$0xff]
      %v4270 = vld [vmem:[#allocation2 + $0x30] sm:$0xff]
      %v4271 = vld [vmem:[#allocation2 + $0x38] sm:$0xff]
      %v4272 = vld [vmem:[#allocation2 + $0x40] sm:$0xff]
      %v4273 = vld [vmem:[#allocation2 + $0x48] sm:$0xff]
      %v4274 = vld [vmem:[#allocation2 + $0x50] sm:$0xff]
      %v4275 = vld [vmem:[#allocation2 + $0x58] sm:$0xff]
      %v4276 = vld [vmem:[#allocation2 + $0x60] sm:$0xff]
      %v4277 = vld [vmem:[#allocation2 + $0x68] sm:$0xff]
      %v4278 = vld [vmem:[#allocation2 + $0x70] sm:$0xff]
      %v4279 = vld [vmem:[#allocation2 + $0x78] sm:$0xff]
      %v4280 = vld [vmem:[#allocation2 + $0x80] sm:$0xff]
      %v4281 = vld [vmem:[#allocation2 + $0x88] sm:$0xff]
      %v4282 = vld [vmem:[#allocation2 + $0x90] sm:$0xff]
      %v4283 = vld [vmem:[#allocation2 + $0x98] sm:$0xff]
      %v4284 = vld [vmem:[#allocation2 + $0xa0] sm:$0xff]
      %v4285 = vld [vmem:[#allocation2 + $0xa8] sm:$0xff]
      %v4286 = vld [vmem:[#allocation2 + $0xb0] sm:$0xff]
      %v4287 = vld [vmem:[#allocation2 + $0xb8] sm:$0xff]
      %v4288 = vld [vmem:[#allocation2 + $0xc0] sm:$0xff]
      %v4289 = vld [vmem:[#allocation2 + $0xc8] sm:$0xff]
      %v4290 = vld [vmem:[#allocation2 + $0xd0] sm:$0xff]
      %v4291 = vld [vmem:[#allocation2 + $0xd8] sm:$0xff]
      %v4292 = vld [vmem:[#allocation2 + $0xe0] sm:$0xff]
      %v4293 = vld [vmem:[#allocation2 + $0xe8] sm:$0xff]
      %v4294 = vld [vmem:[#allocation2 + $0xf0] sm:$0xff]
      %v4295 = vld [vmem:[#allocation2 + $0xf8] sm:$0xff]
      %4296 = vst [vmem:[%s168] sm:$0xff] %v4264
      %4297 = vst [vmem:[%s168 + $0x8] sm:$0xff] %v4265
      %4298 = vst [vmem:[%s168 + $0x10] sm:$0xff] %v4266
      %4299 = vst [vmem:[%s168 + $0x18] sm:$0xff] %v4267
      %4300 = vst [vmem:[%s168 + $0x20] sm:$0xff] %v4268
      %4301 = vst [vmem:[%s168 + $0x28] sm:$0xff] %v4269
      %4302 = vst [vmem:[%s168 + $0x30] sm:$0xff] %v4270
      %4303 = vst [vmem:[%s168 + $0x38] sm:$0xff] %v4271
      %4304 = vst [vmem:[%s168 + $0x40] sm:$0xff] %v4272
      %4305 = vst [vmem:[%s168 + $0x48] sm:$0xff] %v4273
      %4306 = vst [vmem:[%s168 + $0x50] sm:$0xff] %v4274
      %4307 = vst [vmem:[%s168 + $0x58] sm:$0xff] %v4275
      %4308 = vst [vmem:[%s168 + $0x60] sm:$0xff] %v4276
      %4309 = vst [vmem:[%s168 + $0x68] sm:$0xff] %v4277
      %4310 = vst [vmem:[%s168 + $0x70] sm:$0xff] %v4278
      %4311 = vst [vmem:[%s168 + $0x78] sm:$0xff] %v4279
      %4312 = vst [vmem:[%s168 + $0x80] sm:$0xff] %v4280
      %4313 = vst [vmem:[%s168 + $0x88] sm:$0xff] %v4281
      %4314 = vst [vmem:[%s168 + $0x90] sm:$0xff] %v4282
      %4315 = vst [vmem:[%s168 + $0x98] sm:$0xff] %v4283
      %4316 = vst [vmem:[%s168 + $0xa0] sm:$0xff] %v4284
      %4317 = vst [vmem:[%s168 + $0xa8] sm:$0xff] %v4285
      %4318 = vst [vmem:[%s168 + $0xb0] sm:$0xff] %v4286
      %4319 = vst [vmem:[%s168 + $0xb8] sm:$0xff] %v4287
      %4320 = vst [vmem:[%s168 + $0xc0] sm:$0xff] %v4288
      %4321 = vst [vmem:[%s168 + $0xc8] sm:$0xff] %v4289
      %4322 = vst [vmem:[%s168 + $0xd0] sm:$0xff] %v4290
      %4323 = vst [vmem:[%s168 + $0xd8] sm:$0xff] %v4291
      %4324 = vst [vmem:[%s168 + $0xe0] sm:$0xff] %v4292
      %4325 = vst [vmem:[%s168 + $0xe8] sm:$0xff] %v4293
      %4326 = vst [vmem:[%s168 + $0xf0] sm:$0xff] %v4294
      %4327 = vst [vmem:[%s168 + $0xf8] sm:$0xff] %v4295
      %v4328 = vadd.f32 %v4264, %v4265
      %v4329 = vadd.f32 %v4328, %v4266
      %v4330 = vadd.f32 %v4329, %v4267
      %v4331 = vadd.f32 %v4330, %v4268
      %v4332 = vadd.f32 %v4331, %v4269
      %v4333 = vadd.f32 %v4332, %v4270
      %v4334 = vadd.f32 %v4333, %v4271
      %v4335 = vadd.f32 %v4334, %v4272
      %v4336 = vadd.f32 %v4335, %v4273
      %v4337 = vadd.f32 %v4336, %v4274
      %v4338 = vadd.f32 %v4337, %v4275
      %v4339 = vadd.f32 %v4338, %v4276
      %v4340 = vadd.f32 %v4339, %v4277
      %v4341 = vadd.f32 %v4340, %v4278
      %v4342 = vadd.f32 %v4341, %v4279
      %v4343 = vadd.f32 %v4342, %v4280
      %v4344 = vadd.f32 %v4343, %v4281
      %v4345 = vadd.f32 %v4344, %v4282
      %v4346 = vadd.f32 %v4345, %v4283
      %v4347 = vadd.f32 %v4346, %v4284
      %v4348 = vadd.f32 %v4347, %v4285
      %v4349 = vadd.f32 %v4348, %v4286
      %v4350 = vadd.f32 %v4349, %v4287
      %v4351 = vadd.f32 %v4350, %v4288
      %v4352 = vadd.f32 %v4351, %v4289
      %v4353 = vadd.f32 %v4352, %v4290
      %v4354 = vadd.f32 %v4353, %v4291
      %v4355 = vadd.f32 %v4354, %v4292
      %v4356 = vadd.f32 %v4355, %v4293
      %v4357 = vadd.f32 %v4356, %v4294
      %v4358 = vadd.f32 %v4357, %v4295
      %v4359 = vrot.slane %v4358, 4
      %v4360 = vadd.f32 %v4358, %v4359
      %v4361 = vrot.slane %v4360, 2
      %v4362 = vadd.f32 %v4360, %v4361
      %v4363 = vrot.slane %v4362, 1
      %v4364 = vadd.f32 %v4362, %v4363
      %v4365 = vmul.f32 %v4264, %v4264
      %v4366 = vmul.f32 %v4265, %v4265
      %v4367 = vmul.f32 %v4266, %v4266
      %v4368 = vmul.f32 %v4267, %v4267
      %v4369 = vmul.f32 %v4268, %v4268
      %v4370 = vmul.f32 %v4269, %v4269
      %v4371 = vmul.f32 %v4270, %v4270
      %v4372 = vmul.f32 %v4271, %v4271
      %v4373 = vmul.f32 %v4272, %v4272
      %v4374 = vmul.f32 %v4273, %v4273
      %v4375 = vmul.f32 %v4274, %v4274
      %v4376 = vmul.f32 %v4275, %v4275
      %v4377 = vmul.f32 %v4276, %v4276
      %v4378 = vmul.f32 %v4277, %v4277
      %v4379 = vmul.f32 %v4278, %v4278
      %v4380 = vmul.f32 %v4279, %v4279
      %v4381 = vmul.f32 %v4280, %v4280
      %v4382 = vmul.f32 %v4281, %v4281
      %v4383 = vmul.f32 %v4282, %v4282
      %v4384 = vmul.f32 %v4283, %v4283
      %v4385 = vmul.f32 %v4284, %v4284
      %v4386 = vmul.f32 %v4285, %v4285
      %v4387 = vmul.f32 %v4286, %v4286
      %v4388 = vmul.f32 %v4287, %v4287
      %v4389 = vmul.f32 %v4288, %v4288
      %v4390 = vmul.f32 %v4289, %v4289
      %v4391 = vmul.f32 %v4290, %v4290
      %v4392 = vmul.f32 %v4291, %v4291
      %v4393 = vmul.f32 %v4292, %v4292
      %v4394 = vmul.f32 %v4293, %v4293
      %v4395 = vmul.f32 %v4294, %v4294
      %v4396 = vmul.f32 %v4295, %v4295
      %v4397 = vadd.f32 %v4365, %v4366
      %v4398 = vadd.f32 %v4397, %v4367
      %v4399 = vadd.f32 %v4398, %v4368
      %v4400 = vadd.f32 %v4399, %v4369
      %v4401 = vadd.f32 %v4400, %v4370
      %v4402 = vadd.f32 %v4401, %v4371
      %v4403 = vadd.f32 %v4402, %v4372
      %v4404 = vadd.f32 %v4403, %v4373
      %v4405 = vadd.f32 %v4404, %v4374
      %v4406 = vadd.f32 %v4405, %v4375
      %v4407 = vadd.f32 %v4406, %v4376
      %v4408 = vadd.f32 %v4407, %v4377
      %v4409 = vadd.f32 %v4408, %v4378
      %v4410 = vadd.f32 %v4409, %v4379
      %v4411 = vadd.f32 %v4410, %v4380
      %v4412 = vadd.f32 %v4411, %v4381
      %v4413 = vadd.f32 %v4412, %v4382
      %v4414 = vadd.f32 %v4413, %v4383
      %v4415 = vadd.f32 %v4414, %v4384
      %v4416 = vadd.f32 %v4415, %v4385
      %v4417 = vadd.f32 %v4416, %v4386
      %v4418 = vadd.f32 %v4417, %v4387
      %v4419 = vadd.f32 %v4418, %v4388
      %v4420 = vadd.f32 %v4419, %v4389
      %v4421 = vadd.f32 %v4420, %v4390
      %v4422 = vadd.f32 %v4421, %v4391
      %v4423 = vadd.f32 %v4422, %v4392
      %v4424 = vadd.f32 %v4423, %v4393
      %v4425 = vadd.f32 %v4424, %v4394
      %v4426 = vadd.f32 %v4425, %v4395
      %v4427 = vadd.f32 %v4426, %v4396
      %v4428 = vrot.slane %v4427, 4
      %v4429 = vadd.f32 %v4427, %v4428
      %v4430 = vrot.slane %v4429, 2
      %v4431 = vadd.f32 %v4429, %v4430
      %v4432 = vrot.slane %v4431, 1
      %v4433 = vadd.f32 %v4431, %v4432
      %v4434 = vld [vmem:[%s3] sm:$0x3]
      %vm4435 = vcmask 1040384
      %v4436 = vsel %vm4435, %v4364, %v4433
      %v4437 = vadd.f32 %v4434, %v4436
      %4438 = vst [vmem:[%s3] sm:$0x3] %v4437
      %p4439 = scmp.lt.s32.totalorder %s15, 1
      %s4440 = scalar_select %p4439, %s15, 1
      %s4441 = smul.addr %s4440, 32
      %s4442 = smul.addr %s4441, 8
      %s4443 = scalar_lea.vmem %s2, %s4442
      // Predicated region
      $region33: #{block_forward.4} parent=27 // pred_check
        %p4444 = pneg %p80
      $region34: #{block_forward.4} parent=27 // pred_check_branch
        %4446 = sbr.rel (%p4444) target = $region36
      $region35: #{block_forward.4} parent=27 // pred_region
        _
      $region36: #{block_forward.4} parent=27 // pred_fallthru
        _
      // Predicated region
      $region37: #{block_forward.4} parent=27 // pred_check
        %p4447 = pneg %p101
      $region38: #{block_forward.4} parent=27 // pred_check_branch
        %4449 = sbr.rel (%p4447) target = $region40
      $region39: #{block_forward.4} parent=27 // pred_region
        _
      $region40: #{block_forward.4} parent=27 // pred_fallthru
        _
      // Predicated region
      $region41: #{block_forward.4} parent=27 // pred_check
        %p4450 = pneg %p101
      $region42: #{block_forward.4} parent=27 // pred_check_branch
        %4452 = sbr.rel (%p4450) target = $region44
      $region43: #{block_forward.4} parent=27 // pred_region
        _
      $region44: #{block_forward.4} parent=27 // pred_fallthru
        _
    $region28: #{block_forward.4} parent=5 // pred_fallthru
      _
    %p4453 = scmp.le.s32.totalorder 2, %s10
    // Predicated region
    $region45: #{block_forward.4} parent=5 // pred_check
      %p4454 = pneg %p4453
    $region46: #{block_forward.4} parent=5 // pred_check_branch
      %4456 = sbr.rel (%p4454) target = $region48
    $region47: #{block_forward.4} parent=5 // pred_region
      %s4457 = ssub.s32 %s10, 2
      // Predicated region
      $region49: #{block_forward.4} parent=47 // pred_check
        %p4458 = pneg %p86
      $region50: #{block_forward.4} parent=47 // pred_check_branch
        %4460 = sbr.rel (%p4458) target = $region52
      $region51: #{block_forward.4} parent=47 // pred_region
        %p4461 = scmp.lt.s32.totalorder %s16, 1
        %s4462 = scalar_select %p4461, %s16, 1
        %s4463 = smul.addr %s4462, 32
        %s4464 = smul.addr %s4463, 8
        %s4465 = scalar_lea.vmem %s2, %s4464
      $region52: #{block_forward.4} parent=47 // pred_fallthru
        _
    $region48: #{block_forward.4} parent=5 // pred_fallthru
      _
  $region6: #{block_forward.4} parent=0 // loop_footer
    %s14 = sadd.s32 1, %s10
  $region7: #{block_forward.4} parent=0 // loop_footer_branch
    %9 = sbr.rel target = $region3
  $region8: #{block_forward.4} parent=0 // loop_exit
    _

</llo_original>
